<compile_context>
chip_gen: v7x
topology: tpu7x:2x2x1
jax: 0.10.0
libtpu: 0.0.40
codegen_flags: <defaults>
</compile_context>

<pallas_src>
import jax
import jax.numpy as jnp
from jax import lax
from jax.experimental import pallas as pl
from jax.experimental.pallas import tpu as pltpu


# ----------------------------------------------------------------------------
# Pallas kernel: fused 3x3 conv (padding=1) + folded-BN bias + ReLU
# ----------------------------------------------------------------------------
def _conv_block_kernel(x_ref, w_ref, bias_ref, o_ref, patch_ref):
    """One batch block per grid step.

    x_ref:     (Bb, H, W, C_in)    bf16 NHWC activation block (unpadded)
    w_ref:     (9*C_in, C_out)     bf16 weights, tap-major, BN scale pre-folded
    bias_ref:  (1, C_out)          f32 folded bias = (conv_b - mean)*scale + beta
    o_ref:     (Bb, H, W, C_out)   bf16 output block
    patch_ref: (Bb, H, W, 9*C_in)  bf16 VMEM im2col scratch
    """
    bb, hh, ww, c_in = x_ref.shape
    c_out = o_ref.shape[-1]
    m = bb * hh * ww

    # ---- im2col into VMEM: patch[b,h,w, tap*C:(tap+1)*C] = x[b, h+dy-1, w+dx-1, :]
    # Lane offsets (tap*C) are 128-aligned, H slices address whole tile rows;
    # only the dx shift needs sublane work.  The padding=1 zeros are written
    # only on the single missing border row/col per off-center tap (no
    # pre-padded HBM copy, no full-scratch memset).
    for dy in range(3):
        for dx in range(3):
            tap = dy * 3 + dx
            lo, hi = tap * c_in, (tap + 1) * c_in
            sy, sx = dy - 1, dx - 1
            sh0, sh1 = max(0, sy), hh + min(0, sy)      # source row range
            dh0, dh1 = max(0, -sy), hh + min(0, -sy)    # dest   row range
            sw0, sw1 = max(0, sx), ww + min(0, sx)      # source col range
            dw0, dw1 = max(0, -sx), ww + min(0, -sx)    # dest   col range
            patch_ref[:, dh0:dh1, dw0:dw1, lo:hi] = x_ref[:, sh0:sh1, sw0:sw1, :]
            if sy < 0:    # tap reads above the image -> dest row 0 is padding
                patch_ref[:, 0:1, :, lo:hi] = jnp.zeros((bb, 1, ww, c_in), x_ref.dtype)
            elif sy > 0:  # below the image -> dest row H-1 is padding
                patch_ref[:, hh - 1:hh, :, lo:hi] = jnp.zeros((bb, 1, ww, c_in), x_ref.dtype)
            if sx < 0:    # left of the image -> dest col 0 is padding
                patch_ref[:, :, 0:1, lo:hi] = jnp.zeros((bb, hh, 1, c_in), x_ref.dtype)
            elif sx > 0:  # right of the image -> dest col W-1 is padding
                patch_ref[:, :, ww - 1:ww, lo:hi] = jnp.zeros((bb, hh, 1, c_in), x_ref.dtype)

    # ---- single K = 9*C_in MXU matmul, f32 accumulation inside the MXU.
    # The (Bb,H,W,9C) -> (M,9C) reshape is layout-preserving when W % 8 == 0.
    patches = patch_ref[...].reshape(m, 9 * c_in)
    acc = jnp.dot(patches, w_ref[...], preferred_element_type=jnp.float32)

    # ---- epilogue: folded-BN bias + ReLU, single lane-dense bf16 store
    y = jnp.maximum(acc + bias_ref[...], 0.0)
    o_ref[...] = y.astype(o_ref.dtype).reshape(bb, hh, ww, c_out)


# ----------------------------------------------------------------------------
# One-time (outside jit) parameter preparation
# ----------------------------------------------------------------------------
def prepare_conv_block_params(w_oihw, conv_b, gamma, beta, mean, var, eps=1e-5):
    """Fold eval-mode BN into the conv weights/bias (in f32), reshape weights
    to (9*C_in, C_out) tap-major, and cast to bf16 once."""
    o, i, kh, kw = w_oihw.shape
    assert (kh, kw) == (3, 3)
    scale = gamma / jnp.sqrt(var + eps)                          # (O,)
    bias = (conv_b - mean) * scale + beta                        # (O,)
    w_folded = w_oihw * scale[:, None, None, None]               # fold in f32
    # (O, I, 3, 3) -> (3, 3, I, O) -> (9*I, O); row index = (dy*3+dx)*I + ci
    w_km = jnp.transpose(w_folded, (2, 3, 1, 0)).reshape(9 * i, o)
    return w_km.astype(jnp.bfloat16), bias.reshape(1, o).astype(jnp.float32)


def _choose_block_batch(B, H, W, target_rows=256):
    """Pick Bb so M = Bb*H*W >= ~256, Bb | B, and (if B allows) >= 2 grid steps
    so v7x can shard the batch across its two TensorCores."""
    hw = H * W
    bb = min(B, max(1, -(-target_rows // hw)))
    while B % bb:
        bb -= 1
    if B >= 2 and B // bb < 2:
        bb = max(1, B // 2)
        while B % bb:
            bb -= 1
    return max(bb, 1)


# ----------------------------------------------------------------------------
# Forward wrapper: NHWC bf16 in -> NHWC bf16 out (no transposes, no XLA pad)
# ----------------------------------------------------------------------------
def conv_block_forward(x_nhwc, w_km, bias, *, block_batch=None):
    B, H, W, C_in = x_nhwc.shape
    KC, C_out = w_km.shape
    assert KC == 9 * C_in
    Bb = block_batch or _choose_block_batch(B, H, W)
    assert B % Bb == 0

    return pl.pallas_call(
        _conv_block_kernel,
        out_shape=jax.ShapeDtypeStruct((B, H, W, C_out), x_nhwc.dtype),
        grid_spec=pltpu.PrefetchScalarGridSpec(
            num_scalar_prefetch=0,
            grid=(B // Bb,),
            in_specs=[
                pl.BlockSpec((Bb, H, W, C_in), lambda b: (b, 0, 0, 0)),
                # constant block index -> weights DMA'd once, stay VMEM-resident
                pl.BlockSpec((9 * C_in, C_out), lambda b: (0, 0)),
                pl.BlockSpec((1, C_out), lambda b: (0, 0)),
            ],
            out_specs=pl.BlockSpec((Bb, H, W, C_out), lambda b: (b, 0, 0, 0)),
            scratch_shapes=[pltpu.VMEM((Bb, H, W, 9 * C_in), x_nhwc.dtype)],
        ),
        compiler_params=pltpu.CompilerParams(
            dimension_semantics=("parallel",),      # v7x: batch over 2 TCs
            vmem_limit_bytes=32 * 1024 * 1024,      # ~2.3 MiB needed; safe on all gens
        ),
    )(x_nhwc, w_km, bias)


# ----------------------------------------------------------------------------
# Pure-JAX reference (f32, NHWC) for validation
# ----------------------------------------------------------------------------
def conv_block_reference(x_nhwc, w_oihw, conv_b, gamma, beta, mean, var, eps=1e-5):
    w_hwio = jnp.transpose(w_oihw, (2, 3, 1, 0))
    y = lax.conv_general_dilated(
        x_nhwc, w_hwio, window_strides=(1, 1), padding=((1, 1), (1, 1)),
        dimension_numbers=("NHWC", "HWIO", "NHWC"))
    y = y + conv_b
    s = gamma / jnp.sqrt(var + eps)
    t = beta - mean * s
    return jnp.maximum(y * s + t, 0.0)


# ----------------------------------------------------------------------------
if __name__ == "__main__":
    H_DIM = 128                 # ConvBlock(h_dim) channel width (lane-friendly)
    B, H, W = 2, 16, 16         # M = H*W = 256 rows per image; W % 8 == 0

    key = jax.random.PRNGKey(0)
    kx, kw, kb, kg, kbe, km, kv = jax.random.split(key, 7)

    x_f32 = jax.random.normal(kx, (B, H, W, H_DIM), jnp.float32)        # NHWC
    x = x_f32.astype(jnp.bfloat16)      # activations stay NHWC bf16 across layers
    w = 0.05 * jax.random.normal(kw, (H_DIM, H_DIM, 3, 3), jnp.float32)
    b = 0.05 * jax.random.normal(kb, (H_DIM,), jnp.float32)
    gamma = 1.0 + 0.1 * jax.random.normal(kg, (H_DIM,), jnp.float32)
    beta = 0.1 * jax.random.normal(kbe, (H_DIM,), jnp.float32)
    mean = 0.1 * jax.random.normal(km, (H_DIM,), jnp.float32)
    var = 0.5 + jax.random.uniform(kv, (H_DIM,), jnp.float32)

    # BN-fold / reshape / bf16 cast happens once, outside jit
    w_km, bias = prepare_conv_block_params(w, b, gamma, beta, mean, var)

    fwd = jax.jit(conv_block_forward)
    out = fwd(x, w_km, bias)
    jax.block_until_ready(out)

    ref = conv_block_reference(x.astype(jnp.float32), w, b, gamma, beta, mean, var)
    err = float(jnp.max(jnp.abs(out.astype(jnp.float32) - ref)))
    assert out.shape == (B, H, W, H_DIM)
    # bf16 operands + bf16 output over K = 9*128 = 1152 accumulated products
    assert err < 0.15, f"max abs err vs f32 reference: {err}"
    print("KERNEL_OK")
</pallas_src>

<mosaic_0001>
module attributes {stable_mosaic.version = 11 : i64} {
  func.func @_conv_block_kernel(%arg0: i32, %arg1: memref<1x16x16x128xbf16, #tpu.memory_space<vmem>>, %arg2: memref<1152x128xbf16, #tpu.memory_space<vmem>>, %arg3: memref<1x128xf32, #tpu.memory_space<vmem>>, %arg4: memref<1x16x16x128xbf16, #tpu.memory_space<vmem>>, %arg5: memref<1x16x16x1152xbf16, #tpu.memory_space<vmem>>) attributes {dimension_semantics = [#tpu.dimension_semantics<parallel>], iteration_bounds = array<i64: 2>, scalar_prefetch = 0 : i64, scratch_operands = 1 : i64, tpu.core_type = #tpu.core_type<tc>, window_params = [{transform_indices = @transform_0, window_bounds = array<i64: 1, 16, 16, 128>}, {pipeline_mode = #tpu.pipeline_mode<synchronous>, transform_indices = @transform_1, window_bounds = array<i64: 1152, 128>}, {pipeline_mode = #tpu.pipeline_mode<synchronous>, transform_indices = @transform_2, window_bounds = array<i64: 1, 128>}, {transform_indices = @transform_3, window_bounds = array<i64: 1, 16, 16, 128>}]} {
    %c0 = arith.constant 0 : index
    %c0_0 = arith.constant 0 : index
    %c0_1 = arith.constant 0 : index
    %c0_2 = arith.constant 0 : index
    %0 = vector.load %arg1[%c0, %c0_0, %c0_1, %c0_2] : memref<1x16x16x128xbf16, #tpu.memory_space<vmem>>, vector<1x15x15x128xbf16>
    %c0_3 = arith.constant 0 : index
    %c1 = arith.constant 1 : index
    %c1_4 = arith.constant 1 : index
    %c0_5 = arith.constant 0 : index
    %1 = vector.load %arg5[%c0_3, %c1, %c1_4, %c0_5] : memref<1x16x16x1152xbf16, #tpu.memory_space<vmem>>, vector<1x15x15x128xbf16>
    tpu.vector_store %arg5[%c0_3, %c1, %c1_4, %c0_5], %0 {strides = array<i32>} : memref<1x16x16x1152xbf16, #tpu.memory_space<vmem>>, vector<1x15x15x128xbf16>,
    %cst = arith.constant 0.000000e+00 : bf16
    %2 = vector.broadcast %cst : bf16 to vector<1x1x16x128xbf16>
    %c0_6 = arith.constant 0 : index
    %c0_7 = arith.constant 0 : index
    %c0_8 = arith.constant 0 : index
    %c0_9 = arith.constant 0 : index
    %3 = vector.load %arg5[%c0_6, %c0_7, %c0_8, %c0_9] : memref<1x16x16x1152xbf16, #tpu.memory_space<vmem>>, vector<1x1x16x128xbf16>
    tpu.vector_store %arg5[%c0_6, %c0_7, %c0_8, %c0_9], %2 {strides = array<i32>} : memref<1x16x16x1152xbf16, #tpu.memory_space<vmem>>, vector<1x1x16x128xbf16>,
    %cst_10 = arith.constant 0.000000e+00 : bf16
    %4 = vector.broadcast %cst_10 : bf16 to vector<1x16x1x128xbf16>
    %c0_11 = arith.constant 0 : index
    %c0_12 = arith.constant 0 : index
    %c0_13 = arith.constant 0 : index
    %c0_14 = arith.constant 0 : index
    %5 = vector.load %arg5[%c0_11, %c0_12, %c0_13, %c0_14] : memref<1x16x16x1152xbf16, #tpu.memory_space<vmem>>, vector<1x16x1x128xbf16>
    tpu.vector_store %arg5[%c0_11, %c0_12, %c0_13, %c0_14], %4 {strides = array<i32>} : memref<1x16x16x1152xbf16, #tpu.memory_space<vmem>>, vector<1x16x1x128xbf16>,
    %c0_15 = arith.constant 0 : index
    %c0_16 = arith.constant 0 : index
    %c0_17 = arith.constant 0 : index
    %c0_18 = arith.constant 0 : index
    %6 = vector.load %arg1[%c0_15, %c0_16, %c0_17, %c0_18] : memref<1x16x16x128xbf16, #tpu.memory_space<vmem>>, vector<1x15x16x128xbf16>
    %c0_19 = arith.constant 0 : index
    %c1_20 = arith.constant 1 : index
    %c0_21 = arith.constant 0 : index
    %c128 = arith.constant 128 : index
    %7 = vector.load %arg5[%c0_19, %c1_20, %c0_21, %c128] : memref<1x16x16x1152xbf16, #tpu.memory_space<vmem>>, vector<1x15x16x128xbf16>
    tpu.vector_store %arg5[%c0_19, %c1_20, %c0_21, %c128], %6 {strides = array<i32>} : memref<1x16x16x1152xbf16, #tpu.memory_space<vmem>>, vector<1x15x16x128xbf16>,
    %cst_22 = arith.constant 0.000000e+00 : bf16
    %8 = vector.broadcast %cst_22 : bf16 to vector<1x1x16x128xbf16>
    %c0_23 = arith.constant 0 : index
    %c0_24 = arith.constant 0 : index
    %c0_25 = arith.constant 0 : index
    %c128_26 = arith.constant 128 : index
    %9 = vector.load %arg5[%c0_23, %c0_24, %c0_25, %c128_26] : memref<1x16x16x1152xbf16, #tpu.memory_space<vmem>>, vector<1x1x16x128xbf16>
    tpu.vector_store %arg5[%c0_23, %c0_24, %c0_25, %c128_26], %8 {strides = array<i32>} : memref<1x16x16x1152xbf16, #tpu.memory_space<vmem>>, vector<1x1x16x128xbf16>,
    %c0_27 = arith.constant 0 : index
    %c0_28 = arith.constant 0 : index
    %c1_29 = arith.constant 1 : index
    %c0_30 = arith.constant 0 : index
    %10 = vector.load %arg1[%c0_27, %c0_28, %c1_29, %c0_30] : memref<1x16x16x128xbf16, #tpu.memory_space<vmem>>, vector<1x15x15x128xbf16>
    %c0_31 = arith.constant 0 : index
    %c1_32 = arith.constant 1 : index
    %c0_33 = arith.constant 0 : index
    %c256 = arith.constant 256 : index
    %11 = vector.load %arg5[%c0_31, %c1_32, %c0_33, %c256] : memref<1x16x16x1152xbf16, #tpu.memory_space<vmem>>, vector<1x15x15x128xbf16>
    tpu.vector_store %arg5[%c0_31, %c1_32, %c0_33, %c256], %10 {strides = array<i32>} : memref<1x16x16x1152xbf16, #tpu.memory_space<vmem>>, vector<1x15x15x128xbf16>,
    %cst_34 = arith.constant 0.000000e+00 : bf16
    %12 = vector.broadcast %cst_34 : bf16 to vector<1x1x16x128xbf16>
    %c0_35 = arith.constant 0 : index
    %c0_36 = arith.constant 0 : index
    %c0_37 = arith.constant 0 : index
    %c256_38 = arith.constant 256 : index
    %13 = vector.load %arg5[%c0_35, %c0_36, %c0_37, %c256_38] : memref<1x16x16x1152xbf16, #tpu.memory_space<vmem>>, vector<1x1x16x128xbf16>
    tpu.vector_store %arg5[%c0_35, %c0_36, %c0_37, %c256_38], %12 {strides = array<i32>} : memref<1x16x16x1152xbf16, #tpu.memory_space<vmem>>, vector<1x1x16x128xbf16>,
    %cst_39 = arith.constant 0.000000e+00 : bf16
    %14 = vector.broadcast %cst_39 : bf16 to vector<1x16x1x128xbf16>
    %c0_40 = arith.constant 0 : index
    %c0_41 = arith.constant 0 : index
    %c15 = arith.constant 15 : index
    %c256_42 = arith.constant 256 : index
    %15 = vector.load %arg5[%c0_40, %c0_41, %c15, %c256_42] : memref<1x16x16x1152xbf16, #tpu.memory_space<vmem>>, vector<1x16x1x128xbf16>
    tpu.vector_store %arg5[%c0_40, %c0_41, %c15, %c256_42], %14 {strides = array<i32>} : memref<1x16x16x1152xbf16, #tpu.memory_space<vmem>>, vector<1x16x1x128xbf16>,
    %c0_43 = arith.constant 0 : index
    %c0_44 = arith.constant 0 : index
    %c0_45 = arith.constant 0 : index
    %c0_46 = arith.constant 0 : index
    %16 = vector.load %arg1[%c0_43, %c0_44, %c0_45, %c0_46] : memref<1x16x16x128xbf16, #tpu.memory_space<vmem>>, vector<1x16x15x128xbf16>
    %c0_47 = arith.constant 0 : index
    %c0_48 = arith.constant 0 : index
    %c1_49 = arith.constant 1 : index
    %c384 = arith.constant 384 : index
    %17 = vector.load %arg5[%c0_47, %c0_48, %c1_49, %c384] : memref<1x16x16x1152xbf16, #tpu.memory_space<vmem>>, vector<1x16x15x128xbf16>
    tpu.vector_store %arg5[%c0_47, %c0_48, %c1_49, %c384], %16 {strides = array<i32>} : memref<1x16x16x1152xbf16, #tpu.memory_space<vmem>>, vector<1x16x15x128xbf16>,
    %cst_50 = arith.constant 0.000000e+00 : bf16
    %18 = vector.broadcast %cst_50 : bf16 to vector<1x16x1x128xbf16>
    %c0_51 = arith.constant 0 : index
    %c0_52 = arith.constant 0 : index
    %c0_53 = arith.constant 0 : index
    %c384_54 = arith.constant 384 : index
    %19 = vector.load %arg5[%c0_51, %c0_52, %c0_53, %c384_54] : memref<1x16x16x1152xbf16, #tpu.memory_space<vmem>>, vector<1x16x1x128xbf16>
    tpu.vector_store %arg5[%c0_51, %c0_52, %c0_53, %c384_54], %18 {strides = array<i32>} : memref<1x16x16x1152xbf16, #tpu.memory_space<vmem>>, vector<1x16x1x128xbf16>,
    %c0_55 = arith.constant 0 : index
    %c0_56 = arith.constant 0 : index
    %c0_57 = arith.constant 0 : index
    %c0_58 = arith.constant 0 : index
    %20 = vector.load %arg1[%c0_55, %c0_56, %c0_57, %c0_58] : memref<1x16x16x128xbf16, #tpu.memory_space<vmem>>, vector<1x16x16x128xbf16>
    %c0_59 = arith.constant 0 : index
    %c0_60 = arith.constant 0 : index
    %c0_61 = arith.constant 0 : index
    %c512 = arith.constant 512 : index
    %21 = vector.load %arg5[%c0_59, %c0_60, %c0_61, %c512] : memref<1x16x16x1152xbf16, #tpu.memory_space<vmem>>, vector<1x16x16x128xbf16>
    tpu.vector_store %arg5[%c0_59, %c0_60, %c0_61, %c512], %20 {strides = array<i32>} : memref<1x16x16x1152xbf16, #tpu.memory_space<vmem>>, vector<1x16x16x128xbf16>,
    %c0_62 = arith.constant 0 : index
    %c0_63 = arith.constant 0 : index
    %c1_64 = arith.constant 1 : index
    %c0_65 = arith.constant 0 : index
    %22 = vector.load %arg1[%c0_62, %c0_63, %c1_64, %c0_65] : memref<1x16x16x128xbf16, #tpu.memory_space<vmem>>, vector<1x16x15x128xbf16>
    %c0_66 = arith.constant 0 : index
    %c0_67 = arith.constant 0 : index
    %c0_68 = arith.constant 0 : index
    %c640 = arith.constant 640 : index
    %23 = vector.load %arg5[%c0_66, %c0_67, %c0_68, %c640] : memref<1x16x16x1152xbf16, #tpu.memory_space<vmem>>, vector<1x16x15x128xbf16>
    tpu.vector_store %arg5[%c0_66, %c0_67, %c0_68, %c640], %22 {strides = array<i32>} : memref<1x16x16x1152xbf16, #tpu.memory_space<vmem>>, vector<1x16x15x128xbf16>,
    %cst_69 = arith.constant 0.000000e+00 : bf16
    %24 = vector.broadcast %cst_69 : bf16 to vector<1x16x1x128xbf16>
    %c0_70 = arith.constant 0 : index
    %c0_71 = arith.constant 0 : index
    %c15_72 = arith.constant 15 : index
    %c640_73 = arith.constant 640 : index
    %25 = vector.load %arg5[%c0_70, %c0_71, %c15_72, %c640_73] : memref<1x16x16x1152xbf16, #tpu.memory_space<vmem>>, vector<1x16x1x128xbf16>
    tpu.vector_store %arg5[%c0_70, %c0_71, %c15_72, %c640_73], %24 {strides = array<i32>} : memref<1x16x16x1152xbf16, #tpu.memory_space<vmem>>, vector<1x16x1x128xbf16>,
    %c0_74 = arith.constant 0 : index
    %c1_75 = arith.constant 1 : index
    %c0_76 = arith.constant 0 : index
    %c0_77 = arith.constant 0 : index
    %26 = vector.load %arg1[%c0_74, %c1_75, %c0_76, %c0_77] : memref<1x16x16x128xbf16, #tpu.memory_space<vmem>>, vector<1x15x15x128xbf16>
    %c0_78 = arith.constant 0 : index
    %c0_79 = arith.constant 0 : index
    %c1_80 = arith.constant 1 : index
    %c768 = arith.constant 768 : index
    %27 = vector.load %arg5[%c0_78, %c0_79, %c1_80, %c768] : memref<1x16x16x1152xbf16, #tpu.memory_space<vmem>>, vector<1x15x15x128xbf16>
    tpu.vector_store %arg5[%c0_78, %c0_79, %c1_80, %c768], %26 {strides = array<i32>} : memref<1x16x16x1152xbf16, #tpu.memory_space<vmem>>, vector<1x15x15x128xbf16>,
    %cst_81 = arith.constant 0.000000e+00 : bf16
    %28 = vector.broadcast %cst_81 : bf16 to vector<1x1x16x128xbf16>
    %c0_82 = arith.constant 0 : index
    %c15_83 = arith.constant 15 : index
    %c0_84 = arith.constant 0 : index
    %c768_85 = arith.constant 768 : index
    %29 = vector.load %arg5[%c0_82, %c15_83, %c0_84, %c768_85] : memref<1x16x16x1152xbf16, #tpu.memory_space<vmem>>, vector<1x1x16x128xbf16>
    tpu.vector_store %arg5[%c0_82, %c15_83, %c0_84, %c768_85], %28 {strides = array<i32>} : memref<1x16x16x1152xbf16, #tpu.memory_space<vmem>>, vector<1x1x16x128xbf16>,
    %cst_86 = arith.constant 0.000000e+00 : bf16
    %30 = vector.broadcast %cst_86 : bf16 to vector<1x16x1x128xbf16>
    %c0_87 = arith.constant 0 : index
    %c0_88 = arith.constant 0 : index
    %c0_89 = arith.constant 0 : index
    %c768_90 = arith.constant 768 : index
    %31 = vector.load %arg5[%c0_87, %c0_88, %c0_89, %c768_90] : memref<1x16x16x1152xbf16, #tpu.memory_space<vmem>>, vector<1x16x1x128xbf16>
    tpu.vector_store %arg5[%c0_87, %c0_88, %c0_89, %c768_90], %30 {strides = array<i32>} : memref<1x16x16x1152xbf16, #tpu.memory_space<vmem>>, vector<1x16x1x128xbf16>,
    %c0_91 = arith.constant 0 : index
    %c1_92 = arith.constant 1 : index
    %c0_93 = arith.constant 0 : index
    %c0_94 = arith.constant 0 : index
    %32 = vector.load %arg1[%c0_91, %c1_92, %c0_93, %c0_94] : memref<1x16x16x128xbf16, #tpu.memory_space<vmem>>, vector<1x15x16x128xbf16>
    %c0_95 = arith.constant 0 : index
    %c0_96 = arith.constant 0 : index
    %c0_97 = arith.constant 0 : index
    %c896 = arith.constant 896 : index
    %33 = vector.load %arg5[%c0_95, %c0_96, %c0_97, %c896] : memref<1x16x16x1152xbf16, #tpu.memory_space<vmem>>, vector<1x15x16x128xbf16>
    tpu.vector_store %arg5[%c0_95, %c0_96, %c0_97, %c896], %32 {strides = array<i32>} : memref<1x16x16x1152xbf16, #tpu.memory_space<vmem>>, vector<1x15x16x128xbf16>,
    %cst_98 = arith.constant 0.000000e+00 : bf16
    %34 = vector.broadcast %cst_98 : bf16 to vector<1x1x16x128xbf16>
    %c0_99 = arith.constant 0 : index
    %c15_100 = arith.constant 15 : index
    %c0_101 = arith.constant 0 : index
    %c896_102 = arith.constant 896 : index
    %35 = vector.load %arg5[%c0_99, %c15_100, %c0_101, %c896_102] : memref<1x16x16x1152xbf16, #tpu.memory_space<vmem>>, vector<1x1x16x128xbf16>
    tpu.vector_store %arg5[%c0_99, %c15_100, %c0_101, %c896_102], %34 {strides = array<i32>} : memref<1x16x16x1152xbf16, #tpu.memory_space<vmem>>, vector<1x1x16x128xbf16>,
    %c0_103 = arith.constant 0 : index
    %c1_104 = arith.constant 1 : index
    %c1_105 = arith.constant 1 : index
    %c0_106 = arith.constant 0 : index
    %36 = vector.load %arg1[%c0_103, %c1_104, %c1_105, %c0_106] : memref<1x16x16x128xbf16, #tpu.memory_space<vmem>>, vector<1x15x15x128xbf16>
    %c0_107 = arith.constant 0 : index
    %c0_108 = arith.constant 0 : index
    %c0_109 = arith.constant 0 : index
    %c1024 = arith.constant 1024 : index
    %37 = vector.load %arg5[%c0_107, %c0_108, %c0_109, %c1024] : memref<1x16x16x1152xbf16, #tpu.memory_space<vmem>>, vector<1x15x15x128xbf16>
    tpu.vector_store %arg5[%c0_107, %c0_108, %c0_109, %c1024], %36 {strides = array<i32>} : memref<1x16x16x1152xbf16, #tpu.memory_space<vmem>>, vector<1x15x15x128xbf16>,
    %cst_110 = arith.constant 0.000000e+00 : bf16
    %38 = vector.broadcast %cst_110 : bf16 to vector<1x1x16x128xbf16>
    %c0_111 = arith.constant 0 : index
    %c15_112 = arith.constant 15 : index
    %c0_113 = arith.constant 0 : index
    %c1024_114 = arith.constant 1024 : index
    %39 = vector.load %arg5[%c0_111, %c15_112, %c0_113, %c1024_114] : memref<1x16x16x1152xbf16, #tpu.memory_space<vmem>>, vector<1x1x16x128xbf16>
    tpu.vector_store %arg5[%c0_111, %c15_112, %c0_113, %c1024_114], %38 {strides = array<i32>} : memref<1x16x16x1152xbf16, #tpu.memory_space<vmem>>, vector<1x1x16x128xbf16>,
    %cst_115 = arith.constant 0.000000e+00 : bf16
    %40 = vector.broadcast %cst_115 : bf16 to vector<1x16x1x128xbf16>
    %c0_116 = arith.constant 0 : index
    %c0_117 = arith.constant 0 : index
    %c15_118 = arith.constant 15 : index
    %c1024_119 = arith.constant 1024 : index
    %41 = vector.load %arg5[%c0_116, %c0_117, %c15_118, %c1024_119] : memref<1x16x16x1152xbf16, #tpu.memory_space<vmem>>, vector<1x16x1x128xbf16>
    tpu.vector_store %arg5[%c0_116, %c0_117, %c15_118, %c1024_119], %40 {strides = array<i32>} : memref<1x16x16x1152xbf16, #tpu.memory_space<vmem>>, vector<1x16x1x128xbf16>,
    %c0_120 = arith.constant 0 : index
    %c0_121 = arith.constant 0 : index
    %c0_122 = arith.constant 0 : index
    %c0_123 = arith.constant 0 : index
    %42 = vector.load %arg5[%c0_120, %c0_121, %c0_122, %c0_123] : memref<1x16x16x1152xbf16, #tpu.memory_space<vmem>>, vector<1x16x16x1152xbf16>
    %43 = vector.shape_cast %42 : vector<1x16x16x1152xbf16> to vector<256x1152xbf16>
    %c0_124 = arith.constant 0 : index
    %c0_125 = arith.constant 0 : index
    %44 = vector.load %arg2[%c0_124, %c0_125] : memref<1152x128xbf16, #tpu.memory_space<vmem>>, vector<1152x128xbf16>
    %cst_126 = arith.constant dense<0.000000e+00> : vector<256x128xf32>
    %45 = tpu.matmul %43, %44, %cst_126 {dimension_numbers = #tpu.dot_dimension_numbers<[1], [0], [0], [1], [0, 0, 1, 1], [], []>} : vector<256x1152xbf16>, vector<1152x128xbf16>, vector<256x128xf32> -> vector<256x128xf32>
    %c0_127 = arith.constant 0 : index
    %c0_128 = arith.constant 0 : index
    %46 = vector.load %arg3[%c0_127, %c0_128] : memref<1x128xf32, #tpu.memory_space<vmem>>, vector<1x128xf32>
    %47 = vector.broadcast %46 : vector<1x128xf32> to vector<256x128xf32>
    %48 = arith.addf %45, %47 : vector<256x128xf32>
    %cst_129 = arith.constant 0.000000e+00 : f32
    %49 = vector.broadcast %cst_129 : f32 to vector<256x128xf32>
    %50 = arith.maximumf %48, %49 : vector<256x128xf32>
    %51 = arith.truncf %50 : vector<256x128xf32> to vector<256x128xbf16>
    %52 = vector.shape_cast %51 : vector<256x128xbf16> to vector<1x16x16x128xbf16>
    %c0_130 = arith.constant 0 : index
    %c0_131 = arith.constant 0 : index
    %c0_132 = arith.constant 0 : index
    %c0_133 = arith.constant 0 : index
    %53 = vector.load %arg4[%c0_130, %c0_131, %c0_132, %c0_133] : memref<1x16x16x128xbf16, #tpu.memory_space<vmem>>, vector<1x16x16x128xbf16>
    tpu.vector_store %arg4[%c0_130, %c0_131, %c0_132, %c0_133], %52 {strides = array<i32>} : memref<1x16x16x128xbf16, #tpu.memory_space<vmem>>, vector<1x16x16x128xbf16>,
    return
  }
  func.func @transform_0(%arg0: i32) -> (i32, i32, i32, i32) {
    %c0_i32 = arith.constant 0 : i32
    %c0_i32_0 = arith.constant 0 : i32
    %c0_i32_1 = arith.constant 0 : i32
    %c0_i32_2 = arith.constant 0 : i32
    return %arg0, %c0_i32, %c0_i32_0, %c0_i32_1 : i32, i32, i32, i32
  }
  func.func @transform_1(%arg0: i32) -> (i32, i32) {
    %c0_i32 = arith.constant 0 : i32
    %c0_i32_0 = arith.constant 0 : i32
    %c0_i32_1 = arith.constant 0 : i32
    return %c0_i32, %c0_i32_0 : i32, i32
  }
  func.func @transform_2(%arg0: i32) -> (i32, i32) {
    %c0_i32 = arith.constant 0 : i32
    %c0_i32_0 = arith.constant 0 : i32
    %c0_i32_1 = arith.constant 0 : i32
    return %c0_i32, %c0_i32_0 : i32, i32
  }
  func.func @transform_3(%arg0: i32) -> (i32, i32, i32, i32) {
    %c0_i32 = arith.constant 0 : i32
    %c0_i32_0 = arith.constant 0 : i32
    %c0_i32_1 = arith.constant 0 : i32
    %c0_i32_2 = arith.constant 0 : i32
    return %arg0, %c0_i32, %c0_i32_0, %c0_i32_1 : i32, i32, i32, i32
  }
}

</mosaic_0001>

<llo_original>
// kernel: conv_block_forward.1
$region0: #{conv_block_forward.1}
  #allocation0 [shape = 'u32[]', space=smem, size = 0x4, offset = 0x4, fixed_abs, tag = 'smem constant byte address 0x4 - core index']
  #allocation1 [shape = 'u32[144,128]{1,0:T(1,128)}', space=vmem, size = 0x12000, scoped, tag = 'internal scratch']
  #allocation2 [shape = 'bf16[1,16,16,1152]{3,2,1,0:T(16,128)(2,1)}', space=vmem, size = 0x90000, scoped, tag = 'scratch operand']
  %s0 = inlined_call_operand.hbm [shape: bf16[2,16,16,128], index: 0, kind: input, shape index: {}]
  %s1 = inlined_call_operand.hbm [shape: bf16[1152,128], index: 1, kind: input, shape index: {}]
  %s2 = inlined_call_operand.vmem [shape: f32[1,128], index: 2, kind: input, shape index: {}]
  %s3 = inlined_call_operand.hbm [shape: bf16[2,16,16,128], index: 3, kind: output, shape index: {}]
  %s4 = sld [smem:[#allocation0]]
  $region53: #{conv_block_forward.1} parent=0
    _
  %s6 = ssub.s32 1, %s4
  %s7 = scalar_select 0, %s6, %s4
  $region1: #{conv_block_forward.1} parent=0
    #allocation3 [shape = 'u8[131072]{0}', space=vmem, size = 0x20000, scoped, tag = 'input window, operand 0']
    #allocation4 [shape = 's32[2]{0}', space=sflag, size = 0x8, scoped, tag = 'scoped memory for conv_block_forward.1']
    #allocation5 [shape = 's32[2]{0}', space=sflag, size = 0x8, scoped, tag = 'scoped memory for conv_block_forward.1']
    #allocation6 [shape = 'u8[294912]{0}', space=vmem, size = 0x48000, scoped, tag = 'input window, operand 1, single buffered']
    #allocation7 [shape = 's32[1]{0}', space=sflag, size = 0x4, scoped, tag = 'scoped memory for conv_block_forward.1']
    #allocation8 [shape = 'u8[131072]{0}', space=vmem, size = 0x20000, scoped, tag = 'output window, operand 0']
    %8 = vsyncpa [#allocation4], 0
    %s9 = scalar_lea.sflag [#allocation4], 1
    %10 = vsyncpa %s9, 0
    %11 = vsyncpa [#allocation7], 0
    %12 = vsyncpa [#allocation5], 0
    %s13 = scalar_lea.sflag [#allocation5], 1
    %14 = vsyncpa %s13, 0
    loop: start=0, step=1, limit=4
    $region2: #{conv_block_forward.1} parent=1 // loop_pre_header
      _
    $region3: #{conv_block_forward.1} parent=1 // loop_header
      %s16 = sphi 0, %s20
      %p17 = scmp.ge.s32.totalorder %s16, 4
      %s26 = sphi 0, %s28
      %s29 = sphi 0, %s26
      %s30 = sphi 0, %s29
      %s46 = sphi 0, %s30
      %s50 = sphi 0, %s50
      %s52 = sphi 0, %s50
      %s53 = sphi 0, %s52
      %s67 = sphi 0, %s53
      %s71 = sphi 0, %s71
      %s73 = sphi 0, %s71
      %s74 = sphi 0, %s73
      %s88 = sphi 0, %s74
      %s94 = sphi 0, %s96
      %s97 = sphi 0, %s94
      %s98 = sphi 0, %s97
      %s114 = sphi 0, %s98
    $region4: #{conv_block_forward.1} parent=1 // loop_header_branch
      %19 = sbr.rel (%p17) target = $region8
    $region5: #{conv_block_forward.1} parent=1 // loop_body
      %s21 = ssub.s32 %s16, 1
      %s22 = ssub.s32 %s16, 2
      %s23 = sadd.s32 %s16, 1
      %s24 = ssub.s32 %s16, %s23
      %p25 = scmp.eq.s32.totalorder %s24, 0
      %s27 = sadd.s32 %s26, 1
      %s28 = scalar_select %p25, %s26, %s27
      %p31 = pneg %p25
      %p32 = scmp.eq.s32.totalorder %s16, 1
      %p33 = por %p31, %p32
      %p34 = scmp.ne.s32.totalorder %s26, %s29
      %p35 = scmp.eq.s32.totalorder %s16, 0
      %p36 = por %p34, %p35
      %p37 = scmp.ne.s32.totalorder %s26, %s29
      %p38 = scmp.eq.s32.totalorder %s21, 1
      %p39 = por %p37, %p38
      %p40 = scmp.ne.s32.totalorder %s29, %s30
      %p41 = scmp.eq.s32.totalorder %s21, 0
      %p42 = por %p40, %p41
      %p43 = scmp.ne.s32.totalorder %s29, %s30
      %p44 = scmp.eq.s32.totalorder %s22, 1
      %p45 = por %p43, %p44
      %p47 = scmp.ne.s32.totalorder %s30, %s46
      %p48 = scmp.eq.s32.totalorder %s22, 0
      %p49 = por %p47, %p48
      %s51 = sadd.s32 %s50, 1
      %p54 = scmp.eq.s32.totalorder %s16, 1
      %p55 = scmp.ne.s32.totalorder %s50, %s52
      %p56 = scmp.eq.s32.totalorder %s16, 0
      %p57 = por %p55, %p56
      %p58 = scmp.ne.s32.totalorder %s50, %s52
      %p59 = scmp.eq.s32.totalorder %s21, 1
      %p60 = por %p58, %p59
      %p61 = scmp.ne.s32.totalorder %s52, %s53
      %p62 = scmp.eq.s32.totalorder %s21, 0
      %p63 = por %p61, %p62
      %p64 = scmp.ne.s32.totalorder %s52, %s53
      %p65 = scmp.eq.s32.totalorder %s22, 1
      %p66 = por %p64, %p65
      %p68 = scmp.ne.s32.totalorder %s53, %s67
      %p69 = scmp.eq.s32.totalorder %s22, 0
      %p70 = por %p68, %p69
      %s72 = sadd.s32 %s71, 1
      %p75 = scmp.eq.s32.totalorder %s16, 1
      %p76 = scmp.ne.s32.totalorder %s71, %s73
      %p77 = scmp.eq.s32.totalorder %s16, 0
      %p78 = por %p76, %p77
      %p79 = scmp.ne.s32.totalorder %s71, %s73
      %p80 = scmp.eq.s32.totalorder %s21, 1
      %p81 = por %p79, %p80
      %p82 = scmp.ne.s32.totalorder %s73, %s74
      %p83 = scmp.eq.s32.totalorder %s21, 0
      %p84 = por %p82, %p83
      %p85 = scmp.ne.s32.totalorder %s73, %s74
      %p86 = scmp.eq.s32.totalorder %s22, 1
      %p87 = por %p85, %p86
      %p89 = scmp.ne.s32.totalorder %s74, %s88
      %p90 = scmp.eq.s32.totalorder %s22, 0
      %p91 = por %p89, %p90
      %s92 = ssub.s32 %s16, %s23
      %p93 = scmp.eq.s32.totalorder %s92, 0
      %s95 = sadd.s32 %s94, 1
      %s96 = scalar_select %p93, %s94, %s95
      %p99 = pneg %p93
      %p100 = scmp.eq.s32.totalorder %s16, 1
      %p101 = por %p99, %p100
      %p102 = scmp.ne.s32.totalorder %s94, %s97
      %p103 = scmp.eq.s32.totalorder %s16, 0
      %p104 = por %p102, %p103
      %p105 = scmp.ne.s32.totalorder %s94, %s97
      %p106 = scmp.eq.s32.totalorder %s21, 1
      %p107 = por %p105, %p106
      %p108 = scmp.ne.s32.totalorder %s97, %s98
      %p109 = scmp.eq.s32.totalorder %s21, 0
      %p110 = por %p108, %p109
      %p111 = scmp.ne.s32.totalorder %s97, %s98
      %p112 = scmp.eq.s32.totalorder %s22, 1
      %p113 = por %p111, %p112
      %p115 = scmp.ne.s32.totalorder %s98, %s114
      %p116 = scmp.eq.s32.totalorder %s22, 0
      %p117 = por %p115, %p116
      %p118 = scmp.le.s32.totalorder 1, %s16
      %p119 = scmp.lt.s32.totalorder %s16, 3
      %p120 = pnand %p118, %p119
      %p121 = pneg %p120
      // Predicated region
      $region9: #{conv_block_forward.1} parent=5 // pred_check
        _
      $region10: #{conv_block_forward.1} parent=5 // pred_check_branch
        %123 = sbr.rel (%p120) target = $region12
      $region11: #{conv_block_forward.1} parent=5 // pred_region
        %s124 = ssub.s32 %s16, 1
        // Predicated region
        $region13: #{conv_block_forward.1} parent=11 // pred_check
          %p125 = pneg %p63
        $region14: #{conv_block_forward.1} parent=11 // pred_check_branch
          %127 = sbr.rel (%p125) target = $region16
        $region15: #{conv_block_forward.1} parent=11 // pred_region
          %s129 = ssub.s32 9216, 9216
          %130 = vsyncadd [#allocation7], %s129
          %s131 = sshll.u32 [#allocation6], 4
          %s132 = int_to_ptr.vmem [resolvable:$true] %s131
          %137 = dma.hbm_to_vmem [thread:$0]  %s1, 9216, %s132, [#allocation7], 64, 64, 4
        $region16: #{conv_block_forward.1} parent=11 // pred_fallthru
          _
        // Predicated region
        $region17: #{conv_block_forward.1} parent=11 // pred_check
          %p138 = pneg %p84
        $region18: #{conv_block_forward.1} parent=11 // pred_check_branch
          %140 = sbr.rel (%p138) target = $region20
        $region19: #{conv_block_forward.1} parent=11 // pred_region
          _
        $region20: #{conv_block_forward.1} parent=11 // pred_fallthru
          _
      $region12: #{conv_block_forward.1} parent=5 // pred_fallthru
        _
      %p141 = scmp.lt.s32.totalorder %s16, 2
      // Predicated region
      $region21: #{conv_block_forward.1} parent=5 // pred_check
        %p142 = pneg %p141
      $region22: #{conv_block_forward.1} parent=5 // pred_check_branch
        %144 = sbr.rel (%p142) target = $region24
      $region23: #{conv_block_forward.1} parent=5 // pred_region
        // Predicated region
        $region25: #{conv_block_forward.1} parent=23 // pred_check
          %p145 = pneg %p36
        $region26: #{conv_block_forward.1} parent=23 // pred_check_branch
          %147 = sbr.rel (%p145) target = $region28
        $region27: #{conv_block_forward.1} parent=23 // pred_region
          %s148 = sand.u32 %s26, 1
          %s149 = scalar_lea.sflag [#allocation4], %s148
          %s150 = sand.u32 %s26, 1
          %s151 = smul.addr %s150, 128
          %s152 = scalar_lea.vmem [#allocation3], %s151
          %s154 = ssub.s32 2048, 2048
          %155 = vsyncadd %s149, %s154
          %s156 = smul.addr %s16, 32
          %s157 = smul.addr %s156, 64
          %s158 = scalar_lea.hbm %s0, %s157
          %s159 = sshll.u32 %s152, 4
          %s160 = int_to_ptr.vmem [resolvable:$true] %s159
          %165 = dma.hbm_to_vmem [thread:$0]  %s158, 2048, %s160, %s149, 64, 64, 4
        $region28: #{conv_block_forward.1} parent=23 // pred_fallthru
          _
      $region24: #{conv_block_forward.1} parent=5 // pred_fallthru
        _
      %p166 = scmp.le.s32.totalorder 1, %s16
      %p167 = scmp.lt.s32.totalorder %s16, 3
      %p168 = pnand %p166, %p167
      %p169 = pneg %p168
      // Predicated region
      $region29: #{conv_block_forward.1} parent=5 // pred_check
        _
      $region30: #{conv_block_forward.1} parent=5 // pred_check_branch
        %171 = sbr.rel (%p168) target = $region32
      $region31: #{conv_block_forward.1} parent=5 // pred_region
        %s172 = ssub.s32 %s16, 1
        %s173 = sand.u32 %s29, 1
        %s174 = scalar_lea.sflag [#allocation4], %s173
        %s175 = sand.u32 %s29, 1
        %s176 = smul.addr %s175, 128
        %s177 = scalar_lea.vmem [#allocation3], %s176
        // Predicated region
        $region33: #{conv_block_forward.1} parent=31 // pred_check
          %p178 = pneg %p42
        $region34: #{conv_block_forward.1} parent=31 // pred_check_branch
          %180 = sbr.rel (%p178) target = $region36
        $region35: #{conv_block_forward.1} parent=31 // pred_region
          %181 = dma.done %s174, 2048
        $region36: #{conv_block_forward.1} parent=31 // pred_fallthru
          _
        // Predicated region
        $region37: #{conv_block_forward.1} parent=31 // pred_check
          %p182 = pneg %p63
        $region38: #{conv_block_forward.1} parent=31 // pred_check_branch
          %184 = sbr.rel (%p182) target = $region40
        $region39: #{conv_block_forward.1} parent=31 // pred_region
          %185 = dma.done [#allocation7], 9216
        $region40: #{conv_block_forward.1} parent=31 // pred_fallthru
          _
        %s186 = sand.u32 %s29, 1
        %s187 = scalar_lea.sflag [#allocation4], %s186
        %s188 = sand.u32 %s29, 1
        %s189 = smul.addr %s188, 128
        %s190 = scalar_lea.vmem [#allocation3], %s189
        %p191 = pneg %p42
        %p192 = pneg %p39
        %p193 = pneg %p63
        %p194 = pneg %p60
        %p195 = pneg %p84
        %p196 = pneg %p81
        %p197 = pneg %p110
        %p198 = pneg %p107
        %s199 = sand.u32 %s97, 1
        %s200 = scalar_lea.sflag [#allocation5], %s199
        %s201 = sand.u32 %s97, 1
        %s202 = smul.addr %s201, 128
        %s203 = scalar_lea.vmem [#allocation8], %s202
        %v205 = vld [vmem:[%s177] sm:$0xf]
        %v206 = vld [vmem:[%s177 + $0x4] sm:$0xf]
        %v207 = vld [vmem:[%s177 + $0x8] sm:$0xf]
        %v208 = vld [vmem:[%s177 + $0xc] sm:$0xf]
        %v209 = vld [vmem:[%s177 + $0x10] sm:$0xf]
        %v210 = vld [vmem:[%s177 + $0x14] sm:$0xf]
        %v211 = vld [vmem:[%s177 + $0x18] sm:$0xf]
        %v212 = vld [vmem:[%s177 + $0x1c] sm:$0xf]
        %v213 = vld [vmem:[%s177 + $0x20] sm:$0xf]
        %v214 = vld [vmem:[%s177 + $0x24] sm:$0xf]
        %v215 = vld [vmem:[%s177 + $0x28] sm:$0xf]
        %v216 = vld [vmem:[%s177 + $0x2c] sm:$0xf]
        %v217 = vld [vmem:[%s177 + $0x30] sm:$0xf]
        %v218 = vld [vmem:[%s177 + $0x34] sm:$0xf]
        %v219 = vld [vmem:[%s177 + $0x38] sm:$0xf]
        %v220 = vld [vmem:[%s177 + $0x3c] sm:$0xf]
        %v221 = vld [vmem:[%s177 + $0x40] sm:$0xf]
        %v222 = vld [vmem:[%s177 + $0x44] sm:$0xf]
        %v223 = vld [vmem:[%s177 + $0x48] sm:$0xf]
        %v224 = vld [vmem:[%s177 + $0x4c] sm:$0xf]
        %v225 = vld [vmem:[%s177 + $0x50] sm:$0xf]
        %v226 = vld [vmem:[%s177 + $0x54] sm:$0xf]
        %v227 = vld [vmem:[%s177 + $0x58] sm:$0xf]
        %v228 = vld [vmem:[%s177 + $0x5c] sm:$0xf]
        %v229 = vld [vmem:[%s177 + $0x60] sm:$0xf]
        %v230 = vld [vmem:[%s177 + $0x64] sm:$0xf]
        %v231 = vld [vmem:[%s177 + $0x68] sm:$0xf]
        %v232 = vld [vmem:[%s177 + $0x6c] sm:$0xf]
        %v233 = vld [vmem:[%s177 + $0x70] sm:$0xf]
        %v234 = vld [vmem:[%s177 + $0x74] sm:$0xf]
        %v265 = vunpack.c.l.b16 %v205
        %v266 = vunpack.c.l.b16 %v206
        %v267 = vunpack.c.l.b16 %v207
        %v268 = vunpack.c.l.b16 %v208
        %v269 = vunpack.c.l.b16 %v209
        %v270 = vunpack.c.l.b16 %v210
        %v271 = vunpack.c.l.b16 %v211
        %v272 = vunpack.c.l.b16 %v212
        %v273 = vunpack.c.l.b16 %v213
        %v274 = vunpack.c.l.b16 %v214
        %v275 = vunpack.c.l.b16 %v215
        %v276 = vunpack.c.l.b16 %v216
        %v277 = vunpack.c.l.b16 %v217
        %v278 = vunpack.c.l.b16 %v218
        %v279 = vunpack.c.l.b16 %v219
        %v280 = vunpack.c.l.b16 %v220
        %v281 = vunpack.c.l.b16 %v221
        %v282 = vunpack.c.l.b16 %v222
        %v283 = vunpack.c.l.b16 %v223
        %v284 = vunpack.c.l.b16 %v224
        %v285 = vunpack.c.l.b16 %v225
        %v286 = vunpack.c.l.b16 %v226
        %v287 = vunpack.c.l.b16 %v227
        %v288 = vunpack.c.l.b16 %v228
        %v289 = vunpack.c.l.b16 %v229
        %v290 = vunpack.c.l.b16 %v230
        %v291 = vunpack.c.l.b16 %v231
        %v292 = vunpack.c.l.b16 %v232
        %v293 = vunpack.c.l.b16 %v233
        %v294 = vunpack.c.l.b16 %v234
        %v295 = vpack.c.b16 %v266, %v265
        %v296 = vpack.c.b16 %v268, %v267
        %v297 = vpack.c.b16 %v270, %v269
        %v298 = vpack.c.b16 %v272, %v271
        %v299 = vpack.c.b16 %v274, %v273
        %v300 = vpack.c.b16 %v276, %v275
        %v301 = vpack.c.b16 %v278, %v277
        %v302 = vpack.c.b16 %v280, %v279
        %v303 = vpack.c.b16 %v282, %v281
        %v304 = vpack.c.b16 %v284, %v283
        %v305 = vpack.c.b16 %v286, %v285
        %v306 = vpack.c.b16 %v288, %v287
        %v307 = vpack.c.b16 %v290, %v289
        %v308 = vpack.c.b16 %v292, %v291
        %v309 = vpack.c.b16 %v294, %v293
        %v311 = vshrl.u32 %v295, 16
        %v313 = vrot.slane %v311, 7
        %v314 = vshll.u32 %v295, 16
        %v316 = vor.u32 %v313, %v314
        %v318 = vshrl.u32 %v296, 16
        %v320 = vrot.slane %v318, 7
        %v321 = vshll.u32 %v296, 16
        %v323 = vor.u32 %v320, %v321
        %v325 = vshrl.u32 %v297, 16
        %v327 = vrot.slane %v325, 7
        %v328 = vshll.u32 %v297, 16
        %v330 = vor.u32 %v327, %v328
        %v332 = vshrl.u32 %v298, 16
        %v334 = vrot.slane %v332, 7
        %v335 = vshll.u32 %v298, 16
        %v337 = vor.u32 %v334, %v335
        %v339 = vshrl.u32 %v299, 16
        %v341 = vrot.slane %v339, 7
        %v342 = vshll.u32 %v299, 16
        %v344 = vor.u32 %v341, %v342
        %v346 = vshrl.u32 %v300, 16
        %v348 = vrot.slane %v346, 7
        %v349 = vshll.u32 %v300, 16
        %v351 = vor.u32 %v348, %v349
        %v353 = vshrl.u32 %v301, 16
        %v355 = vrot.slane %v353, 7
        %v356 = vshll.u32 %v301, 16
        %v358 = vor.u32 %v355, %v356
        %v360 = vshrl.u32 %v302, 16
        %v362 = vrot.slane %v360, 7
        %v363 = vshll.u32 %v302, 16
        %v365 = vor.u32 %v362, %v363
        %v367 = vshrl.u32 %v303, 16
        %v369 = vrot.slane %v367, 7
        %v370 = vshll.u32 %v303, 16
        %v372 = vor.u32 %v369, %v370
        %v374 = vshrl.u32 %v304, 16
        %v376 = vrot.slane %v374, 7
        %v377 = vshll.u32 %v304, 16
        %v379 = vor.u32 %v376, %v377
        %v381 = vshrl.u32 %v305, 16
        %v383 = vrot.slane %v381, 7
        %v384 = vshll.u32 %v305, 16
        %v386 = vor.u32 %v383, %v384
        %v388 = vshrl.u32 %v306, 16
        %v390 = vrot.slane %v388, 7
        %v391 = vshll.u32 %v306, 16
        %v393 = vor.u32 %v390, %v391
        %v395 = vshrl.u32 %v307, 16
        %v397 = vrot.slane %v395, 7
        %v398 = vshll.u32 %v307, 16
        %v400 = vor.u32 %v397, %v398
        %v402 = vshrl.u32 %v308, 16
        %v404 = vrot.slane %v402, 7
        %v405 = vshll.u32 %v308, 16
        %v407 = vor.u32 %v404, %v405
        %v409 = vshrl.u32 %v309, 16
        %v411 = vrot.slane %v409, 7
        %v412 = vshll.u32 %v309, 16
        %v414 = vor.u32 %v411, %v412
        %s430 = scalar_lea.vmem [#allocation2], 72
        %vm431 = vcmask 1047552
        %vm432 = vsmask.f32 7938
        %vm433 = vmand %vm431, %vm432
        %v434 = vld [vmem:[%s430] sm:$0xff]
        %v435 = vsel %vm433, %v316, %v434
        %436 = vst [vmem:[%s430] sm:$0xff] %v435
        %v437 = vld [vmem:[%s430 + $0x48] sm:$0xff]
        %v438 = vsel %vm433, %v323, %v437
        %439 = vst [vmem:[%s430 + $0x48] sm:$0xff] %v438
        %v440 = vld [vmem:[%s430 + $0x90] sm:$0xff]
        %v441 = vsel %vm433, %v330, %v440
        %442 = vst [vmem:[%s430 + $0x90] sm:$0xff] %v441
        %v443 = vld [vmem:[%s430 + $0xd8] sm:$0xff]
        %v444 = vsel %vm433, %v337, %v443
        %445 = vst [vmem:[%s430 + $0xd8] sm:$0xff] %v444
        %v446 = vld [vmem:[%s430 + $0x120] sm:$0xff]
        %v447 = vsel %vm433, %v344, %v446
        %448 = vst [vmem:[%s430 + $0x120] sm:$0xff] %v447
        %v449 = vld [vmem:[%s430 + $0x168] sm:$0xff]
        %v450 = vsel %vm433, %v351, %v449
        %451 = vst [vmem:[%s430 + $0x168] sm:$0xff] %v450
        %v452 = vld [vmem:[%s430 + $0x1b0] sm:$0xff]
        %v453 = vsel %vm433, %v358, %v452
        %454 = vst [vmem:[%s430 + $0x1b0] sm:$0xff] %v453
        %v455 = vld [vmem:[%s430 + $0x1f8] sm:$0xff]
        %v456 = vsel %vm433, %v365, %v455
        %457 = vst [vmem:[%s430 + $0x1f8] sm:$0xff] %v456
        %v458 = vld [vmem:[%s430 + $0x240] sm:$0xff]
        %v459 = vsel %vm433, %v372, %v458
        %460 = vst [vmem:[%s430 + $0x240] sm:$0xff] %v459
        %v461 = vld [vmem:[%s430 + $0x288] sm:$0xff]
        %v462 = vsel %vm433, %v379, %v461
        %463 = vst [vmem:[%s430 + $0x288] sm:$0xff] %v462
        %v464 = vld [vmem:[%s430 + $0x2d0] sm:$0xff]
        %v465 = vsel %vm433, %v386, %v464
        %466 = vst [vmem:[%s430 + $0x2d0] sm:$0xff] %v465
        %v467 = vld [vmem:[%s430 + $0x318] sm:$0xff]
        %v468 = vsel %vm433, %v393, %v467
        %469 = vst [vmem:[%s430 + $0x318] sm:$0xff] %v468
        %v470 = vld [vmem:[%s430 + $0x360] sm:$0xff]
        %v471 = vsel %vm433, %v400, %v470
        %472 = vst [vmem:[%s430 + $0x360] sm:$0xff] %v471
        %v473 = vld [vmem:[%s430 + $0x3a8] sm:$0xff]
        %v474 = vsel %vm433, %v407, %v473
        %475 = vst [vmem:[%s430 + $0x3a8] sm:$0xff] %v474
        %v476 = vld [vmem:[%s430 + $0x3f0] sm:$0xff]
        %v477 = vsel %vm433, %v414, %v476
        %478 = vst [vmem:[%s430 + $0x3f0] sm:$0xff] %v477
        %479 = vst [vmem:[#allocation2] sm:$0xff] 0
        %vm480 = vcmask 1040384
        %vm481 = vsmask.f32 256
        %vm482 = vmand %vm480, %vm481
        %v483 = vld [vmem:[#allocation2] sm:$0x1]
        %v484 = vsel %vm482, 0, %v483
        %485 = vst [vmem:[#allocation2] sm:$0x1] %v484
        %v486 = vld [vmem:[#allocation2 + $0x48] sm:$0x1]
        %v487 = vsel %vm482, 0, %v486
        %488 = vst [vmem:[#allocation2 + $0x48] sm:$0x1] %v487
        %v489 = vld [vmem:[#allocation2 + $0x90] sm:$0x1]
        %v490 = vsel %vm482, 0, %v489
        %491 = vst [vmem:[#allocation2 + $0x90] sm:$0x1] %v490
        %v492 = vld [vmem:[#allocation2 + $0xd8] sm:$0x1]
        %v493 = vsel %vm482, 0, %v492
        %494 = vst [vmem:[#allocation2 + $0xd8] sm:$0x1] %v493
        %v495 = vld [vmem:[#allocation2 + $0x120] sm:$0x1]
        %v496 = vsel %vm482, 0, %v495
        %497 = vst [vmem:[#allocation2 + $0x120] sm:$0x1] %v496
        %v498 = vld [vmem:[#allocation2 + $0x168] sm:$0x1]
        %v499 = vsel %vm482, 0, %v498
        %500 = vst [vmem:[#allocation2 + $0x168] sm:$0x1] %v499
        %v501 = vld [vmem:[#allocation2 + $0x1b0] sm:$0x1]
        %v502 = vsel %vm482, 0, %v501
        %503 = vst [vmem:[#allocation2 + $0x1b0] sm:$0x1] %v502
        %v504 = vld [vmem:[#allocation2 + $0x1f8] sm:$0x1]
        %v505 = vsel %vm482, 0, %v504
        %506 = vst [vmem:[#allocation2 + $0x1f8] sm:$0x1] %v505
        %v507 = vld [vmem:[#allocation2 + $0x240] sm:$0x1]
        %v508 = vsel %vm482, 0, %v507
        %509 = vst [vmem:[#allocation2 + $0x240] sm:$0x1] %v508
        %v510 = vld [vmem:[#allocation2 + $0x288] sm:$0x1]
        %v511 = vsel %vm482, 0, %v510
        %512 = vst [vmem:[#allocation2 + $0x288] sm:$0x1] %v511
        %v513 = vld [vmem:[#allocation2 + $0x2d0] sm:$0x1]
        %v514 = vsel %vm482, 0, %v513
        %515 = vst [vmem:[#allocation2 + $0x2d0] sm:$0x1] %v514
        %v516 = vld [vmem:[#allocation2 + $0x318] sm:$0x1]
        %v517 = vsel %vm482, 0, %v516
        %518 = vst [vmem:[#allocation2 + $0x318] sm:$0x1] %v517
        %v519 = vld [vmem:[#allocation2 + $0x360] sm:$0x1]
        %v520 = vsel %vm482, 0, %v519
        %521 = vst [vmem:[#allocation2 + $0x360] sm:$0x1] %v520
        %v522 = vld [vmem:[#allocation2 + $0x3a8] sm:$0x1]
        %v523 = vsel %vm482, 0, %v522
        %524 = vst [vmem:[#allocation2 + $0x3a8] sm:$0x1] %v523
        %v525 = vld [vmem:[#allocation2 + $0x3f0] sm:$0x1]
        %v526 = vsel %vm482, 0, %v525
        %527 = vst [vmem:[#allocation2 + $0x3f0] sm:$0x1] %v526
        %v528 = vld [vmem:[#allocation2 + $0x438] sm:$0x1]
        %v529 = vsel %vm482, 0, %v528
        %530 = vst [vmem:[#allocation2 + $0x438] sm:$0x1] %v529
        %v531 = vld [vmem:[%s177] sm:$0xf]
        %v532 = vld [vmem:[%s177 + $0x4] sm:$0xf]
        %v533 = vld [vmem:[%s177 + $0x8] sm:$0xf]
        %v534 = vld [vmem:[%s177 + $0xc] sm:$0xf]
        %v535 = vld [vmem:[%s177 + $0x10] sm:$0xf]
        %v536 = vld [vmem:[%s177 + $0x14] sm:$0xf]
        %v537 = vld [vmem:[%s177 + $0x18] sm:$0xf]
        %v538 = vld [vmem:[%s177 + $0x1c] sm:$0xf]
        %v539 = vld [vmem:[%s177 + $0x20] sm:$0xf]
        %v540 = vld [vmem:[%s177 + $0x24] sm:$0xf]
        %v541 = vld [vmem:[%s177 + $0x28] sm:$0xf]
        %v542 = vld [vmem:[%s177 + $0x2c] sm:$0xf]
        %v543 = vld [vmem:[%s177 + $0x30] sm:$0xf]
        %v544 = vld [vmem:[%s177 + $0x34] sm:$0xf]
        %v545 = vld [vmem:[%s177 + $0x38] sm:$0xf]
        %v546 = vld [vmem:[%s177 + $0x3c] sm:$0xf]
        %v547 = vld [vmem:[%s177 + $0x40] sm:$0xf]
        %v548 = vld [vmem:[%s177 + $0x44] sm:$0xf]
        %v549 = vld [vmem:[%s177 + $0x48] sm:$0xf]
        %v550 = vld [vmem:[%s177 + $0x4c] sm:$0xf]
        %v551 = vld [vmem:[%s177 + $0x50] sm:$0xf]
        %v552 = vld [vmem:[%s177 + $0x54] sm:$0xf]
        %v553 = vld [vmem:[%s177 + $0x58] sm:$0xf]
        %v554 = vld [vmem:[%s177 + $0x5c] sm:$0xf]
        %v555 = vld [vmem:[%s177 + $0x60] sm:$0xf]
        %v556 = vld [vmem:[%s177 + $0x64] sm:$0xf]
        %v557 = vld [vmem:[%s177 + $0x68] sm:$0xf]
        %v558 = vld [vmem:[%s177 + $0x6c] sm:$0xf]
        %v559 = vld [vmem:[%s177 + $0x70] sm:$0xf]
        %v560 = vld [vmem:[%s177 + $0x74] sm:$0xf]
        %v591 = vunpack.c.l.b16 %v531
        %v592 = vunpack.c.l.b16 %v532
        %v593 = vunpack.c.l.b16 %v533
        %v594 = vunpack.c.l.b16 %v534
        %v595 = vunpack.c.l.b16 %v535
        %v596 = vunpack.c.l.b16 %v536
        %v597 = vunpack.c.l.b16 %v537
        %v598 = vunpack.c.l.b16 %v538
        %v599 = vunpack.c.l.b16 %v539
        %v600 = vunpack.c.l.b16 %v540
        %v601 = vunpack.c.l.b16 %v541
        %v602 = vunpack.c.l.b16 %v542
        %v603 = vunpack.c.l.b16 %v543
        %v604 = vunpack.c.l.b16 %v544
        %v605 = vunpack.c.l.b16 %v545
        %v606 = vunpack.c.l.b16 %v546
        %v607 = vunpack.c.l.b16 %v547
        %v608 = vunpack.c.l.b16 %v548
        %v609 = vunpack.c.l.b16 %v549
        %v610 = vunpack.c.l.b16 %v550
        %v611 = vunpack.c.l.b16 %v551
        %v612 = vunpack.c.l.b16 %v552
        %v613 = vunpack.c.l.b16 %v553
        %v614 = vunpack.c.l.b16 %v554
        %v615 = vunpack.c.l.b16 %v555
        %v616 = vunpack.c.l.b16 %v556
        %v617 = vunpack.c.l.b16 %v557
        %v618 = vunpack.c.l.b16 %v558
        %v619 = vunpack.c.l.b16 %v559
        %v620 = vunpack.c.l.b16 %v560
        %v621 = vpack.c.b16 %v592, %v591
        %v622 = vpack.c.b16 %v594, %v593
        %v623 = vpack.c.b16 %v596, %v595
        %v624 = vpack.c.b16 %v598, %v597
        %v625 = vpack.c.b16 %v600, %v599
        %v626 = vpack.c.b16 %v602, %v601
        %v627 = vpack.c.b16 %v604, %v603
        %v628 = vpack.c.b16 %v606, %v605
        %v629 = vpack.c.b16 %v608, %v607
        %v630 = vpack.c.b16 %v610, %v609
        %v631 = vpack.c.b16 %v612, %v611
        %v632 = vpack.c.b16 %v614, %v613
        %v633 = vpack.c.b16 %v616, %v615
        %v634 = vpack.c.b16 %v618, %v617
        %v635 = vpack.c.b16 %v620, %v619
        %651 = vst [vmem:[%s430 + $0x8] sm:$0xff] %v621
        %652 = vst [vmem:[%s430 + $0x50] sm:$0xff] %v622
        %653 = vst [vmem:[%s430 + $0x98] sm:$0xff] %v623
        %654 = vst [vmem:[%s430 + $0xe0] sm:$0xff] %v624
        %655 = vst [vmem:[%s430 + $0x128] sm:$0xff] %v625
        %656 = vst [vmem:[%s430 + $0x170] sm:$0xff] %v626
        %657 = vst [vmem:[%s430 + $0x1b8] sm:$0xff] %v627
        %658 = vst [vmem:[%s430 + $0x200] sm:$0xff] %v628
        %659 = vst [vmem:[%s430 + $0x248] sm:$0xff] %v629
        %660 = vst [vmem:[%s430 + $0x290] sm:$0xff] %v630
        %661 = vst [vmem:[%s430 + $0x2d8] sm:$0xff] %v631
        %662 = vst [vmem:[%s430 + $0x320] sm:$0xff] %v632
        %663 = vst [vmem:[%s430 + $0x368] sm:$0xff] %v633
        %664 = vst [vmem:[%s430 + $0x3b0] sm:$0xff] %v634
        %665 = vst [vmem:[%s430 + $0x3f8] sm:$0xff] %v635
        %666 = vst [vmem:[#allocation2 + $0x8] sm:$0xff] 0
        %v667 = vld [vmem:[%s177] sm:$0xf]
        %v668 = vld [vmem:[%s177 + $0x4] sm:$0xf]
        %v669 = vld [vmem:[%s177 + $0x8] sm:$0xf]
        %v670 = vld [vmem:[%s177 + $0xc] sm:$0xf]
        %v671 = vld [vmem:[%s177 + $0x10] sm:$0xf]
        %v672 = vld [vmem:[%s177 + $0x14] sm:$0xf]
        %v673 = vld [vmem:[%s177 + $0x18] sm:$0xf]
        %v674 = vld [vmem:[%s177 + $0x1c] sm:$0xf]
        %v675 = vld [vmem:[%s177 + $0x20] sm:$0xf]
        %v676 = vld [vmem:[%s177 + $0x24] sm:$0xf]
        %v677 = vld [vmem:[%s177 + $0x28] sm:$0xf]
        %v678 = vld [vmem:[%s177 + $0x2c] sm:$0xf]
        %v679 = vld [vmem:[%s177 + $0x30] sm:$0xf]
        %v680 = vld [vmem:[%s177 + $0x34] sm:$0xf]
        %v681 = vld [vmem:[%s177 + $0x38] sm:$0xf]
        %v682 = vld [vmem:[%s177 + $0x3c] sm:$0xf]
        %v683 = vld [vmem:[%s177 + $0x40] sm:$0xf]
        %v684 = vld [vmem:[%s177 + $0x44] sm:$0xf]
        %v685 = vld [vmem:[%s177 + $0x48] sm:$0xf]
        %v686 = vld [vmem:[%s177 + $0x4c] sm:$0xf]
        %v687 = vld [vmem:[%s177 + $0x50] sm:$0xf]
        %v688 = vld [vmem:[%s177 + $0x54] sm:$0xf]
        %v689 = vld [vmem:[%s177 + $0x58] sm:$0xf]
        %v690 = vld [vmem:[%s177 + $0x5c] sm:$0xf]
        %v691 = vld [vmem:[%s177 + $0x60] sm:$0xf]
        %v692 = vld [vmem:[%s177 + $0x64] sm:$0xf]
        %v693 = vld [vmem:[%s177 + $0x68] sm:$0xf]
        %v694 = vld [vmem:[%s177 + $0x6c] sm:$0xf]
        %v695 = vld [vmem:[%s177 + $0x70] sm:$0xf]
        %v696 = vld [vmem:[%s177 + $0x74] sm:$0xf]
        %v727 = vunpack.c.l.b16 %v667
        %v728 = vunpack.c.l.b16 %v668
        %v729 = vunpack.c.l.b16 %v669
        %v730 = vunpack.c.l.b16 %v670
        %v731 = vunpack.c.l.b16 %v671
        %v732 = vunpack.c.l.b16 %v672
        %v733 = vunpack.c.l.b16 %v673
        %v734 = vunpack.c.l.b16 %v674
        %v735 = vunpack.c.l.b16 %v675
        %v736 = vunpack.c.l.b16 %v676
        %v737 = vunpack.c.l.b16 %v677
        %v738 = vunpack.c.l.b16 %v678
        %v739 = vunpack.c.l.b16 %v679
        %v740 = vunpack.c.l.b16 %v680
        %v741 = vunpack.c.l.b16 %v681
        %v742 = vunpack.c.l.b16 %v682
        %v743 = vunpack.c.l.b16 %v683
        %v744 = vunpack.c.l.b16 %v684
        %v745 = vunpack.c.l.b16 %v685
        %v746 = vunpack.c.l.b16 %v686
        %v747 = vunpack.c.l.b16 %v687
        %v748 = vunpack.c.l.b16 %v688
        %v749 = vunpack.c.l.b16 %v689
        %v750 = vunpack.c.l.b16 %v690
        %v751 = vunpack.c.l.b16 %v691
        %v752 = vunpack.c.l.b16 %v692
        %v753 = vunpack.c.l.b16 %v693
        %v754 = vunpack.c.l.b16 %v694
        %v755 = vunpack.c.l.b16 %v695
        %v756 = vunpack.c.l.b16 %v696
        %v757 = vpack.c.b16 %v728, %v727
        %v758 = vpack.c.b16 %v730, %v729
        %v759 = vpack.c.b16 %v732, %v731
        %v760 = vpack.c.b16 %v734, %v733
        %v761 = vpack.c.b16 %v736, %v735
        %v762 = vpack.c.b16 %v738, %v737
        %v763 = vpack.c.b16 %v740, %v739
        %v764 = vpack.c.b16 %v742, %v741
        %v765 = vpack.c.b16 %v744, %v743
        %v766 = vpack.c.b16 %v746, %v745
        %v767 = vpack.c.b16 %v748, %v747
        %v768 = vpack.c.b16 %v750, %v749
        %v769 = vpack.c.b16 %v752, %v751
        %v770 = vpack.c.b16 %v754, %v753
        %v771 = vpack.c.b16 %v756, %v755
        %v773 = vshrl.u32 %v757, 16
        %v775 = vshll.u32 %v757, 16
        %v777 = vrot.slane %v775, 1
        %v778 = vor.u32 %v773, %v777
        %v780 = vshrl.u32 %v758, 16
        %v782 = vshll.u32 %v758, 16
        %v784 = vrot.slane %v782, 1
        %v785 = vor.u32 %v780, %v784
        %v787 = vshrl.u32 %v759, 16
        %v789 = vshll.u32 %v759, 16
        %v791 = vrot.slane %v789, 1
        %v792 = vor.u32 %v787, %v791
        %v794 = vshrl.u32 %v760, 16
        %v796 = vshll.u32 %v760, 16
        %v798 = vrot.slane %v796, 1
        %v799 = vor.u32 %v794, %v798
        %v801 = vshrl.u32 %v761, 16
        %v803 = vshll.u32 %v761, 16
        %v805 = vrot.slane %v803, 1
        %v806 = vor.u32 %v801, %v805
        %v808 = vshrl.u32 %v762, 16
        %v810 = vshll.u32 %v762, 16
        %v812 = vrot.slane %v810, 1
        %v813 = vor.u32 %v808, %v812
        %v815 = vshrl.u32 %v763, 16
        %v817 = vshll.u32 %v763, 16
        %v819 = vrot.slane %v817, 1
        %v820 = vor.u32 %v815, %v819
        %v822 = vshrl.u32 %v764, 16
        %v824 = vshll.u32 %v764, 16
        %v826 = vrot.slane %v824, 1
        %v827 = vor.u32 %v822, %v826
        %v829 = vshrl.u32 %v765, 16
        %v831 = vshll.u32 %v765, 16
        %v833 = vrot.slane %v831, 1
        %v834 = vor.u32 %v829, %v833
        %v836 = vshrl.u32 %v766, 16
        %v838 = vshll.u32 %v766, 16
        %v840 = vrot.slane %v838, 1
        %v841 = vor.u32 %v836, %v840
        %v843 = vshrl.u32 %v767, 16
        %v845 = vshll.u32 %v767, 16
        %v847 = vrot.slane %v845, 1
        %v848 = vor.u32 %v843, %v847
        %v850 = vshrl.u32 %v768, 16
        %v852 = vshll.u32 %v768, 16
        %v854 = vrot.slane %v852, 1
        %v855 = vor.u32 %v850, %v854
        %v857 = vshrl.u32 %v769, 16
        %v859 = vshll.u32 %v769, 16
        %v861 = vrot.slane %v859, 1
        %v862 = vor.u32 %v857, %v861
        %v864 = vshrl.u32 %v770, 16
        %v866 = vshll.u32 %v770, 16
        %v868 = vrot.slane %v866, 1
        %v869 = vor.u32 %v864, %v868
        %v871 = vshrl.u32 %v771, 16
        %v873 = vshll.u32 %v771, 16
        %v875 = vrot.slane %v873, 1
        %v876 = vor.u32 %v871, %v875
        %vm892 = vsmask.f32 7424
        %vm893 = vmand %vm431, %vm892
        %v894 = vld [vmem:[%s430 + $0x10] sm:$0xff]
        %v895 = vsel %vm893, %v778, %v894
        %896 = vst [vmem:[%s430 + $0x10] sm:$0xff] %v895
        %v897 = vld [vmem:[%s430 + $0x58] sm:$0xff]
        %v898 = vsel %vm893, %v785, %v897
        %899 = vst [vmem:[%s430 + $0x58] sm:$0xff] %v898
        %v900 = vld [vmem:[%s430 + $0xa0] sm:$0xff]
        %v901 = vsel %vm893, %v792, %v900
        %902 = vst [vmem:[%s430 + $0xa0] sm:$0xff] %v901
        %v903 = vld [vmem:[%s430 + $0xe8] sm:$0xff]
        %v904 = vsel %vm893, %v799, %v903
        %905 = vst [vmem:[%s430 + $0xe8] sm:$0xff] %v904
        %v906 = vld [vmem:[%s430 + $0x130] sm:$0xff]
        %v907 = vsel %vm893, %v806, %v906
        %908 = vst [vmem:[%s430 + $0x130] sm:$0xff] %v907
        %v909 = vld [vmem:[%s430 + $0x178] sm:$0xff]
        %v910 = vsel %vm893, %v813, %v909
        %911 = vst [vmem:[%s430 + $0x178] sm:$0xff] %v910
        %v912 = vld [vmem:[%s430 + $0x1c0] sm:$0xff]
        %v913 = vsel %vm893, %v820, %v912
        %914 = vst [vmem:[%s430 + $0x1c0] sm:$0xff] %v913
        %v915 = vld [vmem:[%s430 + $0x208] sm:$0xff]
        %v916 = vsel %vm893, %v827, %v915
        %917 = vst [vmem:[%s430 + $0x208] sm:$0xff] %v916
        %v918 = vld [vmem:[%s430 + $0x250] sm:$0xff]
        %v919 = vsel %vm893, %v834, %v918
        %920 = vst [vmem:[%s430 + $0x250] sm:$0xff] %v919
        %v921 = vld [vmem:[%s430 + $0x298] sm:$0xff]
        %v922 = vsel %vm893, %v841, %v921
        %923 = vst [vmem:[%s430 + $0x298] sm:$0xff] %v922
        %v924 = vld [vmem:[%s430 + $0x2e0] sm:$0xff]
        %v925 = vsel %vm893, %v848, %v924
        %926 = vst [vmem:[%s430 + $0x2e0] sm:$0xff] %v925
        %v927 = vld [vmem:[%s430 + $0x328] sm:$0xff]
        %v928 = vsel %vm893, %v855, %v927
        %929 = vst [vmem:[%s430 + $0x328] sm:$0xff] %v928
        %v930 = vld [vmem:[%s430 + $0x370] sm:$0xff]
        %v931 = vsel %vm893, %v862, %v930
        %932 = vst [vmem:[%s430 + $0x370] sm:$0xff] %v931
        %v933 = vld [vmem:[%s430 + $0x3b8] sm:$0xff]
        %v934 = vsel %vm893, %v869, %v933
        %935 = vst [vmem:[%s430 + $0x3b8] sm:$0xff] %v934
        %v936 = vld [vmem:[%s430 + $0x400] sm:$0xff]
        %v937 = vsel %vm893, %v876, %v936
        %938 = vst [vmem:[%s430 + $0x400] sm:$0xff] %v937
        %939 = vst [vmem:[#allocation2 + $0x10] sm:$0xff] 0
        %vm940 = vcmask 1047559
        %vm941 = vsmask.f32 7966
        %vm942 = vmand %vm940, %vm941
        %v943 = vld [vmem:[#allocation2 + $0x10] sm:$0x80]
        %v944 = vsel %vm942, 0, %v943
        %945 = vst [vmem:[#allocation2 + $0x10] sm:$0x80] %v944
        %v946 = vld [vmem:[#allocation2 + $0x58] sm:$0x80]
        %v947 = vsel %vm942, 0, %v946
        %948 = vst [vmem:[#allocation2 + $0x58] sm:$0x80] %v947
        %v949 = vld [vmem:[#allocation2 + $0xa0] sm:$0x80]
        %v950 = vsel %vm942, 0, %v949
        %951 = vst [vmem:[#allocation2 + $0xa0] sm:$0x80] %v950
        %v952 = vld [vmem:[#allocation2 + $0xe8] sm:$0x80]
        %v953 = vsel %vm942, 0, %v952
        %954 = vst [vmem:[#allocation2 + $0xe8] sm:$0x80] %v953
        %v955 = vld [vmem:[#allocation2 + $0x130] sm:$0x80]
        %v956 = vsel %vm942, 0, %v955
        %957 = vst [vmem:[#allocation2 + $0x130] sm:$0x80] %v956
        %v958 = vld [vmem:[#allocation2 + $0x178] sm:$0x80]
        %v959 = vsel %vm942, 0, %v958
        %960 = vst [vmem:[#allocation2 + $0x178] sm:$0x80] %v959
        %v961 = vld [vmem:[#allocation2 + $0x1c0] sm:$0x80]
        %v962 = vsel %vm942, 0, %v961
        %963 = vst [vmem:[#allocation2 + $0x1c0] sm:$0x80] %v962
        %v964 = vld [vmem:[#allocation2 + $0x208] sm:$0x80]
        %v965 = vsel %vm942, 0, %v964
        %966 = vst [vmem:[#allocation2 + $0x208] sm:$0x80] %v965
        %v967 = vld [vmem:[#allocation2 + $0x250] sm:$0x80]
        %v968 = vsel %vm942, 0, %v967
        %969 = vst [vmem:[#allocation2 + $0x250] sm:$0x80] %v968
        %v970 = vld [vmem:[#allocation2 + $0x298] sm:$0x80]
        %v971 = vsel %vm942, 0, %v970
        %972 = vst [vmem:[#allocation2 + $0x298] sm:$0x80] %v971
        %v973 = vld [vmem:[#allocation2 + $0x2e0] sm:$0x80]
        %v974 = vsel %vm942, 0, %v973
        %975 = vst [vmem:[#allocation2 + $0x2e0] sm:$0x80] %v974
        %v976 = vld [vmem:[#allocation2 + $0x328] sm:$0x80]
        %v977 = vsel %vm942, 0, %v976
        %978 = vst [vmem:[#allocation2 + $0x328] sm:$0x80] %v977
        %v979 = vld [vmem:[#allocation2 + $0x370] sm:$0x80]
        %v980 = vsel %vm942, 0, %v979
        %981 = vst [vmem:[#allocation2 + $0x370] sm:$0x80] %v980
        %v982 = vld [vmem:[#allocation2 + $0x3b8] sm:$0x80]
        %v983 = vsel %vm942, 0, %v982
        %984 = vst [vmem:[#allocation2 + $0x3b8] sm:$0x80] %v983
        %v985 = vld [vmem:[#allocation2 + $0x400] sm:$0x80]
        %v986 = vsel %vm942, 0, %v985
        %987 = vst [vmem:[#allocation2 + $0x400] sm:$0x80] %v986
        %v988 = vld [vmem:[#allocation2 + $0x448] sm:$0x80]
        %v989 = vsel %vm942, 0, %v988
        %990 = vst [vmem:[#allocation2 + $0x448] sm:$0x80] %v989
        %v991 = vld [vmem:[%s177] sm:$0xf]
        %v992 = vld [vmem:[%s177 + $0x4] sm:$0xf]
        %v993 = vld [vmem:[%s177 + $0x8] sm:$0xf]
        %v994 = vld [vmem:[%s177 + $0xc] sm:$0xf]
        %v995 = vld [vmem:[%s177 + $0x10] sm:$0xf]
        %v996 = vld [vmem:[%s177 + $0x14] sm:$0xf]
        %v997 = vld [vmem:[%s177 + $0x18] sm:$0xf]
        %v998 = vld [vmem:[%s177 + $0x1c] sm:$0xf]
        %v999 = vld [vmem:[%s177 + $0x20] sm:$0xf]
        %v1000 = vld [vmem:[%s177 + $0x24] sm:$0xf]
        %v1001 = vld [vmem:[%s177 + $0x28] sm:$0xf]
        %v1002 = vld [vmem:[%s177 + $0x2c] sm:$0xf]
        %v1003 = vld [vmem:[%s177 + $0x30] sm:$0xf]
        %v1004 = vld [vmem:[%s177 + $0x34] sm:$0xf]
        %v1005 = vld [vmem:[%s177 + $0x38] sm:$0xf]
        %v1006 = vld [vmem:[%s177 + $0x3c] sm:$0xf]
        %v1007 = vld [vmem:[%s177 + $0x40] sm:$0xf]
        %v1008 = vld [vmem:[%s177 + $0x44] sm:$0xf]
        %v1009 = vld [vmem:[%s177 + $0x48] sm:$0xf]
        %v1010 = vld [vmem:[%s177 + $0x4c] sm:$0xf]
        %v1011 = vld [vmem:[%s177 + $0x50] sm:$0xf]
        %v1012 = vld [vmem:[%s177 + $0x54] sm:$0xf]
        %v1013 = vld [vmem:[%s177 + $0x58] sm:$0xf]
        %v1014 = vld [vmem:[%s177 + $0x5c] sm:$0xf]
        %v1015 = vld [vmem:[%s177 + $0x60] sm:$0xf]
        %v1016 = vld [vmem:[%s177 + $0x64] sm:$0xf]
        %v1017 = vld [vmem:[%s177 + $0x68] sm:$0xf]
        %v1018 = vld [vmem:[%s177 + $0x6c] sm:$0xf]
        %v1019 = vld [vmem:[%s177 + $0x70] sm:$0xf]
        %v1020 = vld [vmem:[%s177 + $0x74] sm:$0xf]
        %v1021 = vld [vmem:[%s177 + $0x78] sm:$0xf]
        %v1022 = vld [vmem:[%s177 + $0x7c] sm:$0xf]
        %v1055 = vunpack.c.l.b16 %v991
        %v1056 = vunpack.c.l.b16 %v992
        %v1057 = vunpack.c.l.b16 %v993
        %v1058 = vunpack.c.l.b16 %v994
        %v1059 = vunpack.c.l.b16 %v995
        %v1060 = vunpack.c.l.b16 %v996
        %v1061 = vunpack.c.l.b16 %v997
        %v1062 = vunpack.c.l.b16 %v998
        %v1063 = vunpack.c.l.b16 %v999
        %v1064 = vunpack.c.l.b16 %v1000
        %v1065 = vunpack.c.l.b16 %v1001
        %v1066 = vunpack.c.l.b16 %v1002
        %v1067 = vunpack.c.l.b16 %v1003
        %v1068 = vunpack.c.l.b16 %v1004
        %v1069 = vunpack.c.l.b16 %v1005
        %v1070 = vunpack.c.l.b16 %v1006
        %v1071 = vunpack.c.l.b16 %v1007
        %v1072 = vunpack.c.l.b16 %v1008
        %v1073 = vunpack.c.l.b16 %v1009
        %v1074 = vunpack.c.l.b16 %v1010
        %v1075 = vunpack.c.l.b16 %v1011
        %v1076 = vunpack.c.l.b16 %v1012
        %v1077 = vunpack.c.l.b16 %v1013
        %v1078 = vunpack.c.l.b16 %v1014
        %v1079 = vunpack.c.l.b16 %v1015
        %v1080 = vunpack.c.l.b16 %v1016
        %v1081 = vunpack.c.l.b16 %v1017
        %v1082 = vunpack.c.l.b16 %v1018
        %v1083 = vunpack.c.l.b16 %v1019
        %v1084 = vunpack.c.l.b16 %v1020
        %v1085 = vunpack.c.l.b16 %v1021
        %v1086 = vunpack.c.l.b16 %v1022
        %v1087 = vpack.c.b16 %v1056, %v1055
        %v1088 = vpack.c.b16 %v1058, %v1057
        %v1089 = vpack.c.b16 %v1060, %v1059
        %v1090 = vpack.c.b16 %v1062, %v1061
        %v1091 = vpack.c.b16 %v1064, %v1063
        %v1092 = vpack.c.b16 %v1066, %v1065
        %v1093 = vpack.c.b16 %v1068, %v1067
        %v1094 = vpack.c.b16 %v1070, %v1069
        %v1095 = vpack.c.b16 %v1072, %v1071
        %v1096 = vpack.c.b16 %v1074, %v1073
        %v1097 = vpack.c.b16 %v1076, %v1075
        %v1098 = vpack.c.b16 %v1078, %v1077
        %v1099 = vpack.c.b16 %v1080, %v1079
        %v1100 = vpack.c.b16 %v1082, %v1081
        %v1101 = vpack.c.b16 %v1084, %v1083
        %v1102 = vpack.c.b16 %v1086, %v1085
        %v1104 = vshrl.u32 %v1087, 16
        %v1106 = vrot.slane %v1104, 7
        %v1107 = vshll.u32 %v1087, 16
        %v1109 = vor.u32 %v1106, %v1107
        %v1111 = vshrl.u32 %v1088, 16
        %v1113 = vrot.slane %v1111, 7
        %v1114 = vshll.u32 %v1088, 16
        %v1116 = vor.u32 %v1113, %v1114
        %v1118 = vshrl.u32 %v1089, 16
        %v1120 = vrot.slane %v1118, 7
        %v1121 = vshll.u32 %v1089, 16
        %v1123 = vor.u32 %v1120, %v1121
        %v1125 = vshrl.u32 %v1090, 16
        %v1127 = vrot.slane %v1125, 7
        %v1128 = vshll.u32 %v1090, 16
        %v1130 = vor.u32 %v1127, %v1128
        %v1132 = vshrl.u32 %v1091, 16
        %v1134 = vrot.slane %v1132, 7
        %v1135 = vshll.u32 %v1091, 16
        %v1137 = vor.u32 %v1134, %v1135
        %v1139 = vshrl.u32 %v1092, 16
        %v1141 = vrot.slane %v1139, 7
        %v1142 = vshll.u32 %v1092, 16
        %v1144 = vor.u32 %v1141, %v1142
        %v1146 = vshrl.u32 %v1093, 16
        %v1148 = vrot.slane %v1146, 7
        %v1149 = vshll.u32 %v1093, 16
        %v1151 = vor.u32 %v1148, %v1149
        %v1153 = vshrl.u32 %v1094, 16
        %v1155 = vrot.slane %v1153, 7
        %v1156 = vshll.u32 %v1094, 16
        %v1158 = vor.u32 %v1155, %v1156
        %v1160 = vshrl.u32 %v1095, 16
        %v1162 = vrot.slane %v1160, 7
        %v1163 = vshll.u32 %v1095, 16
        %v1165 = vor.u32 %v1162, %v1163
        %v1167 = vshrl.u32 %v1096, 16
        %v1169 = vrot.slane %v1167, 7
        %v1170 = vshll.u32 %v1096, 16
        %v1172 = vor.u32 %v1169, %v1170
        %v1174 = vshrl.u32 %v1097, 16
        %v1176 = vrot.slane %v1174, 7
        %v1177 = vshll.u32 %v1097, 16
        %v1179 = vor.u32 %v1176, %v1177
        %v1181 = vshrl.u32 %v1098, 16
        %v1183 = vrot.slane %v1181, 7
        %v1184 = vshll.u32 %v1098, 16
        %v1186 = vor.u32 %v1183, %v1184
        %v1188 = vshrl.u32 %v1099, 16
        %v1190 = vrot.slane %v1188, 7
        %v1191 = vshll.u32 %v1099, 16
        %v1193 = vor.u32 %v1190, %v1191
        %v1195 = vshrl.u32 %v1100, 16
        %v1197 = vrot.slane %v1195, 7
        %v1198 = vshll.u32 %v1100, 16
        %v1200 = vor.u32 %v1197, %v1198
        %v1202 = vshrl.u32 %v1101, 16
        %v1204 = vrot.slane %v1202, 7
        %v1205 = vshll.u32 %v1101, 16
        %v1207 = vor.u32 %v1204, %v1205
        %v1209 = vshrl.u32 %v1102, 16
        %v1211 = vrot.slane %v1209, 7
        %v1212 = vshll.u32 %v1102, 16
        %v1214 = vor.u32 %v1211, %v1212
        %v1231 = vld [vmem:[#allocation2 + $0x18] sm:$0xff]
        %v1232 = vsel %vm433, %v1109, %v1231
        %1233 = vst [vmem:[#allocation2 + $0x18] sm:$0xff] %v1232
        %v1234 = vld [vmem:[#allocation2 + $0x60] sm:$0xff]
        %v1235 = vsel %vm433, %v1116, %v1234
        %1236 = vst [vmem:[#allocation2 + $0x60] sm:$0xff] %v1235
        %v1237 = vld [vmem:[#allocation2 + $0xa8] sm:$0xff]
        %v1238 = vsel %vm433, %v1123, %v1237
        %1239 = vst [vmem:[#allocation2 + $0xa8] sm:$0xff] %v1238
        %v1240 = vld [vmem:[#allocation2 + $0xf0] sm:$0xff]
        %v1241 = vsel %vm433, %v1130, %v1240
        %1242 = vst [vmem:[#allocation2 + $0xf0] sm:$0xff] %v1241
        %v1243 = vld [vmem:[#allocation2 + $0x138] sm:$0xff]
        %v1244 = vsel %vm433, %v1137, %v1243
        %1245 = vst [vmem:[#allocation2 + $0x138] sm:$0xff] %v1244
        %v1246 = vld [vmem:[#allocation2 + $0x180] sm:$0xff]
        %v1247 = vsel %vm433, %v1144, %v1246
        %1248 = vst [vmem:[#allocation2 + $0x180] sm:$0xff] %v1247
        %v1249 = vld [vmem:[#allocation2 + $0x1c8] sm:$0xff]
        %v1250 = vsel %vm433, %v1151, %v1249
        %1251 = vst [vmem:[#allocation2 + $0x1c8] sm:$0xff] %v1250
        %v1252 = vld [vmem:[#allocation2 + $0x210] sm:$0xff]
        %v1253 = vsel %vm433, %v1158, %v1252
        %1254 = vst [vmem:[#allocation2 + $0x210] sm:$0xff] %v1253
        %v1255 = vld [vmem:[#allocation2 + $0x258] sm:$0xff]
        %v1256 = vsel %vm433, %v1165, %v1255
        %1257 = vst [vmem:[#allocation2 + $0x258] sm:$0xff] %v1256
        %v1258 = vld [vmem:[#allocation2 + $0x2a0] sm:$0xff]
        %v1259 = vsel %vm433, %v1172, %v1258
        %1260 = vst [vmem:[#allocation2 + $0x2a0] sm:$0xff] %v1259
        %v1261 = vld [vmem:[#allocation2 + $0x2e8] sm:$0xff]
        %v1262 = vsel %vm433, %v1179, %v1261
        %1263 = vst [vmem:[#allocation2 + $0x2e8] sm:$0xff] %v1262
        %v1264 = vld [vmem:[#allocation2 + $0x330] sm:$0xff]
        %v1265 = vsel %vm433, %v1186, %v1264
        %1266 = vst [vmem:[#allocation2 + $0x330] sm:$0xff] %v1265
        %v1267 = vld [vmem:[#allocation2 + $0x378] sm:$0xff]
        %v1268 = vsel %vm433, %v1193, %v1267
        %1269 = vst [vmem:[#allocation2 + $0x378] sm:$0xff] %v1268
        %v1270 = vld [vmem:[#allocation2 + $0x3c0] sm:$0xff]
        %v1271 = vsel %vm433, %v1200, %v1270
        %1272 = vst [vmem:[#allocation2 + $0x3c0] sm:$0xff] %v1271
        %v1273 = vld [vmem:[#allocation2 + $0x408] sm:$0xff]
        %v1274 = vsel %vm433, %v1207, %v1273
        %1275 = vst [vmem:[#allocation2 + $0x408] sm:$0xff] %v1274
        %v1276 = vld [vmem:[#allocation2 + $0x450] sm:$0xff]
        %v1277 = vsel %vm433, %v1214, %v1276
        %1278 = vst [vmem:[#allocation2 + $0x450] sm:$0xff] %v1277
        %v1279 = vld [vmem:[#allocation2 + $0x18] sm:$0x1]
        %v1280 = vsel %vm482, 0, %v1279
        %1281 = vst [vmem:[#allocation2 + $0x18] sm:$0x1] %v1280
        %v1282 = vld [vmem:[#allocation2 + $0x60] sm:$0x1]
        %v1283 = vsel %vm482, 0, %v1282
        %1284 = vst [vmem:[#allocation2 + $0x60] sm:$0x1] %v1283
        %v1285 = vld [vmem:[#allocation2 + $0xa8] sm:$0x1]
        %v1286 = vsel %vm482, 0, %v1285
        %1287 = vst [vmem:[#allocation2 + $0xa8] sm:$0x1] %v1286
        %v1288 = vld [vmem:[#allocation2 + $0xf0] sm:$0x1]
        %v1289 = vsel %vm482, 0, %v1288
        %1290 = vst [vmem:[#allocation2 + $0xf0] sm:$0x1] %v1289
        %v1291 = vld [vmem:[#allocation2 + $0x138] sm:$0x1]
        %v1292 = vsel %vm482, 0, %v1291
        %1293 = vst [vmem:[#allocation2 + $0x138] sm:$0x1] %v1292
        %v1294 = vld [vmem:[#allocation2 + $0x180] sm:$0x1]
        %v1295 = vsel %vm482, 0, %v1294
        %1296 = vst [vmem:[#allocation2 + $0x180] sm:$0x1] %v1295
        %v1297 = vld [vmem:[#allocation2 + $0x1c8] sm:$0x1]
        %v1298 = vsel %vm482, 0, %v1297
        %1299 = vst [vmem:[#allocation2 + $0x1c8] sm:$0x1] %v1298
        %v1300 = vld [vmem:[#allocation2 + $0x210] sm:$0x1]
        %v1301 = vsel %vm482, 0, %v1300
        %1302 = vst [vmem:[#allocation2 + $0x210] sm:$0x1] %v1301
        %v1303 = vld [vmem:[#allocation2 + $0x258] sm:$0x1]
        %v1304 = vsel %vm482, 0, %v1303
        %1305 = vst [vmem:[#allocation2 + $0x258] sm:$0x1] %v1304
        %v1306 = vld [vmem:[#allocation2 + $0x2a0] sm:$0x1]
        %v1307 = vsel %vm482, 0, %v1306
        %1308 = vst [vmem:[#allocation2 + $0x2a0] sm:$0x1] %v1307
        %v1309 = vld [vmem:[#allocation2 + $0x2e8] sm:$0x1]
        %v1310 = vsel %vm482, 0, %v1309
        %1311 = vst [vmem:[#allocation2 + $0x2e8] sm:$0x1] %v1310
        %v1312 = vld [vmem:[#allocation2 + $0x330] sm:$0x1]
        %v1313 = vsel %vm482, 0, %v1312
        %1314 = vst [vmem:[#allocation2 + $0x330] sm:$0x1] %v1313
        %v1315 = vld [vmem:[#allocation2 + $0x378] sm:$0x1]
        %v1316 = vsel %vm482, 0, %v1315
        %1317 = vst [vmem:[#allocation2 + $0x378] sm:$0x1] %v1316
        %v1318 = vld [vmem:[#allocation2 + $0x3c0] sm:$0x1]
        %v1319 = vsel %vm482, 0, %v1318
        %1320 = vst [vmem:[#allocation2 + $0x3c0] sm:$0x1] %v1319
        %v1321 = vld [vmem:[#allocation2 + $0x408] sm:$0x1]
        %v1322 = vsel %vm482, 0, %v1321
        %1323 = vst [vmem:[#allocation2 + $0x408] sm:$0x1] %v1322
        %v1324 = vld [vmem:[#allocation2 + $0x450] sm:$0x1]
        %v1325 = vsel %vm482, 0, %v1324
        %1326 = vst [vmem:[#allocation2 + $0x450] sm:$0x1] %v1325
        %v1327 = vld [vmem:[%s177] sm:$0xf]
        %v1328 = vld [vmem:[%s177 + $0x4] sm:$0xf]
        %v1329 = vld [vmem:[%s177 + $0x8] sm:$0xf]
        %v1330 = vld [vmem:[%s177 + $0xc] sm:$0xf]
        %v1331 = vld [vmem:[%s177 + $0x10] sm:$0xf]
        %v1332 = vld [vmem:[%s177 + $0x14] sm:$0xf]
        %v1333 = vld [vmem:[%s177 + $0x18] sm:$0xf]
        %v1334 = vld [vmem:[%s177 + $0x1c] sm:$0xf]
        %v1335 = vld [vmem:[%s177 + $0x20] sm:$0xf]
        %v1336 = vld [vmem:[%s177 + $0x24] sm:$0xf]
        %v1337 = vld [vmem:[%s177 + $0x28] sm:$0xf]
        %v1338 = vld [vmem:[%s177 + $0x2c] sm:$0xf]
        %v1339 = vld [vmem:[%s177 + $0x30] sm:$0xf]
        %v1340 = vld [vmem:[%s177 + $0x34] sm:$0xf]
        %v1341 = vld [vmem:[%s177 + $0x38] sm:$0xf]
        %v1342 = vld [vmem:[%s177 + $0x3c] sm:$0xf]
        %v1343 = vld [vmem:[%s177 + $0x40] sm:$0xf]
        %v1344 = vld [vmem:[%s177 + $0x44] sm:$0xf]
        %v1345 = vld [vmem:[%s177 + $0x48] sm:$0xf]
        %v1346 = vld [vmem:[%s177 + $0x4c] sm:$0xf]
        %v1347 = vld [vmem:[%s177 + $0x50] sm:$0xf]
        %v1348 = vld [vmem:[%s177 + $0x54] sm:$0xf]
        %v1349 = vld [vmem:[%s177 + $0x58] sm:$0xf]
        %v1350 = vld [vmem:[%s177 + $0x5c] sm:$0xf]
        %v1351 = vld [vmem:[%s177 + $0x60] sm:$0xf]
        %v1352 = vld [vmem:[%s177 + $0x64] sm:$0xf]
        %v1353 = vld [vmem:[%s177 + $0x68] sm:$0xf]
        %v1354 = vld [vmem:[%s177 + $0x6c] sm:$0xf]
        %v1355 = vld [vmem:[%s177 + $0x70] sm:$0xf]
        %v1356 = vld [vmem:[%s177 + $0x74] sm:$0xf]
        %v1357 = vld [vmem:[%s177 + $0x78] sm:$0xf]
        %v1358 = vld [vmem:[%s177 + $0x7c] sm:$0xf]
        %v1391 = vunpack.c.l.b16 %v1327
        %v1392 = vunpack.c.l.b16 %v1328
        %v1393 = vunpack.c.l.b16 %v1329
        %v1394 = vunpack.c.l.b16 %v1330
        %v1395 = vunpack.c.l.b16 %v1331
        %v1396 = vunpack.c.l.b16 %v1332
        %v1397 = vunpack.c.l.b16 %v1333
        %v1398 = vunpack.c.l.b16 %v1334
        %v1399 = vunpack.c.l.b16 %v1335
        %v1400 = vunpack.c.l.b16 %v1336
        %v1401 = vunpack.c.l.b16 %v1337
        %v1402 = vunpack.c.l.b16 %v1338
        %v1403 = vunpack.c.l.b16 %v1339
        %v1404 = vunpack.c.l.b16 %v1340
        %v1405 = vunpack.c.l.b16 %v1341
        %v1406 = vunpack.c.l.b16 %v1342
        %v1407 = vunpack.c.l.b16 %v1343
        %v1408 = vunpack.c.l.b16 %v1344
        %v1409 = vunpack.c.l.b16 %v1345
        %v1410 = vunpack.c.l.b16 %v1346
        %v1411 = vunpack.c.l.b16 %v1347
        %v1412 = vunpack.c.l.b16 %v1348
        %v1413 = vunpack.c.l.b16 %v1349
        %v1414 = vunpack.c.l.b16 %v1350
        %v1415 = vunpack.c.l.b16 %v1351
        %v1416 = vunpack.c.l.b16 %v1352
        %v1417 = vunpack.c.l.b16 %v1353
        %v1418 = vunpack.c.l.b16 %v1354
        %v1419 = vunpack.c.l.b16 %v1355
        %v1420 = vunpack.c.l.b16 %v1356
        %v1421 = vunpack.c.l.b16 %v1357
        %v1422 = vunpack.c.l.b16 %v1358
        %v1423 = vpack.c.b16 %v1392, %v1391
        %v1424 = vpack.c.b16 %v1394, %v1393
        %v1425 = vpack.c.b16 %v1396, %v1395
        %v1426 = vpack.c.b16 %v1398, %v1397
        %v1427 = vpack.c.b16 %v1400, %v1399
        %v1428 = vpack.c.b16 %v1402, %v1401
        %v1429 = vpack.c.b16 %v1404, %v1403
        %v1430 = vpack.c.b16 %v1406, %v1405
        %v1431 = vpack.c.b16 %v1408, %v1407
        %v1432 = vpack.c.b16 %v1410, %v1409
        %v1433 = vpack.c.b16 %v1412, %v1411
        %v1434 = vpack.c.b16 %v1414, %v1413
        %v1435 = vpack.c.b16 %v1416, %v1415
        %v1436 = vpack.c.b16 %v1418, %v1417
        %v1437 = vpack.c.b16 %v1420, %v1419
        %v1438 = vpack.c.b16 %v1422, %v1421
        %1455 = vst [vmem:[#allocation2 + $0x20] sm:$0xff] %v1423
        %1456 = vst [vmem:[#allocation2 + $0x68] sm:$0xff] %v1424
        %1457 = vst [vmem:[#allocation2 + $0xb0] sm:$0xff] %v1425
        %1458 = vst [vmem:[#allocation2 + $0xf8] sm:$0xff] %v1426
        %1459 = vst [vmem:[#allocation2 + $0x140] sm:$0xff] %v1427
        %1460 = vst [vmem:[#allocation2 + $0x188] sm:$0xff] %v1428
        %1461 = vst [vmem:[#allocation2 + $0x1d0] sm:$0xff] %v1429
        %1462 = vst [vmem:[#allocation2 + $0x218] sm:$0xff] %v1430
        %1463 = vst [vmem:[#allocation2 + $0x260] sm:$0xff] %v1431
        %1464 = vst [vmem:[#allocation2 + $0x2a8] sm:$0xff] %v1432
        %1465 = vst [vmem:[#allocation2 + $0x2f0] sm:$0xff] %v1433
        %1466 = vst [vmem:[#allocation2 + $0x338] sm:$0xff] %v1434
        %1467 = vst [vmem:[#allocation2 + $0x380] sm:$0xff] %v1435
        %1468 = vst [vmem:[#allocation2 + $0x3c8] sm:$0xff] %v1436
        %1469 = vst [vmem:[#allocation2 + $0x410] sm:$0xff] %v1437
        %1470 = vst [vmem:[#allocation2 + $0x458] sm:$0xff] %v1438
        %v1471 = vld [vmem:[%s177] sm:$0xf]
        %v1472 = vld [vmem:[%s177 + $0x4] sm:$0xf]
        %v1473 = vld [vmem:[%s177 + $0x8] sm:$0xf]
        %v1474 = vld [vmem:[%s177 + $0xc] sm:$0xf]
        %v1475 = vld [vmem:[%s177 + $0x10] sm:$0xf]
        %v1476 = vld [vmem:[%s177 + $0x14] sm:$0xf]
        %v1477 = vld [vmem:[%s177 + $0x18] sm:$0xf]
        %v1478 = vld [vmem:[%s177 + $0x1c] sm:$0xf]
        %v1479 = vld [vmem:[%s177 + $0x20] sm:$0xf]
        %v1480 = vld [vmem:[%s177 + $0x24] sm:$0xf]
        %v1481 = vld [vmem:[%s177 + $0x28] sm:$0xf]
        %v1482 = vld [vmem:[%s177 + $0x2c] sm:$0xf]
        %v1483 = vld [vmem:[%s177 + $0x30] sm:$0xf]
        %v1484 = vld [vmem:[%s177 + $0x34] sm:$0xf]
        %v1485 = vld [vmem:[%s177 + $0x38] sm:$0xf]
        %v1486 = vld [vmem:[%s177 + $0x3c] sm:$0xf]
        %v1487 = vld [vmem:[%s177 + $0x40] sm:$0xf]
        %v1488 = vld [vmem:[%s177 + $0x44] sm:$0xf]
        %v1489 = vld [vmem:[%s177 + $0x48] sm:$0xf]
        %v1490 = vld [vmem:[%s177 + $0x4c] sm:$0xf]
        %v1491 = vld [vmem:[%s177 + $0x50] sm:$0xf]
        %v1492 = vld [vmem:[%s177 + $0x54] sm:$0xf]
        %v1493 = vld [vmem:[%s177 + $0x58] sm:$0xf]
        %v1494 = vld [vmem:[%s177 + $0x5c] sm:$0xf]
        %v1495 = vld [vmem:[%s177 + $0x60] sm:$0xf]
        %v1496 = vld [vmem:[%s177 + $0x64] sm:$0xf]
        %v1497 = vld [vmem:[%s177 + $0x68] sm:$0xf]
        %v1498 = vld [vmem:[%s177 + $0x6c] sm:$0xf]
        %v1499 = vld [vmem:[%s177 + $0x70] sm:$0xf]
        %v1500 = vld [vmem:[%s177 + $0x74] sm:$0xf]
        %v1501 = vld [vmem:[%s177 + $0x78] sm:$0xf]
        %v1502 = vld [vmem:[%s177 + $0x7c] sm:$0xf]
        %v1535 = vunpack.c.l.b16 %v1471
        %v1536 = vunpack.c.l.b16 %v1472
        %v1537 = vunpack.c.l.b16 %v1473
        %v1538 = vunpack.c.l.b16 %v1474
        %v1539 = vunpack.c.l.b16 %v1475
        %v1540 = vunpack.c.l.b16 %v1476
        %v1541 = vunpack.c.l.b16 %v1477
        %v1542 = vunpack.c.l.b16 %v1478
        %v1543 = vunpack.c.l.b16 %v1479
        %v1544 = vunpack.c.l.b16 %v1480
        %v1545 = vunpack.c.l.b16 %v1481
        %v1546 = vunpack.c.l.b16 %v1482
        %v1547 = vunpack.c.l.b16 %v1483
        %v1548 = vunpack.c.l.b16 %v1484
        %v1549 = vunpack.c.l.b16 %v1485
        %v1550 = vunpack.c.l.b16 %v1486
        %v1551 = vunpack.c.l.b16 %v1487
        %v1552 = vunpack.c.l.b16 %v1488
        %v1553 = vunpack.c.l.b16 %v1489
        %v1554 = vunpack.c.l.b16 %v1490
        %v1555 = vunpack.c.l.b16 %v1491
        %v1556 = vunpack.c.l.b16 %v1492
        %v1557 = vunpack.c.l.b16 %v1493
        %v1558 = vunpack.c.l.b16 %v1494
        %v1559 = vunpack.c.l.b16 %v1495
        %v1560 = vunpack.c.l.b16 %v1496
        %v1561 = vunpack.c.l.b16 %v1497
        %v1562 = vunpack.c.l.b16 %v1498
        %v1563 = vunpack.c.l.b16 %v1499
        %v1564 = vunpack.c.l.b16 %v1500
        %v1565 = vunpack.c.l.b16 %v1501
        %v1566 = vunpack.c.l.b16 %v1502
        %v1567 = vpack.c.b16 %v1536, %v1535
        %v1568 = vpack.c.b16 %v1538, %v1537
        %v1569 = vpack.c.b16 %v1540, %v1539
        %v1570 = vpack.c.b16 %v1542, %v1541
        %v1571 = vpack.c.b16 %v1544, %v1543
        %v1572 = vpack.c.b16 %v1546, %v1545
        %v1573 = vpack.c.b16 %v1548, %v1547
        %v1574 = vpack.c.b16 %v1550, %v1549
        %v1575 = vpack.c.b16 %v1552, %v1551
        %v1576 = vpack.c.b16 %v1554, %v1553
        %v1577 = vpack.c.b16 %v1556, %v1555
        %v1578 = vpack.c.b16 %v1558, %v1557
        %v1579 = vpack.c.b16 %v1560, %v1559
        %v1580 = vpack.c.b16 %v1562, %v1561
        %v1581 = vpack.c.b16 %v1564, %v1563
        %v1582 = vpack.c.b16 %v1566, %v1565
        %v1584 = vshrl.u32 %v1567, 16
        %v1586 = vshll.u32 %v1567, 16
        %v1588 = vrot.slane %v1586, 1
        %v1589 = vor.u32 %v1584, %v1588
        %v1591 = vshrl.u32 %v1568, 16
        %v1593 = vshll.u32 %v1568, 16
        %v1595 = vrot.slane %v1593, 1
        %v1596 = vor.u32 %v1591, %v1595
        %v1598 = vshrl.u32 %v1569, 16
        %v1600 = vshll.u32 %v1569, 16
        %v1602 = vrot.slane %v1600, 1
        %v1603 = vor.u32 %v1598, %v1602
        %v1605 = vshrl.u32 %v1570, 16
        %v1607 = vshll.u32 %v1570, 16
        %v1609 = vrot.slane %v1607, 1
        %v1610 = vor.u32 %v1605, %v1609
        %v1612 = vshrl.u32 %v1571, 16
        %v1614 = vshll.u32 %v1571, 16
        %v1616 = vrot.slane %v1614, 1
        %v1617 = vor.u32 %v1612, %v1616
        %v1619 = vshrl.u32 %v1572, 16
        %v1621 = vshll.u32 %v1572, 16
        %v1623 = vrot.slane %v1621, 1
        %v1624 = vor.u32 %v1619, %v1623
        %v1626 = vshrl.u32 %v1573, 16
        %v1628 = vshll.u32 %v1573, 16
        %v1630 = vrot.slane %v1628, 1
        %v1631 = vor.u32 %v1626, %v1630
        %v1633 = vshrl.u32 %v1574, 16
        %v1635 = vshll.u32 %v1574, 16
        %v1637 = vrot.slane %v1635, 1
        %v1638 = vor.u32 %v1633, %v1637
        %v1640 = vshrl.u32 %v1575, 16
        %v1642 = vshll.u32 %v1575, 16
        %v1644 = vrot.slane %v1642, 1
        %v1645 = vor.u32 %v1640, %v1644
        %v1647 = vshrl.u32 %v1576, 16
        %v1649 = vshll.u32 %v1576, 16
        %v1651 = vrot.slane %v1649, 1
        %v1652 = vor.u32 %v1647, %v1651
        %v1654 = vshrl.u32 %v1577, 16
        %v1656 = vshll.u32 %v1577, 16
        %v1658 = vrot.slane %v1656, 1
        %v1659 = vor.u32 %v1654, %v1658
        %v1661 = vshrl.u32 %v1578, 16
        %v1663 = vshll.u32 %v1578, 16
        %v1665 = vrot.slane %v1663, 1
        %v1666 = vor.u32 %v1661, %v1665
        %v1668 = vshrl.u32 %v1579, 16
        %v1670 = vshll.u32 %v1579, 16
        %v1672 = vrot.slane %v1670, 1
        %v1673 = vor.u32 %v1668, %v1672
        %v1675 = vshrl.u32 %v1580, 16
        %v1677 = vshll.u32 %v1580, 16
        %v1679 = vrot.slane %v1677, 1
        %v1680 = vor.u32 %v1675, %v1679
        %v1682 = vshrl.u32 %v1581, 16
        %v1684 = vshll.u32 %v1581, 16
        %v1686 = vrot.slane %v1684, 1
        %v1687 = vor.u32 %v1682, %v1686
        %v1689 = vshrl.u32 %v1582, 16
        %v1691 = vshll.u32 %v1582, 16
        %v1693 = vrot.slane %v1691, 1
        %v1694 = vor.u32 %v1689, %v1693
        %v1711 = vld [vmem:[#allocation2 + $0x28] sm:$0xff]
        %v1712 = vsel %vm893, %v1589, %v1711
        %1713 = vst [vmem:[#allocation2 + $0x28] sm:$0xff] %v1712
        %v1714 = vld [vmem:[#allocation2 + $0x70] sm:$0xff]
        %v1715 = vsel %vm893, %v1596, %v1714
        %1716 = vst [vmem:[#allocation2 + $0x70] sm:$0xff] %v1715
        %v1717 = vld [vmem:[#allocation2 + $0xb8] sm:$0xff]
        %v1718 = vsel %vm893, %v1603, %v1717
        %1719 = vst [vmem:[#allocation2 + $0xb8] sm:$0xff] %v1718
        %v1720 = vld [vmem:[#allocation2 + $0x100] sm:$0xff]
        %v1721 = vsel %vm893, %v1610, %v1720
        %1722 = vst [vmem:[#allocation2 + $0x100] sm:$0xff] %v1721
        %v1723 = vld [vmem:[#allocation2 + $0x148] sm:$0xff]
        %v1724 = vsel %vm893, %v1617, %v1723
        %1725 = vst [vmem:[#allocation2 + $0x148] sm:$0xff] %v1724
        %v1726 = vld [vmem:[#allocation2 + $0x190] sm:$0xff]
        %v1727 = vsel %vm893, %v1624, %v1726
        %1728 = vst [vmem:[#allocation2 + $0x190] sm:$0xff] %v1727
        %v1729 = vld [vmem:[#allocation2 + $0x1d8] sm:$0xff]
        %v1730 = vsel %vm893, %v1631, %v1729
        %1731 = vst [vmem:[#allocation2 + $0x1d8] sm:$0xff] %v1730
        %v1732 = vld [vmem:[#allocation2 + $0x220] sm:$0xff]
        %v1733 = vsel %vm893, %v1638, %v1732
        %1734 = vst [vmem:[#allocation2 + $0x220] sm:$0xff] %v1733
        %v1735 = vld [vmem:[#allocation2 + $0x268] sm:$0xff]
        %v1736 = vsel %vm893, %v1645, %v1735
        %1737 = vst [vmem:[#allocation2 + $0x268] sm:$0xff] %v1736
        %v1738 = vld [vmem:[#allocation2 + $0x2b0] sm:$0xff]
        %v1739 = vsel %vm893, %v1652, %v1738
        %1740 = vst [vmem:[#allocation2 + $0x2b0] sm:$0xff] %v1739
        %v1741 = vld [vmem:[#allocation2 + $0x2f8] sm:$0xff]
        %v1742 = vsel %vm893, %v1659, %v1741
        %1743 = vst [vmem:[#allocation2 + $0x2f8] sm:$0xff] %v1742
        %v1744 = vld [vmem:[#allocation2 + $0x340] sm:$0xff]
        %v1745 = vsel %vm893, %v1666, %v1744
        %1746 = vst [vmem:[#allocation2 + $0x340] sm:$0xff] %v1745
        %v1747 = vld [vmem:[#allocation2 + $0x388] sm:$0xff]
        %v1748 = vsel %vm893, %v1673, %v1747
        %1749 = vst [vmem:[#allocation2 + $0x388] sm:$0xff] %v1748
        %v1750 = vld [vmem:[#allocation2 + $0x3d0] sm:$0xff]
        %v1751 = vsel %vm893, %v1680, %v1750
        %1752 = vst [vmem:[#allocation2 + $0x3d0] sm:$0xff] %v1751
        %v1753 = vld [vmem:[#allocation2 + $0x418] sm:$0xff]
        %v1754 = vsel %vm893, %v1687, %v1753
        %1755 = vst [vmem:[#allocation2 + $0x418] sm:$0xff] %v1754
        %v1756 = vld [vmem:[#allocation2 + $0x460] sm:$0xff]
        %v1757 = vsel %vm893, %v1694, %v1756
        %1758 = vst [vmem:[#allocation2 + $0x460] sm:$0xff] %v1757
        %v1759 = vld [vmem:[#allocation2 + $0x28] sm:$0x80]
        %v1760 = vsel %vm942, 0, %v1759
        %1761 = vst [vmem:[#allocation2 + $0x28] sm:$0x80] %v1760
        %v1762 = vld [vmem:[#allocation2 + $0x70] sm:$0x80]
        %v1763 = vsel %vm942, 0, %v1762
        %1764 = vst [vmem:[#allocation2 + $0x70] sm:$0x80] %v1763
        %v1765 = vld [vmem:[#allocation2 + $0xb8] sm:$0x80]
        %v1766 = vsel %vm942, 0, %v1765
        %1767 = vst [vmem:[#allocation2 + $0xb8] sm:$0x80] %v1766
        %v1768 = vld [vmem:[#allocation2 + $0x100] sm:$0x80]
        %v1769 = vsel %vm942, 0, %v1768
        %1770 = vst [vmem:[#allocation2 + $0x100] sm:$0x80] %v1769
        %v1771 = vld [vmem:[#allocation2 + $0x148] sm:$0x80]
        %v1772 = vsel %vm942, 0, %v1771
        %1773 = vst [vmem:[#allocation2 + $0x148] sm:$0x80] %v1772
        %v1774 = vld [vmem:[#allocation2 + $0x190] sm:$0x80]
        %v1775 = vsel %vm942, 0, %v1774
        %1776 = vst [vmem:[#allocation2 + $0x190] sm:$0x80] %v1775
        %v1777 = vld [vmem:[#allocation2 + $0x1d8] sm:$0x80]
        %v1778 = vsel %vm942, 0, %v1777
        %1779 = vst [vmem:[#allocation2 + $0x1d8] sm:$0x80] %v1778
        %v1780 = vld [vmem:[#allocation2 + $0x220] sm:$0x80]
        %v1781 = vsel %vm942, 0, %v1780
        %1782 = vst [vmem:[#allocation2 + $0x220] sm:$0x80] %v1781
        %v1783 = vld [vmem:[#allocation2 + $0x268] sm:$0x80]
        %v1784 = vsel %vm942, 0, %v1783
        %1785 = vst [vmem:[#allocation2 + $0x268] sm:$0x80] %v1784
        %v1786 = vld [vmem:[#allocation2 + $0x2b0] sm:$0x80]
        %v1787 = vsel %vm942, 0, %v1786
        %1788 = vst [vmem:[#allocation2 + $0x2b0] sm:$0x80] %v1787
        %v1789 = vld [vmem:[#allocation2 + $0x2f8] sm:$0x80]
        %v1790 = vsel %vm942, 0, %v1789
        %1791 = vst [vmem:[#allocation2 + $0x2f8] sm:$0x80] %v1790
        %v1792 = vld [vmem:[#allocation2 + $0x340] sm:$0x80]
        %v1793 = vsel %vm942, 0, %v1792
        %1794 = vst [vmem:[#allocation2 + $0x340] sm:$0x80] %v1793
        %v1795 = vld [vmem:[#allocation2 + $0x388] sm:$0x80]
        %v1796 = vsel %vm942, 0, %v1795
        %1797 = vst [vmem:[#allocation2 + $0x388] sm:$0x80] %v1796
        %v1798 = vld [vmem:[#allocation2 + $0x3d0] sm:$0x80]
        %v1799 = vsel %vm942, 0, %v1798
        %1800 = vst [vmem:[#allocation2 + $0x3d0] sm:$0x80] %v1799
        %v1801 = vld [vmem:[#allocation2 + $0x418] sm:$0x80]
        %v1802 = vsel %vm942, 0, %v1801
        %1803 = vst [vmem:[#allocation2 + $0x418] sm:$0x80] %v1802
        %v1804 = vld [vmem:[#allocation2 + $0x460] sm:$0x80]
        %v1805 = vsel %vm942, 0, %v1804
        %1806 = vst [vmem:[#allocation2 + $0x460] sm:$0x80] %v1805
        %s1807 = scalar_lea.vmem %s177, 8 [#allocation3]
        %v1808 = vld [vmem:[%s1807] sm:$0xf]
        %v1809 = vld [vmem:[%s1807 + $0x4] sm:$0xf]
        %v1810 = vld [vmem:[%s1807 + $0x8] sm:$0xf]
        %v1811 = vld [vmem:[%s1807 + $0xc] sm:$0xf]
        %v1812 = vld [vmem:[%s1807 + $0x10] sm:$0xf]
        %v1813 = vld [vmem:[%s1807 + $0x14] sm:$0xf]
        %v1814 = vld [vmem:[%s1807 + $0x18] sm:$0xf]
        %v1815 = vld [vmem:[%s1807 + $0x1c] sm:$0xf]
        %v1816 = vld [vmem:[%s1807 + $0x20] sm:$0xf]
        %v1817 = vld [vmem:[%s1807 + $0x24] sm:$0xf]
        %v1818 = vld [vmem:[%s1807 + $0x28] sm:$0xf]
        %v1819 = vld [vmem:[%s1807 + $0x2c] sm:$0xf]
        %v1820 = vld [vmem:[%s1807 + $0x30] sm:$0xf]
        %v1821 = vld [vmem:[%s1807 + $0x34] sm:$0xf]
        %v1822 = vld [vmem:[%s1807 + $0x38] sm:$0xf]
        %v1823 = vld [vmem:[%s1807 + $0x3c] sm:$0xf]
        %v1824 = vld [vmem:[%s1807 + $0x40] sm:$0xf]
        %v1825 = vld [vmem:[%s1807 + $0x44] sm:$0xf]
        %v1826 = vld [vmem:[%s1807 + $0x48] sm:$0xf]
        %v1827 = vld [vmem:[%s1807 + $0x4c] sm:$0xf]
        %v1828 = vld [vmem:[%s1807 + $0x50] sm:$0xf]
        %v1829 = vld [vmem:[%s1807 + $0x54] sm:$0xf]
        %v1830 = vld [vmem:[%s1807 + $0x58] sm:$0xf]
        %v1831 = vld [vmem:[%s1807 + $0x5c] sm:$0xf]
        %v1832 = vld [vmem:[%s1807 + $0x60] sm:$0xf]
        %v1833 = vld [vmem:[%s1807 + $0x64] sm:$0xf]
        %v1834 = vld [vmem:[%s1807 + $0x68] sm:$0xf]
        %v1835 = vld [vmem:[%s1807 + $0x6c] sm:$0xf]
        %v1836 = vld [vmem:[%s1807 + $0x70] sm:$0xf]
        %v1837 = vld [vmem:[%s1807 + $0x74] sm:$0xf]
        %v1868 = vunpack.c.l.b16 %v1808
        %v1869 = vunpack.c.l.b16 %v1809
        %v1870 = vunpack.c.l.b16 %v1810
        %v1871 = vunpack.c.l.b16 %v1811
        %v1872 = vunpack.c.l.b16 %v1812
        %v1873 = vunpack.c.l.b16 %v1813
        %v1874 = vunpack.c.l.b16 %v1814
        %v1875 = vunpack.c.l.b16 %v1815
        %v1876 = vunpack.c.l.b16 %v1816
        %v1877 = vunpack.c.l.b16 %v1817
        %v1878 = vunpack.c.l.b16 %v1818
        %v1879 = vunpack.c.l.b16 %v1819
        %v1880 = vunpack.c.l.b16 %v1820
        %v1881 = vunpack.c.l.b16 %v1821
        %v1882 = vunpack.c.l.b16 %v1822
        %v1883 = vunpack.c.l.b16 %v1823
        %v1884 = vunpack.c.l.b16 %v1824
        %v1885 = vunpack.c.l.b16 %v1825
        %v1886 = vunpack.c.l.b16 %v1826
        %v1887 = vunpack.c.l.b16 %v1827
        %v1888 = vunpack.c.l.b16 %v1828
        %v1889 = vunpack.c.l.b16 %v1829
        %v1890 = vunpack.c.l.b16 %v1830
        %v1891 = vunpack.c.l.b16 %v1831
        %v1892 = vunpack.c.l.b16 %v1832
        %v1893 = vunpack.c.l.b16 %v1833
        %v1894 = vunpack.c.l.b16 %v1834
        %v1895 = vunpack.c.l.b16 %v1835
        %v1896 = vunpack.c.l.b16 %v1836
        %v1897 = vunpack.c.l.b16 %v1837
        %v1898 = vpack.c.b16 %v1869, %v1868
        %v1899 = vpack.c.b16 %v1871, %v1870
        %v1900 = vpack.c.b16 %v1873, %v1872
        %v1901 = vpack.c.b16 %v1875, %v1874
        %v1902 = vpack.c.b16 %v1877, %v1876
        %v1903 = vpack.c.b16 %v1879, %v1878
        %v1904 = vpack.c.b16 %v1881, %v1880
        %v1905 = vpack.c.b16 %v1883, %v1882
        %v1906 = vpack.c.b16 %v1885, %v1884
        %v1907 = vpack.c.b16 %v1887, %v1886
        %v1908 = vpack.c.b16 %v1889, %v1888
        %v1909 = vpack.c.b16 %v1891, %v1890
        %v1910 = vpack.c.b16 %v1893, %v1892
        %v1911 = vpack.c.b16 %v1895, %v1894
        %v1912 = vpack.c.b16 %v1897, %v1896
        %v1914 = vshrl.u32 %v1898, 16
        %v1916 = vrot.slane %v1914, 7
        %v1917 = vshll.u32 %v1898, 16
        %v1919 = vor.u32 %v1916, %v1917
        %v1921 = vshrl.u32 %v1899, 16
        %v1923 = vrot.slane %v1921, 7
        %v1924 = vshll.u32 %v1899, 16
        %v1926 = vor.u32 %v1923, %v1924
        %v1928 = vshrl.u32 %v1900, 16
        %v1930 = vrot.slane %v1928, 7
        %v1931 = vshll.u32 %v1900, 16
        %v1933 = vor.u32 %v1930, %v1931
        %v1935 = vshrl.u32 %v1901, 16
        %v1937 = vrot.slane %v1935, 7
        %v1938 = vshll.u32 %v1901, 16
        %v1940 = vor.u32 %v1937, %v1938
        %v1942 = vshrl.u32 %v1902, 16
        %v1944 = vrot.slane %v1942, 7
        %v1945 = vshll.u32 %v1902, 16
        %v1947 = vor.u32 %v1944, %v1945
        %v1949 = vshrl.u32 %v1903, 16
        %v1951 = vrot.slane %v1949, 7
        %v1952 = vshll.u32 %v1903, 16
        %v1954 = vor.u32 %v1951, %v1952
        %v1956 = vshrl.u32 %v1904, 16
        %v1958 = vrot.slane %v1956, 7
        %v1959 = vshll.u32 %v1904, 16
        %v1961 = vor.u32 %v1958, %v1959
        %v1963 = vshrl.u32 %v1905, 16
        %v1965 = vrot.slane %v1963, 7
        %v1966 = vshll.u32 %v1905, 16
        %v1968 = vor.u32 %v1965, %v1966
        %v1970 = vshrl.u32 %v1906, 16
        %v1972 = vrot.slane %v1970, 7
        %v1973 = vshll.u32 %v1906, 16
        %v1975 = vor.u32 %v1972, %v1973
        %v1977 = vshrl.u32 %v1907, 16
        %v1979 = vrot.slane %v1977, 7
        %v1980 = vshll.u32 %v1907, 16
        %v1982 = vor.u32 %v1979, %v1980
        %v1984 = vshrl.u32 %v1908, 16
        %v1986 = vrot.slane %v1984, 7
        %v1987 = vshll.u32 %v1908, 16
        %v1989 = vor.u32 %v1986, %v1987
        %v1991 = vshrl.u32 %v1909, 16
        %v1993 = vrot.slane %v1991, 7
        %v1994 = vshll.u32 %v1909, 16
        %v1996 = vor.u32 %v1993, %v1994
        %v1998 = vshrl.u32 %v1910, 16
        %v2000 = vrot.slane %v1998, 7
        %v2001 = vshll.u32 %v1910, 16
        %v2003 = vor.u32 %v2000, %v2001
        %v2005 = vshrl.u32 %v1911, 16
        %v2007 = vrot.slane %v2005, 7
        %v2008 = vshll.u32 %v1911, 16
        %v2010 = vor.u32 %v2007, %v2008
        %v2012 = vshrl.u32 %v1912, 16
        %v2014 = vrot.slane %v2012, 7
        %v2015 = vshll.u32 %v1912, 16
        %v2017 = vor.u32 %v2014, %v2015
        %v2033 = vld [vmem:[#allocation2 + $0x30] sm:$0xff]
        %v2034 = vsel %vm433, %v1919, %v2033
        %2035 = vst [vmem:[#allocation2 + $0x30] sm:$0xff] %v2034
        %v2036 = vld [vmem:[#allocation2 + $0x78] sm:$0xff]
        %v2037 = vsel %vm433, %v1926, %v2036
        %2038 = vst [vmem:[#allocation2 + $0x78] sm:$0xff] %v2037
        %v2039 = vld [vmem:[#allocation2 + $0xc0] sm:$0xff]
        %v2040 = vsel %vm433, %v1933, %v2039
        %2041 = vst [vmem:[#allocation2 + $0xc0] sm:$0xff] %v2040
        %v2042 = vld [vmem:[#allocation2 + $0x108] sm:$0xff]
        %v2043 = vsel %vm433, %v1940, %v2042
        %2044 = vst [vmem:[#allocation2 + $0x108] sm:$0xff] %v2043
        %v2045 = vld [vmem:[#allocation2 + $0x150] sm:$0xff]
        %v2046 = vsel %vm433, %v1947, %v2045
        %2047 = vst [vmem:[#allocation2 + $0x150] sm:$0xff] %v2046
        %v2048 = vld [vmem:[#allocation2 + $0x198] sm:$0xff]
        %v2049 = vsel %vm433, %v1954, %v2048
        %2050 = vst [vmem:[#allocation2 + $0x198] sm:$0xff] %v2049
        %v2051 = vld [vmem:[#allocation2 + $0x1e0] sm:$0xff]
        %v2052 = vsel %vm433, %v1961, %v2051
        %2053 = vst [vmem:[#allocation2 + $0x1e0] sm:$0xff] %v2052
        %v2054 = vld [vmem:[#allocation2 + $0x228] sm:$0xff]
        %v2055 = vsel %vm433, %v1968, %v2054
        %2056 = vst [vmem:[#allocation2 + $0x228] sm:$0xff] %v2055
        %v2057 = vld [vmem:[#allocation2 + $0x270] sm:$0xff]
        %v2058 = vsel %vm433, %v1975, %v2057
        %2059 = vst [vmem:[#allocation2 + $0x270] sm:$0xff] %v2058
        %v2060 = vld [vmem:[#allocation2 + $0x2b8] sm:$0xff]
        %v2061 = vsel %vm433, %v1982, %v2060
        %2062 = vst [vmem:[#allocation2 + $0x2b8] sm:$0xff] %v2061
        %v2063 = vld [vmem:[#allocation2 + $0x300] sm:$0xff]
        %v2064 = vsel %vm433, %v1989, %v2063
        %2065 = vst [vmem:[#allocation2 + $0x300] sm:$0xff] %v2064
        %v2066 = vld [vmem:[#allocation2 + $0x348] sm:$0xff]
        %v2067 = vsel %vm433, %v1996, %v2066
        %2068 = vst [vmem:[#allocation2 + $0x348] sm:$0xff] %v2067
        %v2069 = vld [vmem:[#allocation2 + $0x390] sm:$0xff]
        %v2070 = vsel %vm433, %v2003, %v2069
        %2071 = vst [vmem:[#allocation2 + $0x390] sm:$0xff] %v2070
        %v2072 = vld [vmem:[#allocation2 + $0x3d8] sm:$0xff]
        %v2073 = vsel %vm433, %v2010, %v2072
        %2074 = vst [vmem:[#allocation2 + $0x3d8] sm:$0xff] %v2073
        %v2075 = vld [vmem:[#allocation2 + $0x420] sm:$0xff]
        %v2076 = vsel %vm433, %v2017, %v2075
        %2077 = vst [vmem:[#allocation2 + $0x420] sm:$0xff] %v2076
        %s2078 = scalar_lea.vmem [#allocation2], 1080
        %2079 = vst [vmem:[%s2078 + $0x30] sm:$0xff] 0
        %v2080 = vld [vmem:[#allocation2 + $0x30] sm:$0x1]
        %v2081 = vsel %vm482, 0, %v2080
        %2082 = vst [vmem:[#allocation2 + $0x30] sm:$0x1] %v2081
        %v2083 = vld [vmem:[#allocation2 + $0x78] sm:$0x1]
        %v2084 = vsel %vm482, 0, %v2083
        %2085 = vst [vmem:[#allocation2 + $0x78] sm:$0x1] %v2084
        %v2086 = vld [vmem:[#allocation2 + $0xc0] sm:$0x1]
        %v2087 = vsel %vm482, 0, %v2086
        %2088 = vst [vmem:[#allocation2 + $0xc0] sm:$0x1] %v2087
        %v2089 = vld [vmem:[#allocation2 + $0x108] sm:$0x1]
        %v2090 = vsel %vm482, 0, %v2089
        %2091 = vst [vmem:[#allocation2 + $0x108] sm:$0x1] %v2090
        %v2092 = vld [vmem:[#allocation2 + $0x150] sm:$0x1]
        %v2093 = vsel %vm482, 0, %v2092
        %2094 = vst [vmem:[#allocation2 + $0x150] sm:$0x1] %v2093
        %v2095 = vld [vmem:[#allocation2 + $0x198] sm:$0x1]
        %v2096 = vsel %vm482, 0, %v2095
        %2097 = vst [vmem:[#allocation2 + $0x198] sm:$0x1] %v2096
        %v2098 = vld [vmem:[#allocation2 + $0x1e0] sm:$0x1]
        %v2099 = vsel %vm482, 0, %v2098
        %2100 = vst [vmem:[#allocation2 + $0x1e0] sm:$0x1] %v2099
        %v2101 = vld [vmem:[#allocation2 + $0x228] sm:$0x1]
        %v2102 = vsel %vm482, 0, %v2101
        %2103 = vst [vmem:[#allocation2 + $0x228] sm:$0x1] %v2102
        %v2104 = vld [vmem:[#allocation2 + $0x270] sm:$0x1]
        %v2105 = vsel %vm482, 0, %v2104
        %2106 = vst [vmem:[#allocation2 + $0x270] sm:$0x1] %v2105
        %v2107 = vld [vmem:[#allocation2 + $0x2b8] sm:$0x1]
        %v2108 = vsel %vm482, 0, %v2107
        %2109 = vst [vmem:[#allocation2 + $0x2b8] sm:$0x1] %v2108
        %v2110 = vld [vmem:[#allocation2 + $0x300] sm:$0x1]
        %v2111 = vsel %vm482, 0, %v2110
        %2112 = vst [vmem:[#allocation2 + $0x300] sm:$0x1] %v2111
        %v2113 = vld [vmem:[#allocation2 + $0x348] sm:$0x1]
        %v2114 = vsel %vm482, 0, %v2113
        %2115 = vst [vmem:[#allocation2 + $0x348] sm:$0x1] %v2114
        %v2116 = vld [vmem:[#allocation2 + $0x390] sm:$0x1]
        %v2117 = vsel %vm482, 0, %v2116
        %2118 = vst [vmem:[#allocation2 + $0x390] sm:$0x1] %v2117
        %v2119 = vld [vmem:[#allocation2 + $0x3d8] sm:$0x1]
        %v2120 = vsel %vm482, 0, %v2119
        %2121 = vst [vmem:[#allocation2 + $0x3d8] sm:$0x1] %v2120
        %v2122 = vld [vmem:[#allocation2 + $0x420] sm:$0x1]
        %v2123 = vsel %vm482, 0, %v2122
        %2124 = vst [vmem:[#allocation2 + $0x420] sm:$0x1] %v2123
        %v2125 = vld [vmem:[#allocation2 + $0x468] sm:$0x1]
        %v2126 = vsel %vm482, 0, %v2125
        %2127 = vst [vmem:[#allocation2 + $0x468] sm:$0x1] %v2126
        %v2128 = vld [vmem:[%s1807] sm:$0xf]
        %v2129 = vld [vmem:[%s1807 + $0x4] sm:$0xf]
        %v2130 = vld [vmem:[%s1807 + $0x8] sm:$0xf]
        %v2131 = vld [vmem:[%s1807 + $0xc] sm:$0xf]
        %v2132 = vld [vmem:[%s1807 + $0x10] sm:$0xf]
        %v2133 = vld [vmem:[%s1807 + $0x14] sm:$0xf]
        %v2134 = vld [vmem:[%s1807 + $0x18] sm:$0xf]
        %v2135 = vld [vmem:[%s1807 + $0x1c] sm:$0xf]
        %v2136 = vld [vmem:[%s1807 + $0x20] sm:$0xf]
        %v2137 = vld [vmem:[%s1807 + $0x24] sm:$0xf]
        %v2138 = vld [vmem:[%s1807 + $0x28] sm:$0xf]
        %v2139 = vld [vmem:[%s1807 + $0x2c] sm:$0xf]
        %v2140 = vld [vmem:[%s1807 + $0x30] sm:$0xf]
        %v2141 = vld [vmem:[%s1807 + $0x34] sm:$0xf]
        %v2142 = vld [vmem:[%s1807 + $0x38] sm:$0xf]
        %v2143 = vld [vmem:[%s1807 + $0x3c] sm:$0xf]
        %v2144 = vld [vmem:[%s1807 + $0x40] sm:$0xf]
        %v2145 = vld [vmem:[%s1807 + $0x44] sm:$0xf]
        %v2146 = vld [vmem:[%s1807 + $0x48] sm:$0xf]
        %v2147 = vld [vmem:[%s1807 + $0x4c] sm:$0xf]
        %v2148 = vld [vmem:[%s1807 + $0x50] sm:$0xf]
        %v2149 = vld [vmem:[%s1807 + $0x54] sm:$0xf]
        %v2150 = vld [vmem:[%s1807 + $0x58] sm:$0xf]
        %v2151 = vld [vmem:[%s1807 + $0x5c] sm:$0xf]
        %v2152 = vld [vmem:[%s1807 + $0x60] sm:$0xf]
        %v2153 = vld [vmem:[%s1807 + $0x64] sm:$0xf]
        %v2154 = vld [vmem:[%s1807 + $0x68] sm:$0xf]
        %v2155 = vld [vmem:[%s1807 + $0x6c] sm:$0xf]
        %v2156 = vld [vmem:[%s1807 + $0x70] sm:$0xf]
        %v2157 = vld [vmem:[%s1807 + $0x74] sm:$0xf]
        %v2188 = vunpack.c.l.b16 %v2128
        %v2189 = vunpack.c.l.b16 %v2129
        %v2190 = vunpack.c.l.b16 %v2130
        %v2191 = vunpack.c.l.b16 %v2131
        %v2192 = vunpack.c.l.b16 %v2132
        %v2193 = vunpack.c.l.b16 %v2133
        %v2194 = vunpack.c.l.b16 %v2134
        %v2195 = vunpack.c.l.b16 %v2135
        %v2196 = vunpack.c.l.b16 %v2136
        %v2197 = vunpack.c.l.b16 %v2137
        %v2198 = vunpack.c.l.b16 %v2138
        %v2199 = vunpack.c.l.b16 %v2139
        %v2200 = vunpack.c.l.b16 %v2140
        %v2201 = vunpack.c.l.b16 %v2141
        %v2202 = vunpack.c.l.b16 %v2142
        %v2203 = vunpack.c.l.b16 %v2143
        %v2204 = vunpack.c.l.b16 %v2144
        %v2205 = vunpack.c.l.b16 %v2145
        %v2206 = vunpack.c.l.b16 %v2146
        %v2207 = vunpack.c.l.b16 %v2147
        %v2208 = vunpack.c.l.b16 %v2148
        %v2209 = vunpack.c.l.b16 %v2149
        %v2210 = vunpack.c.l.b16 %v2150
        %v2211 = vunpack.c.l.b16 %v2151
        %v2212 = vunpack.c.l.b16 %v2152
        %v2213 = vunpack.c.l.b16 %v2153
        %v2214 = vunpack.c.l.b16 %v2154
        %v2215 = vunpack.c.l.b16 %v2155
        %v2216 = vunpack.c.l.b16 %v2156
        %v2217 = vunpack.c.l.b16 %v2157
        %v2218 = vpack.c.b16 %v2189, %v2188
        %v2219 = vpack.c.b16 %v2191, %v2190
        %v2220 = vpack.c.b16 %v2193, %v2192
        %v2221 = vpack.c.b16 %v2195, %v2194
        %v2222 = vpack.c.b16 %v2197, %v2196
        %v2223 = vpack.c.b16 %v2199, %v2198
        %v2224 = vpack.c.b16 %v2201, %v2200
        %v2225 = vpack.c.b16 %v2203, %v2202
        %v2226 = vpack.c.b16 %v2205, %v2204
        %v2227 = vpack.c.b16 %v2207, %v2206
        %v2228 = vpack.c.b16 %v2209, %v2208
        %v2229 = vpack.c.b16 %v2211, %v2210
        %v2230 = vpack.c.b16 %v2213, %v2212
        %v2231 = vpack.c.b16 %v2215, %v2214
        %v2232 = vpack.c.b16 %v2217, %v2216
        %2248 = vst [vmem:[#allocation2 + $0x38] sm:$0xff] %v2218
        %2249 = vst [vmem:[#allocation2 + $0x80] sm:$0xff] %v2219
        %2250 = vst [vmem:[#allocation2 + $0xc8] sm:$0xff] %v2220
        %2251 = vst [vmem:[#allocation2 + $0x110] sm:$0xff] %v2221
        %2252 = vst [vmem:[#allocation2 + $0x158] sm:$0xff] %v2222
        %2253 = vst [vmem:[#allocation2 + $0x1a0] sm:$0xff] %v2223
        %2254 = vst [vmem:[#allocation2 + $0x1e8] sm:$0xff] %v2224
        %2255 = vst [vmem:[#allocation2 + $0x230] sm:$0xff] %v2225
        %2256 = vst [vmem:[#allocation2 + $0x278] sm:$0xff] %v2226
        %2257 = vst [vmem:[#allocation2 + $0x2c0] sm:$0xff] %v2227
        %2258 = vst [vmem:[#allocation2 + $0x308] sm:$0xff] %v2228
        %2259 = vst [vmem:[#allocation2 + $0x350] sm:$0xff] %v2229
        %2260 = vst [vmem:[#allocation2 + $0x398] sm:$0xff] %v2230
        %2261 = vst [vmem:[#allocation2 + $0x3e0] sm:$0xff] %v2231
        %2262 = vst [vmem:[#allocation2 + $0x428] sm:$0xff] %v2232
        %2263 = vst [vmem:[%s2078 + $0x38] sm:$0xff] 0
        %v2264 = vld [vmem:[%s1807] sm:$0xf]
        %v2265 = vld [vmem:[%s1807 + $0x4] sm:$0xf]
        %v2266 = vld [vmem:[%s1807 + $0x8] sm:$0xf]
        %v2267 = vld [vmem:[%s1807 + $0xc] sm:$0xf]
        %v2268 = vld [vmem:[%s1807 + $0x10] sm:$0xf]
        %v2269 = vld [vmem:[%s1807 + $0x14] sm:$0xf]
        %v2270 = vld [vmem:[%s1807 + $0x18] sm:$0xf]
        %v2271 = vld [vmem:[%s1807 + $0x1c] sm:$0xf]
        %v2272 = vld [vmem:[%s1807 + $0x20] sm:$0xf]
        %v2273 = vld [vmem:[%s1807 + $0x24] sm:$0xf]
        %v2274 = vld [vmem:[%s1807 + $0x28] sm:$0xf]
        %v2275 = vld [vmem:[%s1807 + $0x2c] sm:$0xf]
        %v2276 = vld [vmem:[%s1807 + $0x30] sm:$0xf]
        %v2277 = vld [vmem:[%s1807 + $0x34] sm:$0xf]
        %v2278 = vld [vmem:[%s1807 + $0x38] sm:$0xf]
        %v2279 = vld [vmem:[%s1807 + $0x3c] sm:$0xf]
        %v2280 = vld [vmem:[%s1807 + $0x40] sm:$0xf]
        %v2281 = vld [vmem:[%s1807 + $0x44] sm:$0xf]
        %v2282 = vld [vmem:[%s1807 + $0x48] sm:$0xf]
        %v2283 = vld [vmem:[%s1807 + $0x4c] sm:$0xf]
        %v2284 = vld [vmem:[%s1807 + $0x50] sm:$0xf]
        %v2285 = vld [vmem:[%s1807 + $0x54] sm:$0xf]
        %v2286 = vld [vmem:[%s1807 + $0x58] sm:$0xf]
        %v2287 = vld [vmem:[%s1807 + $0x5c] sm:$0xf]
        %v2288 = vld [vmem:[%s1807 + $0x60] sm:$0xf]
        %v2289 = vld [vmem:[%s1807 + $0x64] sm:$0xf]
        %v2290 = vld [vmem:[%s1807 + $0x68] sm:$0xf]
        %v2291 = vld [vmem:[%s1807 + $0x6c] sm:$0xf]
        %v2292 = vld [vmem:[%s1807 + $0x70] sm:$0xf]
        %v2293 = vld [vmem:[%s1807 + $0x74] sm:$0xf]
        %v2324 = vunpack.c.l.b16 %v2264
        %v2325 = vunpack.c.l.b16 %v2265
        %v2326 = vunpack.c.l.b16 %v2266
        %v2327 = vunpack.c.l.b16 %v2267
        %v2328 = vunpack.c.l.b16 %v2268
        %v2329 = vunpack.c.l.b16 %v2269
        %v2330 = vunpack.c.l.b16 %v2270
        %v2331 = vunpack.c.l.b16 %v2271
        %v2332 = vunpack.c.l.b16 %v2272
        %v2333 = vunpack.c.l.b16 %v2273
        %v2334 = vunpack.c.l.b16 %v2274
        %v2335 = vunpack.c.l.b16 %v2275
        %v2336 = vunpack.c.l.b16 %v2276
        %v2337 = vunpack.c.l.b16 %v2277
        %v2338 = vunpack.c.l.b16 %v2278
        %v2339 = vunpack.c.l.b16 %v2279
        %v2340 = vunpack.c.l.b16 %v2280
        %v2341 = vunpack.c.l.b16 %v2281
        %v2342 = vunpack.c.l.b16 %v2282
        %v2343 = vunpack.c.l.b16 %v2283
        %v2344 = vunpack.c.l.b16 %v2284
        %v2345 = vunpack.c.l.b16 %v2285
        %v2346 = vunpack.c.l.b16 %v2286
        %v2347 = vunpack.c.l.b16 %v2287
        %v2348 = vunpack.c.l.b16 %v2288
        %v2349 = vunpack.c.l.b16 %v2289
        %v2350 = vunpack.c.l.b16 %v2290
        %v2351 = vunpack.c.l.b16 %v2291
        %v2352 = vunpack.c.l.b16 %v2292
        %v2353 = vunpack.c.l.b16 %v2293
        %v2354 = vpack.c.b16 %v2325, %v2324
        %v2355 = vpack.c.b16 %v2327, %v2326
        %v2356 = vpack.c.b16 %v2329, %v2328
        %v2357 = vpack.c.b16 %v2331, %v2330
        %v2358 = vpack.c.b16 %v2333, %v2332
        %v2359 = vpack.c.b16 %v2335, %v2334
        %v2360 = vpack.c.b16 %v2337, %v2336
        %v2361 = vpack.c.b16 %v2339, %v2338
        %v2362 = vpack.c.b16 %v2341, %v2340
        %v2363 = vpack.c.b16 %v2343, %v2342
        %v2364 = vpack.c.b16 %v2345, %v2344
        %v2365 = vpack.c.b16 %v2347, %v2346
        %v2366 = vpack.c.b16 %v2349, %v2348
        %v2367 = vpack.c.b16 %v2351, %v2350
        %v2368 = vpack.c.b16 %v2353, %v2352
        %v2370 = vshrl.u32 %v2354, 16
        %v2372 = vshll.u32 %v2354, 16
        %v2374 = vrot.slane %v2372, 1
        %v2375 = vor.u32 %v2370, %v2374
        %v2377 = vshrl.u32 %v2355, 16
        %v2379 = vshll.u32 %v2355, 16
        %v2381 = vrot.slane %v2379, 1
        %v2382 = vor.u32 %v2377, %v2381
        %v2384 = vshrl.u32 %v2356, 16
        %v2386 = vshll.u32 %v2356, 16
        %v2388 = vrot.slane %v2386, 1
        %v2389 = vor.u32 %v2384, %v2388
        %v2391 = vshrl.u32 %v2357, 16
        %v2393 = vshll.u32 %v2357, 16
        %v2395 = vrot.slane %v2393, 1
        %v2396 = vor.u32 %v2391, %v2395
        %v2398 = vshrl.u32 %v2358, 16
        %v2400 = vshll.u32 %v2358, 16
        %v2402 = vrot.slane %v2400, 1
        %v2403 = vor.u32 %v2398, %v2402
        %v2405 = vshrl.u32 %v2359, 16
        %v2407 = vshll.u32 %v2359, 16
        %v2409 = vrot.slane %v2407, 1
        %v2410 = vor.u32 %v2405, %v2409
        %v2412 = vshrl.u32 %v2360, 16
        %v2414 = vshll.u32 %v2360, 16
        %v2416 = vrot.slane %v2414, 1
        %v2417 = vor.u32 %v2412, %v2416
        %v2419 = vshrl.u32 %v2361, 16
        %v2421 = vshll.u32 %v2361, 16
        %v2423 = vrot.slane %v2421, 1
        %v2424 = vor.u32 %v2419, %v2423
        %v2426 = vshrl.u32 %v2362, 16
        %v2428 = vshll.u32 %v2362, 16
        %v2430 = vrot.slane %v2428, 1
        %v2431 = vor.u32 %v2426, %v2430
        %v2433 = vshrl.u32 %v2363, 16
        %v2435 = vshll.u32 %v2363, 16
        %v2437 = vrot.slane %v2435, 1
        %v2438 = vor.u32 %v2433, %v2437
        %v2440 = vshrl.u32 %v2364, 16
        %v2442 = vshll.u32 %v2364, 16
        %v2444 = vrot.slane %v2442, 1
        %v2445 = vor.u32 %v2440, %v2444
        %v2447 = vshrl.u32 %v2365, 16
        %v2449 = vshll.u32 %v2365, 16
        %v2451 = vrot.slane %v2449, 1
        %v2452 = vor.u32 %v2447, %v2451
        %v2454 = vshrl.u32 %v2366, 16
        %v2456 = vshll.u32 %v2366, 16
        %v2458 = vrot.slane %v2456, 1
        %v2459 = vor.u32 %v2454, %v2458
        %v2461 = vshrl.u32 %v2367, 16
        %v2463 = vshll.u32 %v2367, 16
        %v2465 = vrot.slane %v2463, 1
        %v2466 = vor.u32 %v2461, %v2465
        %v2468 = vshrl.u32 %v2368, 16
        %v2470 = vshll.u32 %v2368, 16
        %v2472 = vrot.slane %v2470, 1
        %v2473 = vor.u32 %v2468, %v2472
        %v2489 = vld [vmem:[#allocation2 + $0x40] sm:$0xff]
        %v2490 = vsel %vm893, %v2375, %v2489
        %2491 = vst [vmem:[#allocation2 + $0x40] sm:$0xff] %v2490
        %v2492 = vld [vmem:[#allocation2 + $0x88] sm:$0xff]
        %v2493 = vsel %vm893, %v2382, %v2492
        %2494 = vst [vmem:[#allocation2 + $0x88] sm:$0xff] %v2493
        %v2495 = vld [vmem:[#allocation2 + $0xd0] sm:$0xff]
        %v2496 = vsel %vm893, %v2389, %v2495
        %2497 = vst [vmem:[#allocation2 + $0xd0] sm:$0xff] %v2496
        %v2498 = vld [vmem:[#allocation2 + $0x118] sm:$0xff]
        %v2499 = vsel %vm893, %v2396, %v2498
        %2500 = vst [vmem:[#allocation2 + $0x118] sm:$0xff] %v2499
        %v2501 = vld [vmem:[#allocation2 + $0x160] sm:$0xff]
        %v2502 = vsel %vm893, %v2403, %v2501
        %2503 = vst [vmem:[#allocation2 + $0x160] sm:$0xff] %v2502
        %v2504 = vld [vmem:[#allocation2 + $0x1a8] sm:$0xff]
        %v2505 = vsel %vm893, %v2410, %v2504
        %2506 = vst [vmem:[#allocation2 + $0x1a8] sm:$0xff] %v2505
        %v2507 = vld [vmem:[#allocation2 + $0x1f0] sm:$0xff]
        %v2508 = vsel %vm893, %v2417, %v2507
        %2509 = vst [vmem:[#allocation2 + $0x1f0] sm:$0xff] %v2508
        %v2510 = vld [vmem:[#allocation2 + $0x238] sm:$0xff]
        %v2511 = vsel %vm893, %v2424, %v2510
        %2512 = vst [vmem:[#allocation2 + $0x238] sm:$0xff] %v2511
        %v2513 = vld [vmem:[#allocation2 + $0x280] sm:$0xff]
        %v2514 = vsel %vm893, %v2431, %v2513
        %2515 = vst [vmem:[#allocation2 + $0x280] sm:$0xff] %v2514
        %v2516 = vld [vmem:[#allocation2 + $0x2c8] sm:$0xff]
        %v2517 = vsel %vm893, %v2438, %v2516
        %2518 = vst [vmem:[#allocation2 + $0x2c8] sm:$0xff] %v2517
        %v2519 = vld [vmem:[#allocation2 + $0x310] sm:$0xff]
        %v2520 = vsel %vm893, %v2445, %v2519
        %2521 = vst [vmem:[#allocation2 + $0x310] sm:$0xff] %v2520
        %v2522 = vld [vmem:[#allocation2 + $0x358] sm:$0xff]
        %v2523 = vsel %vm893, %v2452, %v2522
        %2524 = vst [vmem:[#allocation2 + $0x358] sm:$0xff] %v2523
        %v2525 = vld [vmem:[#allocation2 + $0x3a0] sm:$0xff]
        %v2526 = vsel %vm893, %v2459, %v2525
        %2527 = vst [vmem:[#allocation2 + $0x3a0] sm:$0xff] %v2526
        %v2528 = vld [vmem:[#allocation2 + $0x3e8] sm:$0xff]
        %v2529 = vsel %vm893, %v2466, %v2528
        %2530 = vst [vmem:[#allocation2 + $0x3e8] sm:$0xff] %v2529
        %v2531 = vld [vmem:[#allocation2 + $0x430] sm:$0xff]
        %v2532 = vsel %vm893, %v2473, %v2531
        %2533 = vst [vmem:[#allocation2 + $0x430] sm:$0xff] %v2532
        %2534 = vst [vmem:[%s2078 + $0x40] sm:$0xff] 0
        %v2535 = vld [vmem:[#allocation2 + $0x40] sm:$0x80]
        %v2536 = vsel %vm942, 0, %v2535
        %2537 = vst [vmem:[#allocation2 + $0x40] sm:$0x80] %v2536
        %v2538 = vld [vmem:[#allocation2 + $0x88] sm:$0x80]
        %v2539 = vsel %vm942, 0, %v2538
        %2540 = vst [vmem:[#allocation2 + $0x88] sm:$0x80] %v2539
        %v2541 = vld [vmem:[#allocation2 + $0xd0] sm:$0x80]
        %v2542 = vsel %vm942, 0, %v2541
        %2543 = vst [vmem:[#allocation2 + $0xd0] sm:$0x80] %v2542
        %v2544 = vld [vmem:[#allocation2 + $0x118] sm:$0x80]
        %v2545 = vsel %vm942, 0, %v2544
        %2546 = vst [vmem:[#allocation2 + $0x118] sm:$0x80] %v2545
        %v2547 = vld [vmem:[#allocation2 + $0x160] sm:$0x80]
        %v2548 = vsel %vm942, 0, %v2547
        %2549 = vst [vmem:[#allocation2 + $0x160] sm:$0x80] %v2548
        %v2550 = vld [vmem:[#allocation2 + $0x1a8] sm:$0x80]
        %v2551 = vsel %vm942, 0, %v2550
        %2552 = vst [vmem:[#allocation2 + $0x1a8] sm:$0x80] %v2551
        %v2553 = vld [vmem:[#allocation2 + $0x1f0] sm:$0x80]
        %v2554 = vsel %vm942, 0, %v2553
        %2555 = vst [vmem:[#allocation2 + $0x1f0] sm:$0x80] %v2554
        %v2556 = vld [vmem:[#allocation2 + $0x238] sm:$0x80]
        %v2557 = vsel %vm942, 0, %v2556
        %2558 = vst [vmem:[#allocation2 + $0x238] sm:$0x80] %v2557
        %v2559 = vld [vmem:[#allocation2 + $0x280] sm:$0x80]
        %v2560 = vsel %vm942, 0, %v2559
        %2561 = vst [vmem:[#allocation2 + $0x280] sm:$0x80] %v2560
        %v2562 = vld [vmem:[#allocation2 + $0x2c8] sm:$0x80]
        %v2563 = vsel %vm942, 0, %v2562
        %2564 = vst [vmem:[#allocation2 + $0x2c8] sm:$0x80] %v2563
        %v2565 = vld [vmem:[#allocation2 + $0x310] sm:$0x80]
        %v2566 = vsel %vm942, 0, %v2565
        %2567 = vst [vmem:[#allocation2 + $0x310] sm:$0x80] %v2566
        %v2568 = vld [vmem:[#allocation2 + $0x358] sm:$0x80]
        %v2569 = vsel %vm942, 0, %v2568
        %2570 = vst [vmem:[#allocation2 + $0x358] sm:$0x80] %v2569
        %v2571 = vld [vmem:[#allocation2 + $0x3a0] sm:$0x80]
        %v2572 = vsel %vm942, 0, %v2571
        %2573 = vst [vmem:[#allocation2 + $0x3a0] sm:$0x80] %v2572
        %v2574 = vld [vmem:[#allocation2 + $0x3e8] sm:$0x80]
        %v2575 = vsel %vm942, 0, %v2574
        %2576 = vst [vmem:[#allocation2 + $0x3e8] sm:$0x80] %v2575
        %v2577 = vld [vmem:[#allocation2 + $0x430] sm:$0x80]
        %v2578 = vsel %vm942, 0, %v2577
        %2579 = vst [vmem:[#allocation2 + $0x430] sm:$0x80] %v2578
        %v2580 = vld [vmem:[#allocation2 + $0x478] sm:$0x80]
        %v2581 = vsel %vm942, 0, %v2580
        %2582 = vst [vmem:[#allocation2 + $0x478] sm:$0x80] %v2581
        %v2583 = vld [vmem:[#allocation2] sm:$0xff]
        %v2584 = vld [vmem:[#allocation2 + $0x8] sm:$0xff]
        %v2585 = vld [vmem:[#allocation2 + $0x10] sm:$0xff]
        %v2586 = vld [vmem:[#allocation2 + $0x18] sm:$0xff]
        %v2587 = vld [vmem:[#allocation2 + $0x20] sm:$0xff]
        %v2588 = vld [vmem:[#allocation2 + $0x28] sm:$0xff]
        %v2589 = vld [vmem:[#allocation2 + $0x30] sm:$0xff]
        %v2590 = vld [vmem:[#allocation2 + $0x38] sm:$0xff]
        %v2591 = vld [vmem:[#allocation2 + $0x40] sm:$0xff]
        %v2592 = vld [vmem:[#allocation2 + $0x48] sm:$0xff]
        %v2593 = vld [vmem:[#allocation2 + $0x50] sm:$0xff]
        %v2594 = vld [vmem:[#allocation2 + $0x58] sm:$0xff]
        %v2595 = vld [vmem:[#allocation2 + $0x60] sm:$0xff]
        %v2596 = vld [vmem:[#allocation2 + $0x68] sm:$0xff]
        %v2597 = vld [vmem:[#allocation2 + $0x70] sm:$0xff]
        %v2598 = vld [vmem:[#allocation2 + $0x78] sm:$0xff]
        %v2599 = vld [vmem:[#allocation2 + $0x80] sm:$0xff]
        %v2600 = vld [vmem:[#allocation2 + $0x88] sm:$0xff]
        %v2601 = vld [vmem:[#allocation2 + $0x90] sm:$0xff]
        %v2602 = vld [vmem:[#allocation2 + $0x98] sm:$0xff]
        %v2603 = vld [vmem:[#allocation2 + $0xa0] sm:$0xff]
        %v2604 = vld [vmem:[#allocation2 + $0xa8] sm:$0xff]
        %v2605 = vld [vmem:[#allocation2 + $0xb0] sm:$0xff]
        %v2606 = vld [vmem:[#allocation2 + $0xb8] sm:$0xff]
        %v2607 = vld [vmem:[#allocation2 + $0xc0] sm:$0xff]
        %v2608 = vld [vmem:[#allocation2 + $0xc8] sm:$0xff]
        %v2609 = vld [vmem:[#allocation2 + $0xd0] sm:$0xff]
        %v2610 = vld [vmem:[#allocation2 + $0xd8] sm:$0xff]
        %v2611 = vld [vmem:[#allocation2 + $0xe0] sm:$0xff]
        %v2612 = vld [vmem:[#allocation2 + $0xe8] sm:$0xff]
        %v2613 = vld [vmem:[#allocation2 + $0xf0] sm:$0xff]
        %v2614 = vld [vmem:[#allocation2 + $0xf8] sm:$0xff]
        %v2615 = vld [vmem:[#allocation2 + $0x100] sm:$0xff]
        %v2616 = vld [vmem:[#allocation2 + $0x108] sm:$0xff]
        %v2617 = vld [vmem:[#allocation2 + $0x110] sm:$0xff]
        %v2618 = vld [vmem:[#allocation2 + $0x118] sm:$0xff]
        %v2619 = vld [vmem:[#allocation2 + $0x120] sm:$0xff]
        %v2620 = vld [vmem:[#allocation2 + $0x128] sm:$0xff]
        %v2621 = vld [vmem:[#allocation2 + $0x130] sm:$0xff]
        %v2622 = vld [vmem:[#allocation2 + $0x138] sm:$0xff]
        %v2623 = vld [vmem:[#allocation2 + $0x140] sm:$0xff]
        %v2624 = vld [vmem:[#allocation2 + $0x148] sm:$0xff]
        %v2625 = vld [vmem:[#allocation2 + $0x150] sm:$0xff]
        %v2626 = vld [vmem:[#allocation2 + $0x158] sm:$0xff]
        %v2627 = vld [vmem:[#allocation2 + $0x160] sm:$0xff]
        %v2628 = vld [vmem:[#allocation2 + $0x168] sm:$0xff]
        %v2629 = vld [vmem:[#allocation2 + $0x170] sm:$0xff]
        %v2630 = vld [vmem:[#allocation2 + $0x178] sm:$0xff]
        %v2631 = vld [vmem:[#allocation2 + $0x180] sm:$0xff]
        %v2632 = vld [vmem:[#allocation2 + $0x188] sm:$0xff]
        %v2633 = vld [vmem:[#allocation2 + $0x190] sm:$0xff]
        %v2634 = vld [vmem:[#allocation2 + $0x198] sm:$0xff]
        %v2635 = vld [vmem:[#allocation2 + $0x1a0] sm:$0xff]
        %v2636 = vld [vmem:[#allocation2 + $0x1a8] sm:$0xff]
        %v2637 = vld [vmem:[#allocation2 + $0x1b0] sm:$0xff]
        %v2638 = vld [vmem:[#allocation2 + $0x1b8] sm:$0xff]
        %v2639 = vld [vmem:[#allocation2 + $0x1c0] sm:$0xff]
        %v2640 = vld [vmem:[#allocation2 + $0x1c8] sm:$0xff]
        %v2641 = vld [vmem:[#allocation2 + $0x1d0] sm:$0xff]
        %v2642 = vld [vmem:[#allocation2 + $0x1d8] sm:$0xff]
        %v2643 = vld [vmem:[#allocation2 + $0x1e0] sm:$0xff]
        %v2644 = vld [vmem:[#allocation2 + $0x1e8] sm:$0xff]
        %v2645 = vld [vmem:[#allocation2 + $0x1f0] sm:$0xff]
        %v2646 = vld [vmem:[#allocation2 + $0x1f8] sm:$0xff]
        %v2647 = vld [vmem:[#allocation2 + $0x200] sm:$0xff]
        %v2648 = vld [vmem:[#allocation2 + $0x208] sm:$0xff]
        %v2649 = vld [vmem:[#allocation2 + $0x210] sm:$0xff]
        %v2650 = vld [vmem:[#allocation2 + $0x218] sm:$0xff]
        %v2651 = vld [vmem:[#allocation2 + $0x220] sm:$0xff]
        %v2652 = vld [vmem:[#allocation2 + $0x228] sm:$0xff]
        %v2653 = vld [vmem:[#allocation2 + $0x230] sm:$0xff]
        %v2654 = vld [vmem:[#allocation2 + $0x238] sm:$0xff]
        %v2655 = vld [vmem:[#allocation2 + $0x240] sm:$0xff]
        %v2656 = vld [vmem:[#allocation2 + $0x248] sm:$0xff]
        %v2657 = vld [vmem:[#allocation2 + $0x250] sm:$0xff]
        %v2658 = vld [vmem:[#allocation2 + $0x258] sm:$0xff]
        %v2659 = vld [vmem:[#allocation2 + $0x260] sm:$0xff]
        %v2660 = vld [vmem:[#allocation2 + $0x268] sm:$0xff]
        %v2661 = vld [vmem:[#allocation2 + $0x270] sm:$0xff]
        %v2662 = vld [vmem:[#allocation2 + $0x278] sm:$0xff]
        %v2663 = vld [vmem:[#allocation2 + $0x280] sm:$0xff]
        %v2664 = vld [vmem:[#allocation2 + $0x288] sm:$0xff]
        %v2665 = vld [vmem:[#allocation2 + $0x290] sm:$0xff]
        %v2666 = vld [vmem:[#allocation2 + $0x298] sm:$0xff]
        %v2667 = vld [vmem:[#allocation2 + $0x2a0] sm:$0xff]
        %v2668 = vld [vmem:[#allocation2 + $0x2a8] sm:$0xff]
        %v2669 = vld [vmem:[#allocation2 + $0x2b0] sm:$0xff]
        %v2670 = vld [vmem:[#allocation2 + $0x2b8] sm:$0xff]
        %v2671 = vld [vmem:[#allocation2 + $0x2c0] sm:$0xff]
        %v2672 = vld [vmem:[#allocation2 + $0x2c8] sm:$0xff]
        %v2673 = vld [vmem:[#allocation2 + $0x2d0] sm:$0xff]
        %v2674 = vld [vmem:[#allocation2 + $0x2d8] sm:$0xff]
        %v2675 = vld [vmem:[#allocation2 + $0x2e0] sm:$0xff]
        %v2676 = vld [vmem:[#allocation2 + $0x2e8] sm:$0xff]
        %v2677 = vld [vmem:[#allocation2 + $0x2f0] sm:$0xff]
        %v2678 = vld [vmem:[#allocation2 + $0x2f8] sm:$0xff]
        %v2679 = vld [vmem:[#allocation2 + $0x300] sm:$0xff]
        %v2680 = vld [vmem:[#allocation2 + $0x308] sm:$0xff]
        %v2681 = vld [vmem:[#allocation2 + $0x310] sm:$0xff]
        %v2682 = vld [vmem:[#allocation2 + $0x318] sm:$0xff]
        %v2683 = vld [vmem:[#allocation2 + $0x320] sm:$0xff]
        %v2684 = vld [vmem:[#allocation2 + $0x328] sm:$0xff]
        %v2685 = vld [vmem:[#allocation2 + $0x330] sm:$0xff]
        %v2686 = vld [vmem:[#allocation2 + $0x338] sm:$0xff]
        %v2687 = vld [vmem:[#allocation2 + $0x340] sm:$0xff]
        %v2688 = vld [vmem:[#allocation2 + $0x348] sm:$0xff]
        %v2689 = vld [vmem:[#allocation2 + $0x350] sm:$0xff]
        %v2690 = vld [vmem:[#allocation2 + $0x358] sm:$0xff]
        %v2691 = vld [vmem:[#allocation2 + $0x360] sm:$0xff]
        %v2692 = vld [vmem:[#allocation2 + $0x368] sm:$0xff]
        %v2693 = vld [vmem:[#allocation2 + $0x370] sm:$0xff]
        %v2694 = vld [vmem:[#allocation2 + $0x378] sm:$0xff]
        %v2695 = vld [vmem:[#allocation2 + $0x380] sm:$0xff]
        %v2696 = vld [vmem:[#allocation2 + $0x388] sm:$0xff]
        %v2697 = vld [vmem:[#allocation2 + $0x390] sm:$0xff]
        %v2698 = vld [vmem:[#allocation2 + $0x398] sm:$0xff]
        %v2699 = vld [vmem:[#allocation2 + $0x3a0] sm:$0xff]
        %v2700 = vld [vmem:[#allocation2 + $0x3a8] sm:$0xff]
        %v2701 = vld [vmem:[#allocation2 + $0x3b0] sm:$0xff]
        %v2702 = vld [vmem:[#allocation2 + $0x3b8] sm:$0xff]
        %v2703 = vld [vmem:[#allocation2 + $0x3c0] sm:$0xff]
        %v2704 = vld [vmem:[#allocation2 + $0x3c8] sm:$0xff]
        %v2705 = vld [vmem:[#allocation2 + $0x3d0] sm:$0xff]
        %v2706 = vld [vmem:[#allocation2 + $0x3d8] sm:$0xff]
        %v2707 = vld [vmem:[#allocation2 + $0x3e0] sm:$0xff]
        %v2708 = vld [vmem:[#allocation2 + $0x3e8] sm:$0xff]
        %v2709 = vld [vmem:[#allocation2 + $0x3f0] sm:$0xff]
        %v2710 = vld [vmem:[#allocation2 + $0x3f8] sm:$0xff]
        %v2711 = vld [vmem:[#allocation2 + $0x400] sm:$0xff]
        %v2712 = vld [vmem:[#allocation2 + $0x408] sm:$0xff]
        %v2713 = vld [vmem:[#allocation2 + $0x410] sm:$0xff]
        %v2714 = vld [vmem:[#allocation2 + $0x418] sm:$0xff]
        %v2715 = vld [vmem:[#allocation2 + $0x420] sm:$0xff]
        %v2716 = vld [vmem:[#allocation2 + $0x428] sm:$0xff]
        %v2717 = vld [vmem:[#allocation2 + $0x430] sm:$0xff]
        %v2718 = vld [vmem:[#allocation2 + $0x438] sm:$0xff]
        %v2719 = vld [vmem:[#allocation2 + $0x440] sm:$0xff]
        %v2720 = vld [vmem:[#allocation2 + $0x448] sm:$0xff]
        %v2721 = vld [vmem:[#allocation2 + $0x450] sm:$0xff]
        %v2722 = vld [vmem:[#allocation2 + $0x458] sm:$0xff]
        %v2723 = vld [vmem:[#allocation2 + $0x460] sm:$0xff]
        %v2724 = vld [vmem:[#allocation2 + $0x468] sm:$0xff]
        %v2725 = vld [vmem:[#allocation2 + $0x470] sm:$0xff]
        %v2726 = vld [vmem:[#allocation2 + $0x478] sm:$0xff]
        %v2727 = vld [vmem:[#allocation6] sm:$0xf]
        %v2728 = vld [vmem:[#allocation6 + $0x4] sm:$0xf]
        %v2729 = vld [vmem:[#allocation6 + $0x8] sm:$0xf]
        %v2730 = vld [vmem:[#allocation6 + $0xc] sm:$0xf]
        %v2731 = vld [vmem:[#allocation6 + $0x10] sm:$0xf]
        %v2732 = vld [vmem:[#allocation6 + $0x14] sm:$0xf]
        %v2733 = vld [vmem:[#allocation6 + $0x18] sm:$0xf]
        %v2734 = vld [vmem:[#allocation6 + $0x1c] sm:$0xf]
        %v2735 = vld [vmem:[#allocation6 + $0x20] sm:$0xf]
        %v2736 = vld [vmem:[#allocation6 + $0x24] sm:$0xf]
        %v2737 = vld [vmem:[#allocation6 + $0x28] sm:$0xf]
        %v2738 = vld [vmem:[#allocation6 + $0x2c] sm:$0xf]
        %v2739 = vld [vmem:[#allocation6 + $0x30] sm:$0xf]
        %v2740 = vld [vmem:[#allocation6 + $0x34] sm:$0xf]
        %v2741 = vld [vmem:[#allocation6 + $0x38] sm:$0xf]
        %v2742 = vld [vmem:[#allocation6 + $0x3c] sm:$0xf]
        %v2743 = vld [vmem:[#allocation6 + $0x40] sm:$0xf]
        %v2744 = vld [vmem:[#allocation6 + $0x44] sm:$0xf]
        %v2745 = vld [vmem:[#allocation6 + $0x48] sm:$0xf]
        %v2746 = vld [vmem:[#allocation6 + $0x4c] sm:$0xf]
        %v2747 = vld [vmem:[#allocation6 + $0x50] sm:$0xf]
        %v2748 = vld [vmem:[#allocation6 + $0x54] sm:$0xf]
        %v2749 = vld [vmem:[#allocation6 + $0x58] sm:$0xf]
        %v2750 = vld [vmem:[#allocation6 + $0x5c] sm:$0xf]
        %v2751 = vld [vmem:[#allocation6 + $0x60] sm:$0xf]
        %v2752 = vld [vmem:[#allocation6 + $0x64] sm:$0xf]
        %v2753 = vld [vmem:[#allocation6 + $0x68] sm:$0xf]
        %v2754 = vld [vmem:[#allocation6 + $0x6c] sm:$0xf]
        %v2755 = vld [vmem:[#allocation6 + $0x70] sm:$0xf]
        %v2756 = vld [vmem:[#allocation6 + $0x74] sm:$0xf]
        %v2757 = vld [vmem:[#allocation6 + $0x78] sm:$0xf]
        %v2758 = vld [vmem:[#allocation6 + $0x7c] sm:$0xf]
        %v2759 = vld [vmem:[#allocation6 + $0x80] sm:$0xf]
        %v2760 = vld [vmem:[#allocation6 + $0x84] sm:$0xf]
        %v2761 = vld [vmem:[#allocation6 + $0x88] sm:$0xf]
        %v2762 = vld [vmem:[#allocation6 + $0x8c] sm:$0xf]
        %v2763 = vld [vmem:[#allocation6 + $0x90] sm:$0xf]
        %v2764 = vld [vmem:[#allocation6 + $0x94] sm:$0xf]
        %v2765 = vld [vmem:[#allocation6 + $0x98] sm:$0xf]
        %v2766 = vld [vmem:[#allocation6 + $0x9c] sm:$0xf]
        %v2767 = vld [vmem:[#allocation6 + $0xa0] sm:$0xf]
        %v2768 = vld [vmem:[#allocation6 + $0xa4] sm:$0xf]
        %v2769 = vld [vmem:[#allocation6 + $0xa8] sm:$0xf]
        %v2770 = vld [vmem:[#allocation6 + $0xac] sm:$0xf]
        %v2771 = vld [vmem:[#allocation6 + $0xb0] sm:$0xf]
        %v2772 = vld [vmem:[#allocation6 + $0xb4] sm:$0xf]
        %v2773 = vld [vmem:[#allocation6 + $0xb8] sm:$0xf]
        %v2774 = vld [vmem:[#allocation6 + $0xbc] sm:$0xf]
        %v2775 = vld [vmem:[#allocation6 + $0xc0] sm:$0xf]
        %v2776 = vld [vmem:[#allocation6 + $0xc4] sm:$0xf]
        %v2777 = vld [vmem:[#allocation6 + $0xc8] sm:$0xf]
        %v2778 = vld [vmem:[#allocation6 + $0xcc] sm:$0xf]
        %v2779 = vld [vmem:[#allocation6 + $0xd0] sm:$0xf]
        %v2780 = vld [vmem:[#allocation6 + $0xd4] sm:$0xf]
        %v2781 = vld [vmem:[#allocation6 + $0xd8] sm:$0xf]
        %v2782 = vld [vmem:[#allocation6 + $0xdc] sm:$0xf]
        %v2783 = vld [vmem:[#allocation6 + $0xe0] sm:$0xf]
        %v2784 = vld [vmem:[#allocation6 + $0xe4] sm:$0xf]
        %v2785 = vld [vmem:[#allocation6 + $0xe8] sm:$0xf]
        %v2786 = vld [vmem:[#allocation6 + $0xec] sm:$0xf]
        %v2787 = vld [vmem:[#allocation6 + $0xf0] sm:$0xf]
        %v2788 = vld [vmem:[#allocation6 + $0xf4] sm:$0xf]
        %v2789 = vld [vmem:[#allocation6 + $0xf8] sm:$0xf]
        %v2790 = vld [vmem:[#allocation6 + $0xfc] sm:$0xf]
        %v2791 = vld [vmem:[#allocation6 + $0x100] sm:$0xf]
        %v2792 = vld [vmem:[#allocation6 + $0x104] sm:$0xf]
        %v2793 = vld [vmem:[#allocation6 + $0x108] sm:$0xf]
        %v2794 = vld [vmem:[#allocation6 + $0x10c] sm:$0xf]
        %v2795 = vld [vmem:[#allocation6 + $0x110] sm:$0xf]
        %v2796 = vld [vmem:[#allocation6 + $0x114] sm:$0xf]
        %v2797 = vld [vmem:[#allocation6 + $0x118] sm:$0xf]
        %v2798 = vld [vmem:[#allocation6 + $0x11c] sm:$0xf]
        %v2799 = vld [vmem:[#allocation6 + $0x120] sm:$0xf]
        %v2800 = vld [vmem:[#allocation6 + $0x124] sm:$0xf]
        %v2801 = vld [vmem:[#allocation6 + $0x128] sm:$0xf]
        %v2802 = vld [vmem:[#allocation6 + $0x12c] sm:$0xf]
        %v2803 = vld [vmem:[#allocation6 + $0x130] sm:$0xf]
        %v2804 = vld [vmem:[#allocation6 + $0x134] sm:$0xf]
        %v2805 = vld [vmem:[#allocation6 + $0x138] sm:$0xf]
        %v2806 = vld [vmem:[#allocation6 + $0x13c] sm:$0xf]
        %v2807 = vld [vmem:[#allocation6 + $0x140] sm:$0xf]
        %v2808 = vld [vmem:[#allocation6 + $0x144] sm:$0xf]
        %v2809 = vld [vmem:[#allocation6 + $0x148] sm:$0xf]
        %v2810 = vld [vmem:[#allocation6 + $0x14c] sm:$0xf]
        %v2811 = vld [vmem:[#allocation6 + $0x150] sm:$0xf]
        %v2812 = vld [vmem:[#allocation6 + $0x154] sm:$0xf]
        %v2813 = vld [vmem:[#allocation6 + $0x158] sm:$0xf]
        %v2814 = vld [vmem:[#allocation6 + $0x15c] sm:$0xf]
        %v2815 = vld [vmem:[#allocation6 + $0x160] sm:$0xf]
        %v2816 = vld [vmem:[#allocation6 + $0x164] sm:$0xf]
        %v2817 = vld [vmem:[#allocation6 + $0x168] sm:$0xf]
        %v2818 = vld [vmem:[#allocation6 + $0x16c] sm:$0xf]
        %v2819 = vld [vmem:[#allocation6 + $0x170] sm:$0xf]
        %v2820 = vld [vmem:[#allocation6 + $0x174] sm:$0xf]
        %v2821 = vld [vmem:[#allocation6 + $0x178] sm:$0xf]
        %v2822 = vld [vmem:[#allocation6 + $0x17c] sm:$0xf]
        %v2823 = vld [vmem:[#allocation6 + $0x180] sm:$0xf]
        %v2824 = vld [vmem:[#allocation6 + $0x184] sm:$0xf]
        %v2825 = vld [vmem:[#allocation6 + $0x188] sm:$0xf]
        %v2826 = vld [vmem:[#allocation6 + $0x18c] sm:$0xf]
        %v2827 = vld [vmem:[#allocation6 + $0x190] sm:$0xf]
        %v2828 = vld [vmem:[#allocation6 + $0x194] sm:$0xf]
        %v2829 = vld [vmem:[#allocation6 + $0x198] sm:$0xf]
        %v2830 = vld [vmem:[#allocation6 + $0x19c] sm:$0xf]
        %v2831 = vld [vmem:[#allocation6 + $0x1a0] sm:$0xf]
        %v2832 = vld [vmem:[#allocation6 + $0x1a4] sm:$0xf]
        %v2833 = vld [vmem:[#allocation6 + $0x1a8] sm:$0xf]
        %v2834 = vld [vmem:[#allocation6 + $0x1ac] sm:$0xf]
        %v2835 = vld [vmem:[#allocation6 + $0x1b0] sm:$0xf]
        %v2836 = vld [vmem:[#allocation6 + $0x1b4] sm:$0xf]
        %v2837 = vld [vmem:[#allocation6 + $0x1b8] sm:$0xf]
        %v2838 = vld [vmem:[#allocation6 + $0x1bc] sm:$0xf]
        %v2839 = vld [vmem:[#allocation6 + $0x1c0] sm:$0xf]
        %v2840 = vld [vmem:[#allocation6 + $0x1c4] sm:$0xf]
        %v2841 = vld [vmem:[#allocation6 + $0x1c8] sm:$0xf]
        %v2842 = vld [vmem:[#allocation6 + $0x1cc] sm:$0xf]
        %v2843 = vld [vmem:[#allocation6 + $0x1d0] sm:$0xf]
        %v2844 = vld [vmem:[#allocation6 + $0x1d4] sm:$0xf]
        %v2845 = vld [vmem:[#allocation6 + $0x1d8] sm:$0xf]
        %v2846 = vld [vmem:[#allocation6 + $0x1dc] sm:$0xf]
        %v2847 = vld [vmem:[#allocation6 + $0x1e0] sm:$0xf]
        %v2848 = vld [vmem:[#allocation6 + $0x1e4] sm:$0xf]
        %v2849 = vld [vmem:[#allocation6 + $0x1e8] sm:$0xf]
        %v2850 = vld [vmem:[#allocation6 + $0x1ec] sm:$0xf]
        %v2851 = vld [vmem:[#allocation6 + $0x1f0] sm:$0xf]
        %v2852 = vld [vmem:[#allocation6 + $0x1f4] sm:$0xf]
        %v2853 = vld [vmem:[#allocation6 + $0x1f8] sm:$0xf]
        %v2854 = vld [vmem:[#allocation6 + $0x1fc] sm:$0xf]
        %v2855 = vld [vmem:[#allocation6 + $0x200] sm:$0xf]
        %v2856 = vld [vmem:[#allocation6 + $0x204] sm:$0xf]
        %v2857 = vld [vmem:[#allocation6 + $0x208] sm:$0xf]
        %v2858 = vld [vmem:[#allocation6 + $0x20c] sm:$0xf]
        %v2859 = vld [vmem:[#allocation6 + $0x210] sm:$0xf]
        %v2860 = vld [vmem:[#allocation6 + $0x214] sm:$0xf]
        %v2861 = vld [vmem:[#allocation6 + $0x218] sm:$0xf]
        %v2862 = vld [vmem:[#allocation6 + $0x21c] sm:$0xf]
        %v2863 = vld [vmem:[#allocation6 + $0x220] sm:$0xf]
        %v2864 = vld [vmem:[#allocation6 + $0x224] sm:$0xf]
        %v2865 = vld [vmem:[#allocation6 + $0x228] sm:$0xf]
        %v2866 = vld [vmem:[#allocation6 + $0x22c] sm:$0xf]
        %v2867 = vld [vmem:[#allocation6 + $0x230] sm:$0xf]
        %v2868 = vld [vmem:[#allocation6 + $0x234] sm:$0xf]
        %v2869 = vld [vmem:[#allocation6 + $0x238] sm:$0xf]
        %v2870 = vld [vmem:[#allocation6 + $0x23c] sm:$0xf]
        %v2871 = vld [vmem:[%s2] sm:$0x1]
        %v2873 = vlaneseq
        %v2874 = vshrl.u32 %v2873, 7
        %v2875 = vsub.s32 0, %v2874
        %v2876 = vrot.slane %v2871, %v2875
        %v3022 = vunpack.c.l.b16 %v2727
        %v3023 = vunpack.c.l.b16 %v2728
        %v3024 = vunpack.c.l.b16 %v2729
        %v3025 = vunpack.c.l.b16 %v2730
        %v3026 = vunpack.c.l.b16 %v2731
        %v3027 = vunpack.c.l.b16 %v2732
        %v3028 = vunpack.c.l.b16 %v2733
        %v3029 = vunpack.c.l.b16 %v2734
        %v3030 = vunpack.c.l.b16 %v2735
        %v3031 = vunpack.c.l.b16 %v2736
        %v3032 = vunpack.c.l.b16 %v2737
        %v3033 = vunpack.c.l.b16 %v2738
        %v3034 = vunpack.c.l.b16 %v2739
        %v3035 = vunpack.c.l.b16 %v2740
        %v3036 = vunpack.c.l.b16 %v2741
        %v3037 = vunpack.c.l.b16 %v2742
        %v3038 = vunpack.c.l.b16 %v2743
        %v3039 = vunpack.c.l.b16 %v2744
        %v3040 = vunpack.c.l.b16 %v2745
        %v3041 = vunpack.c.l.b16 %v2746
        %v3042 = vunpack.c.l.b16 %v2747
        %v3043 = vunpack.c.l.b16 %v2748
        %v3044 = vunpack.c.l.b16 %v2749
        %v3045 = vunpack.c.l.b16 %v2750
        %v3046 = vunpack.c.l.b16 %v2751
        %v3047 = vunpack.c.l.b16 %v2752
        %v3048 = vunpack.c.l.b16 %v2753
        %v3049 = vunpack.c.l.b16 %v2754
        %v3050 = vunpack.c.l.b16 %v2755
        %v3051 = vunpack.c.l.b16 %v2756
        %v3052 = vunpack.c.l.b16 %v2757
        %v3053 = vunpack.c.l.b16 %v2758
        %v3054 = vunpack.c.l.b16 %v2759
        %v3055 = vunpack.c.l.b16 %v2760
        %v3056 = vunpack.c.l.b16 %v2761
        %v3057 = vunpack.c.l.b16 %v2762
        %v3058 = vunpack.c.l.b16 %v2763
        %v3059 = vunpack.c.l.b16 %v2764
        %v3060 = vunpack.c.l.b16 %v2765
        %v3061 = vunpack.c.l.b16 %v2766
        %v3062 = vunpack.c.l.b16 %v2767
        %v3063 = vunpack.c.l.b16 %v2768
        %v3064 = vunpack.c.l.b16 %v2769
        %v3065 = vunpack.c.l.b16 %v2770
        %v3066 = vunpack.c.l.b16 %v2771
        %v3067 = vunpack.c.l.b16 %v2772
        %v3068 = vunpack.c.l.b16 %v2773
        %v3069 = vunpack.c.l.b16 %v2774
        %v3070 = vunpack.c.l.b16 %v2775
        %v3071 = vunpack.c.l.b16 %v2776
        %v3072 = vunpack.c.l.b16 %v2777
        %v3073 = vunpack.c.l.b16 %v2778
        %v3074 = vunpack.c.l.b16 %v2779
        %v3075 = vunpack.c.l.b16 %v2780
        %v3076 = vunpack.c.l.b16 %v2781
        %v3077 = vunpack.c.l.b16 %v2782
        %v3078 = vunpack.c.l.b16 %v2783
        %v3079 = vunpack.c.l.b16 %v2784
        %v3080 = vunpack.c.l.b16 %v2785
        %v3081 = vunpack.c.l.b16 %v2786
        %v3082 = vunpack.c.l.b16 %v2787
        %v3083 = vunpack.c.l.b16 %v2788
        %v3084 = vunpack.c.l.b16 %v2789
        %v3085 = vunpack.c.l.b16 %v2790
        %v3086 = vunpack.c.l.b16 %v2791
        %v3087 = vunpack.c.l.b16 %v2792
        %v3088 = vunpack.c.l.b16 %v2793
        %v3089 = vunpack.c.l.b16 %v2794
        %v3090 = vunpack.c.l.b16 %v2795
        %v3091 = vunpack.c.l.b16 %v2796
        %v3092 = vunpack.c.l.b16 %v2797
        %v3093 = vunpack.c.l.b16 %v2798
        %v3094 = vunpack.c.l.b16 %v2799
        %v3095 = vunpack.c.l.b16 %v2800
        %v3096 = vunpack.c.l.b16 %v2801
        %v3097 = vunpack.c.l.b16 %v2802
        %v3098 = vunpack.c.l.b16 %v2803
        %v3099 = vunpack.c.l.b16 %v2804
        %v3100 = vunpack.c.l.b16 %v2805
        %v3101 = vunpack.c.l.b16 %v2806
        %v3102 = vunpack.c.l.b16 %v2807
        %v3103 = vunpack.c.l.b16 %v2808
        %v3104 = vunpack.c.l.b16 %v2809
        %v3105 = vunpack.c.l.b16 %v2810
        %v3106 = vunpack.c.l.b16 %v2811
        %v3107 = vunpack.c.l.b16 %v2812
        %v3108 = vunpack.c.l.b16 %v2813
        %v3109 = vunpack.c.l.b16 %v2814
        %v3110 = vunpack.c.l.b16 %v2815
        %v3111 = vunpack.c.l.b16 %v2816
        %v3112 = vunpack.c.l.b16 %v2817
        %v3113 = vunpack.c.l.b16 %v2818
        %v3114 = vunpack.c.l.b16 %v2819
        %v3115 = vunpack.c.l.b16 %v2820
        %v3116 = vunpack.c.l.b16 %v2821
        %v3117 = vunpack.c.l.b16 %v2822
        %v3118 = vunpack.c.l.b16 %v2823
        %v3119 = vunpack.c.l.b16 %v2824
        %v3120 = vunpack.c.l.b16 %v2825
        %v3121 = vunpack.c.l.b16 %v2826
        %v3122 = vunpack.c.l.b16 %v2827
        %v3123 = vunpack.c.l.b16 %v2828
        %v3124 = vunpack.c.l.b16 %v2829
        %v3125 = vunpack.c.l.b16 %v2830
        %v3126 = vunpack.c.l.b16 %v2831
        %v3127 = vunpack.c.l.b16 %v2832
        %v3128 = vunpack.c.l.b16 %v2833
        %v3129 = vunpack.c.l.b16 %v2834
        %v3130 = vunpack.c.l.b16 %v2835
        %v3131 = vunpack.c.l.b16 %v2836
        %v3132 = vunpack.c.l.b16 %v2837
        %v3133 = vunpack.c.l.b16 %v2838
        %v3134 = vunpack.c.l.b16 %v2839
        %v3135 = vunpack.c.l.b16 %v2840
        %v3136 = vunpack.c.l.b16 %v2841
        %v3137 = vunpack.c.l.b16 %v2842
        %v3138 = vunpack.c.l.b16 %v2843
        %v3139 = vunpack.c.l.b16 %v2844
        %v3140 = vunpack.c.l.b16 %v2845
        %v3141 = vunpack.c.l.b16 %v2846
        %v3142 = vunpack.c.l.b16 %v2847
        %v3143 = vunpack.c.l.b16 %v2848
        %v3144 = vunpack.c.l.b16 %v2849
        %v3145 = vunpack.c.l.b16 %v2850
        %v3146 = vunpack.c.l.b16 %v2851
        %v3147 = vunpack.c.l.b16 %v2852
        %v3148 = vunpack.c.l.b16 %v2853
        %v3149 = vunpack.c.l.b16 %v2854
        %v3150 = vunpack.c.l.b16 %v2855
        %v3151 = vunpack.c.l.b16 %v2856
        %v3152 = vunpack.c.l.b16 %v2857
        %v3153 = vunpack.c.l.b16 %v2858
        %v3154 = vunpack.c.l.b16 %v2859
        %v3155 = vunpack.c.l.b16 %v2860
        %v3156 = vunpack.c.l.b16 %v2861
        %v3157 = vunpack.c.l.b16 %v2862
        %v3158 = vunpack.c.l.b16 %v2863
        %v3159 = vunpack.c.l.b16 %v2864
        %v3160 = vunpack.c.l.b16 %v2865
        %v3161 = vunpack.c.l.b16 %v2866
        %v3162 = vunpack.c.l.b16 %v2867
        %v3163 = vunpack.c.l.b16 %v2868
        %v3164 = vunpack.c.l.b16 %v2869
        %v3165 = vunpack.c.l.b16 %v2870
        %v3166 = vpack.c.b16 %v3023, %v3022
        %v3167 = vpack.c.b16 %v3025, %v3024
        %v3168 = vpack.c.b16 %v3027, %v3026
        %v3169 = vpack.c.b16 %v3029, %v3028
        %v3170 = vpack.c.b16 %v3031, %v3030
        %v3171 = vpack.c.b16 %v3033, %v3032
        %v3172 = vpack.c.b16 %v3035, %v3034
        %v3173 = vpack.c.b16 %v3037, %v3036
        %v3174 = vpack.c.b16 %v3039, %v3038
        %v3175 = vpack.c.b16 %v3041, %v3040
        %v3176 = vpack.c.b16 %v3043, %v3042
        %v3177 = vpack.c.b16 %v3045, %v3044
        %v3178 = vpack.c.b16 %v3047, %v3046
        %v3179 = vpack.c.b16 %v3049, %v3048
        %v3180 = vpack.c.b16 %v3051, %v3050
        %v3181 = vpack.c.b16 %v3053, %v3052
        %v3182 = vpack.c.b16 %v3055, %v3054
        %v3183 = vpack.c.b16 %v3057, %v3056
        %v3184 = vpack.c.b16 %v3059, %v3058
        %v3185 = vpack.c.b16 %v3061, %v3060
        %v3186 = vpack.c.b16 %v3063, %v3062
        %v3187 = vpack.c.b16 %v3065, %v3064
        %v3188 = vpack.c.b16 %v3067, %v3066
        %v3189 = vpack.c.b16 %v3069, %v3068
        %v3190 = vpack.c.b16 %v3071, %v3070
        %v3191 = vpack.c.b16 %v3073, %v3072
        %v3192 = vpack.c.b16 %v3075, %v3074
        %v3193 = vpack.c.b16 %v3077, %v3076
        %v3194 = vpack.c.b16 %v3079, %v3078
        %v3195 = vpack.c.b16 %v3081, %v3080
        %v3196 = vpack.c.b16 %v3083, %v3082
        %v3197 = vpack.c.b16 %v3085, %v3084
        %v3198 = vpack.c.b16 %v3087, %v3086
        %v3199 = vpack.c.b16 %v3089, %v3088
        %v3200 = vpack.c.b16 %v3091, %v3090
        %v3201 = vpack.c.b16 %v3093, %v3092
        %v3202 = vpack.c.b16 %v3095, %v3094
        %v3203 = vpack.c.b16 %v3097, %v3096
        %v3204 = vpack.c.b16 %v3099, %v3098
        %v3205 = vpack.c.b16 %v3101, %v3100
        %v3206 = vpack.c.b16 %v3103, %v3102
        %v3207 = vpack.c.b16 %v3105, %v3104
        %v3208 = vpack.c.b16 %v3107, %v3106
        %v3209 = vpack.c.b16 %v3109, %v3108
        %v3210 = vpack.c.b16 %v3111, %v3110
        %v3211 = vpack.c.b16 %v3113, %v3112
        %v3212 = vpack.c.b16 %v3115, %v3114
        %v3213 = vpack.c.b16 %v3117, %v3116
        %v3214 = vpack.c.b16 %v3119, %v3118
        %v3215 = vpack.c.b16 %v3121, %v3120
        %v3216 = vpack.c.b16 %v3123, %v3122
        %v3217 = vpack.c.b16 %v3125, %v3124
        %v3218 = vpack.c.b16 %v3127, %v3126
        %v3219 = vpack.c.b16 %v3129, %v3128
        %v3220 = vpack.c.b16 %v3131, %v3130
        %v3221 = vpack.c.b16 %v3133, %v3132
        %v3222 = vpack.c.b16 %v3135, %v3134
        %v3223 = vpack.c.b16 %v3137, %v3136
        %v3224 = vpack.c.b16 %v3139, %v3138
        %v3225 = vpack.c.b16 %v3141, %v3140
        %v3226 = vpack.c.b16 %v3143, %v3142
        %v3227 = vpack.c.b16 %v3145, %v3144
        %v3228 = vpack.c.b16 %v3147, %v3146
        %v3229 = vpack.c.b16 %v3149, %v3148
        %v3230 = vpack.c.b16 %v3151, %v3150
        %v3231 = vpack.c.b16 %v3153, %v3152
        %v3232 = vpack.c.b16 %v3155, %v3154
        %v3233 = vpack.c.b16 %v3157, %v3156
        %v3234 = vpack.c.b16 %v3159, %v3158
        %v3235 = vpack.c.b16 %v3161, %v3160
        %v3236 = vpack.c.b16 %v3163, %v3162
        %v3237 = vpack.c.b16 %v3165, %v3164
        %3310 = vmatprep.subr.bf16.mxu0 0
        %3311 = vmatpush1.bf16.msra.mxu0 %v3166
        %3312 = vmatprep.subr.bf16.mxu0 0
        %3313 = vmatpush1.bf16.msra.mxu0 %v3167
        %3314 = vmatprep.subr.bf16.mxu0 0
        %3315 = vmatpush1.bf16.msra.mxu0 %v3168
        %3316 = vmatprep.subr.bf16.mxu0 0
        %3317 = vmatpush1.bf16.msra.mxu0 %v3169
        %3318 = vmatprep.subr.bf16.mxu0 0
        %3319 = vmatpush1.bf16.msra.mxu0 %v3170
        %3320 = vmatprep.subr.bf16.mxu0 0
        %3321 = vmatpush1.bf16.msra.mxu0 %v3171
        %3322 = vmatprep.subr.bf16.mxu0 0
        %3323 = vmatpush1.bf16.msra.mxu0 %v3172
        %3324 = vmatprep.subr.bf16.mxu0 0
        %3325 = vmatpush1.bf16.msra.mxu0 %v3173
        %3326 = vmatprep.subr.bf16.mxu0 0
        %3327 = vmatpush1.bf16.msra.mxu0 %v3174
        %3328 = vmatprep.subr.bf16.mxu0 0
        %3329 = vmatpush1.bf16.msra.mxu0 %v3175
        %3330 = vmatprep.subr.bf16.mxu0 0
        %3331 = vmatpush1.bf16.msra.mxu0 %v3176
        %3332 = vmatprep.subr.bf16.mxu0 0
        %3333 = vmatpush1.bf16.msra.mxu0 %v3177
        %3334 = vmatprep.subr.bf16.mxu0 0
        %3335 = vmatpush1.bf16.msra.mxu0 %v3178
        %3336 = vmatprep.subr.bf16.mxu0 0
        %3337 = vmatpush1.bf16.msra.mxu0 %v3179
        %3338 = vmatprep.subr.bf16.mxu0 0
        %3339 = vmatpush1.bf16.msra.mxu0 %v3180
        %3340 = vmatprep.subr.bf16.mxu0 0
        %3341 = vmatpush1.bf16.msra.mxu0 %v3181
        %3342 = vmatprep.mubr.bf16.mxu0 %v2584
        %3343 = vmatmul.mubr.bf16.gmra.mrb[0].mxu0 %v2583
        %v3344 = vpop.f32.mrb[0].mxu0
        %v3345 = vadd.f32 %v2876, %v3344
        %v3346 = vpop.f32.mrb[0].mxu0
        %v3347 = vpop.f32.mrb[0].mxu0
        %v3348 = vadd.f32 %v2876, %v3347
        %v3349 = vpop.f32.mrb[0].mxu0
        %3350 = vmatprep.mubr.bf16.mxu0 %v2593
        %3351 = vmatmul.mubr.bf16.gmra.mrb[0].mxu0 %v2592
        %v3352 = vpop.f32.mrb[0].mxu0
        %v3353 = vadd.f32 %v2876, %v3352
        %v3354 = vpop.f32.mrb[0].mxu0
        %v3355 = vpop.f32.mrb[0].mxu0
        %v3356 = vadd.f32 %v2876, %v3355
        %v3357 = vpop.f32.mrb[0].mxu0
        %3358 = vmatprep.mubr.bf16.mxu0 %v2602
        %3359 = vmatmul.mubr.bf16.gmra.mrb[0].mxu0 %v2601
        %v3360 = vpop.f32.mrb[0].mxu0
        %v3361 = vadd.f32 %v2876, %v3360
        %v3362 = vpop.f32.mrb[0].mxu0
        %v3363 = vpop.f32.mrb[0].mxu0
        %v3364 = vadd.f32 %v2876, %v3363
        %v3365 = vpop.f32.mrb[0].mxu0
        %3366 = vmatprep.mubr.bf16.mxu0 %v2611
        %3367 = vmatmul.mubr.bf16.gmra.mrb[0].mxu0 %v2610
        %v3368 = vpop.f32.mrb[0].mxu0
        %v3369 = vadd.f32 %v2876, %v3368
        %v3370 = vpop.f32.mrb[0].mxu0
        %v3371 = vpop.f32.mrb[0].mxu0
        %v3372 = vadd.f32 %v2876, %v3371
        %v3373 = vpop.f32.mrb[0].mxu0
        %3374 = vmatprep.mubr.bf16.mxu0 %v2620
        %3375 = vmatmul.mubr.bf16.gmra.mrb[0].mxu0 %v2619
        %v3376 = vpop.f32.mrb[0].mxu0
        %v3377 = vadd.f32 %v2876, %v3376
        %v3378 = vpop.f32.mrb[0].mxu0
        %v3379 = vpop.f32.mrb[0].mxu0
        %v3380 = vadd.f32 %v2876, %v3379
        %v3381 = vpop.f32.mrb[0].mxu0
        %3382 = vmatprep.mubr.bf16.mxu0 %v2629
        %3383 = vmatmul.mubr.bf16.gmra.mrb[0].mxu0 %v2628
        %v3384 = vpop.f32.mrb[0].mxu0
        %v3385 = vadd.f32 %v2876, %v3384
        %v3386 = vpop.f32.mrb[0].mxu0
        %v3387 = vpop.f32.mrb[0].mxu0
        %v3388 = vadd.f32 %v2876, %v3387
        %v3389 = vpop.f32.mrb[0].mxu0
        %3390 = vmatprep.mubr.bf16.mxu0 %v2638
        %3391 = vmatmul.mubr.bf16.gmra.mrb[0].mxu0 %v2637
        %v3392 = vpop.f32.mrb[0].mxu0
        %v3393 = vadd.f32 %v2876, %v3392
        %v3394 = vpop.f32.mrb[0].mxu0
        %v3395 = vpop.f32.mrb[0].mxu0
        %v3396 = vadd.f32 %v2876, %v3395
        %v3397 = vpop.f32.mrb[0].mxu0
        %3398 = vmatprep.mubr.bf16.mxu0 %v2647
        %3399 = vmatmul.mubr.bf16.gmra.mrb[0].mxu0 %v2646
        %v3400 = vpop.f32.mrb[0].mxu0
        %v3401 = vadd.f32 %v2876, %v3400
        %v3402 = vpop.f32.mrb[0].mxu0
        %v3403 = vpop.f32.mrb[0].mxu0
        %v3404 = vadd.f32 %v2876, %v3403
        %v3405 = vpop.f32.mrb[0].mxu0
        %3406 = vmatprep.mubr.bf16.mxu0 %v2656
        %3407 = vmatmul.mubr.bf16.gmra.mrb[0].mxu0 %v2655
        %v3408 = vpop.f32.mrb[0].mxu0
        %v3409 = vadd.f32 %v2876, %v3408
        %v3410 = vpop.f32.mrb[0].mxu0
        %v3411 = vpop.f32.mrb[0].mxu0
        %v3412 = vadd.f32 %v2876, %v3411
        %v3413 = vpop.f32.mrb[0].mxu0
        %3414 = vmatprep.mubr.bf16.mxu0 %v2665
        %3415 = vmatmul.mubr.bf16.gmra.mrb[0].mxu0 %v2664
        %v3416 = vpop.f32.mrb[0].mxu0
        %v3417 = vadd.f32 %v2876, %v3416
        %v3418 = vpop.f32.mrb[0].mxu0
        %v3419 = vpop.f32.mrb[0].mxu0
        %v3420 = vadd.f32 %v2876, %v3419
        %v3421 = vpop.f32.mrb[0].mxu0
        %3422 = vmatprep.mubr.bf16.mxu0 %v2674
        %3423 = vmatmul.mubr.bf16.gmra.mrb[0].mxu0 %v2673
        %v3424 = vpop.f32.mrb[0].mxu0
        %v3425 = vadd.f32 %v2876, %v3424
        %v3426 = vpop.f32.mrb[0].mxu0
        %v3427 = vpop.f32.mrb[0].mxu0
        %v3428 = vadd.f32 %v2876, %v3427
        %v3429 = vpop.f32.mrb[0].mxu0
        %3430 = vmatprep.mubr.bf16.mxu0 %v2683
        %3431 = vmatmul.mubr.bf16.gmra.mrb[0].mxu0 %v2682
        %v3432 = vpop.f32.mrb[0].mxu0
        %v3433 = vadd.f32 %v2876, %v3432
        %v3434 = vpop.f32.mrb[0].mxu0
        %v3435 = vpop.f32.mrb[0].mxu0
        %v3436 = vadd.f32 %v2876, %v3435
        %v3437 = vpop.f32.mrb[0].mxu0
        %3438 = vmatprep.mubr.bf16.mxu0 %v2692
        %3439 = vmatmul.mubr.bf16.gmra.mrb[0].mxu0 %v2691
        %v3440 = vpop.f32.mrb[0].mxu0
        %v3441 = vadd.f32 %v2876, %v3440
        %v3442 = vpop.f32.mrb[0].mxu0
        %v3443 = vpop.f32.mrb[0].mxu0
        %v3444 = vadd.f32 %v2876, %v3443
        %v3445 = vpop.f32.mrb[0].mxu0
        %3446 = vmatprep.mubr.bf16.mxu0 %v2701
        %3447 = vmatmul.mubr.bf16.gmra.mrb[0].mxu0 %v2700
        %v3448 = vpop.f32.mrb[0].mxu0
        %v3449 = vadd.f32 %v2876, %v3448
        %v3450 = vpop.f32.mrb[0].mxu0
        %v3451 = vpop.f32.mrb[0].mxu0
        %v3452 = vadd.f32 %v2876, %v3451
        %v3453 = vpop.f32.mrb[0].mxu0
        %3454 = vmatprep.mubr.bf16.mxu0 %v2710
        %3455 = vmatmul.mubr.bf16.gmra.mrb[0].mxu0 %v2709
        %v3456 = vpop.f32.mrb[0].mxu0
        %v3457 = vadd.f32 %v2876, %v3456
        %v3458 = vpop.f32.mrb[0].mxu0
        %v3459 = vpop.f32.mrb[0].mxu0
        %v3460 = vadd.f32 %v2876, %v3459
        %v3461 = vpop.f32.mrb[0].mxu0
        %3462 = vmatprep.mubr.bf16.mxu0 %v2719
        %3463 = vmatmul.mubr.bf16.gmra.mrb[0].mxu0 %v2718
        %v3464 = vpop.f32.mrb[0].mxu0
        %v3465 = vadd.f32 %v2876, %v3464
        %v3466 = vpop.f32.mrb[0].mxu0
        %v3467 = vpop.f32.mrb[0].mxu0
        %v3468 = vadd.f32 %v2876, %v3467
        %v3469 = vpop.f32.mrb[0].mxu0
        %3470 = vdwg.mxu0
        %3471 = vmatprep.subr.bf16.mxu0 0
        %3472 = vmatpush1.bf16.msra.mxu0 %v3182
        %3473 = vmatprep.subr.bf16.mxu0 0
        %3474 = vmatpush1.bf16.msra.mxu0 %v3183
        %3475 = vmatprep.subr.bf16.mxu0 0
        %3476 = vmatpush1.bf16.msra.mxu0 %v3184
        %3477 = vmatprep.subr.bf16.mxu0 0
        %3478 = vmatpush1.bf16.msra.mxu0 %v3185
        %3479 = vmatprep.subr.bf16.mxu0 0
        %3480 = vmatpush1.bf16.msra.mxu0 %v3186
        %3481 = vmatprep.subr.bf16.mxu0 0
        %3482 = vmatpush1.bf16.msra.mxu0 %v3187
        %3483 = vmatprep.subr.bf16.mxu0 0
        %3484 = vmatpush1.bf16.msra.mxu0 %v3188
        %3485 = vmatprep.subr.bf16.mxu0 0
        %3486 = vmatpush1.bf16.msra.mxu0 %v3189
        %3487 = vmatprep.subr.bf16.mxu0 0
        %3488 = vmatpush1.bf16.msra.mxu0 %v3190
        %3489 = vmatprep.subr.bf16.mxu0 0
        %3490 = vmatpush1.bf16.msra.mxu0 %v3191
        %3491 = vmatprep.subr.bf16.mxu0 0
        %3492 = vmatpush1.bf16.msra.mxu0 %v3192
        %3493 = vmatprep.subr.bf16.mxu0 0
        %3494 = vmatpush1.bf16.msra.mxu0 %v3193
        %3495 = vmatprep.subr.bf16.mxu0 0
        %3496 = vmatpush1.bf16.msra.mxu0 %v3194
        %3497 = vmatprep.subr.bf16.mxu0 0
        %3498 = vmatpush1.bf16.msra.mxu0 %v3195
        %3499 = vmatprep.subr.bf16.mxu0 0
        %3500 = vmatpush1.bf16.msra.mxu0 %v3196
        %3501 = vmatprep.subr.bf16.mxu0 0
        %3502 = vmatpush1.bf16.msra.mxu0 %v3197
        %3503 = vmatprep.mubr.bf16.mxu0 %v2586
        %3504 = vmatmul.mubr.bf16.gmra.mrb[0].mxu0 %v2585
        %v3505 = vpop.f32.mrb[0].mxu0
        %v3506 = vadd.f32 %v3345, %v3505
        %v3507 = vpop.f32.mrb[0].mxu0
        %v3508 = vpop.f32.mrb[0].mxu0
        %v3509 = vadd.f32 %v3348, %v3508
        %v3510 = vpop.f32.mrb[0].mxu0
        %3511 = vmatprep.mubr.bf16.mxu0 %v2595
        %3512 = vmatmul.mubr.bf16.gmra.mrb[0].mxu0 %v2594
        %v3513 = vpop.f32.mrb[0].mxu0
        %v3514 = vadd.f32 %v3353, %v3513
        %v3515 = vpop.f32.mrb[0].mxu0
        %v3516 = vpop.f32.mrb[0].mxu0
        %v3517 = vadd.f32 %v3356, %v3516
        %v3518 = vpop.f32.mrb[0].mxu0
        %3519 = vmatprep.mubr.bf16.mxu0 %v2604
        %3520 = vmatmul.mubr.bf16.gmra.mrb[0].mxu0 %v2603
        %v3521 = vpop.f32.mrb[0].mxu0
        %v3522 = vadd.f32 %v3361, %v3521
        %v3523 = vpop.f32.mrb[0].mxu0
        %v3524 = vpop.f32.mrb[0].mxu0
        %v3525 = vadd.f32 %v3364, %v3524
        %v3526 = vpop.f32.mrb[0].mxu0
        %3527 = vmatprep.mubr.bf16.mxu0 %v2613
        %3528 = vmatmul.mubr.bf16.gmra.mrb[0].mxu0 %v2612
        %v3529 = vpop.f32.mrb[0].mxu0
        %v3530 = vadd.f32 %v3369, %v3529
        %v3531 = vpop.f32.mrb[0].mxu0
        %v3532 = vpop.f32.mrb[0].mxu0
        %v3533 = vadd.f32 %v3372, %v3532
        %v3534 = vpop.f32.mrb[0].mxu0
        %3535 = vmatprep.mubr.bf16.mxu0 %v2622
        %3536 = vmatmul.mubr.bf16.gmra.mrb[0].mxu0 %v2621
        %v3537 = vpop.f32.mrb[0].mxu0
        %v3538 = vadd.f32 %v3377, %v3537
        %v3539 = vpop.f32.mrb[0].mxu0
        %v3540 = vpop.f32.mrb[0].mxu0
        %v3541 = vadd.f32 %v3380, %v3540
        %v3542 = vpop.f32.mrb[0].mxu0
        %3543 = vmatprep.mubr.bf16.mxu0 %v2631
        %3544 = vmatmul.mubr.bf16.gmra.mrb[0].mxu0 %v2630
        %v3545 = vpop.f32.mrb[0].mxu0
        %v3546 = vadd.f32 %v3385, %v3545
        %v3547 = vpop.f32.mrb[0].mxu0
        %v3548 = vpop.f32.mrb[0].mxu0
        %v3549 = vadd.f32 %v3388, %v3548
        %v3550 = vpop.f32.mrb[0].mxu0
        %3551 = vmatprep.mubr.bf16.mxu0 %v2640
        %3552 = vmatmul.mubr.bf16.gmra.mrb[0].mxu0 %v2639
        %v3553 = vpop.f32.mrb[0].mxu0
        %v3554 = vadd.f32 %v3393, %v3553
        %v3555 = vpop.f32.mrb[0].mxu0
        %v3556 = vpop.f32.mrb[0].mxu0
        %v3557 = vadd.f32 %v3396, %v3556
        %v3558 = vpop.f32.mrb[0].mxu0
        %3559 = vmatprep.mubr.bf16.mxu0 %v2649
        %3560 = vmatmul.mubr.bf16.gmra.mrb[0].mxu0 %v2648
        %v3561 = vpop.f32.mrb[0].mxu0
        %v3562 = vadd.f32 %v3401, %v3561
        %v3563 = vpop.f32.mrb[0].mxu0
        %v3564 = vpop.f32.mrb[0].mxu0
        %v3565 = vadd.f32 %v3404, %v3564
        %v3566 = vpop.f32.mrb[0].mxu0
        %3567 = vmatprep.mubr.bf16.mxu0 %v2658
        %3568 = vmatmul.mubr.bf16.gmra.mrb[0].mxu0 %v2657
        %v3569 = vpop.f32.mrb[0].mxu0
        %v3570 = vadd.f32 %v3409, %v3569
        %v3571 = vpop.f32.mrb[0].mxu0
        %v3572 = vpop.f32.mrb[0].mxu0
        %v3573 = vadd.f32 %v3412, %v3572
        %v3574 = vpop.f32.mrb[0].mxu0
        %3575 = vmatprep.mubr.bf16.mxu0 %v2667
        %3576 = vmatmul.mubr.bf16.gmra.mrb[0].mxu0 %v2666
        %v3577 = vpop.f32.mrb[0].mxu0
        %v3578 = vadd.f32 %v3417, %v3577
        %v3579 = vpop.f32.mrb[0].mxu0
        %v3580 = vpop.f32.mrb[0].mxu0
        %v3581 = vadd.f32 %v3420, %v3580
        %v3582 = vpop.f32.mrb[0].mxu0
        %3583 = vmatprep.mubr.bf16.mxu0 %v2676
        %3584 = vmatmul.mubr.bf16.gmra.mrb[0].mxu0 %v2675
        %v3585 = vpop.f32.mrb[0].mxu0
        %v3586 = vadd.f32 %v3425, %v3585
        %v3587 = vpop.f32.mrb[0].mxu0
        %v3588 = vpop.f32.mrb[0].mxu0
        %v3589 = vadd.f32 %v3428, %v3588
        %v3590 = vpop.f32.mrb[0].mxu0
        %3591 = vmatprep.mubr.bf16.mxu0 %v2685
        %3592 = vmatmul.mubr.bf16.gmra.mrb[0].mxu0 %v2684
        %v3593 = vpop.f32.mrb[0].mxu0
        %v3594 = vadd.f32 %v3433, %v3593
        %v3595 = vpop.f32.mrb[0].mxu0
        %v3596 = vpop.f32.mrb[0].mxu0
        %v3597 = vadd.f32 %v3436, %v3596
        %v3598 = vpop.f32.mrb[0].mxu0
        %3599 = vmatprep.mubr.bf16.mxu0 %v2694
        %3600 = vmatmul.mubr.bf16.gmra.mrb[0].mxu0 %v2693
        %v3601 = vpop.f32.mrb[0].mxu0
        %v3602 = vadd.f32 %v3441, %v3601
        %v3603 = vpop.f32.mrb[0].mxu0
        %v3604 = vpop.f32.mrb[0].mxu0
        %v3605 = vadd.f32 %v3444, %v3604
        %v3606 = vpop.f32.mrb[0].mxu0
        %3607 = vmatprep.mubr.bf16.mxu0 %v2703
        %3608 = vmatmul.mubr.bf16.gmra.mrb[0].mxu0 %v2702
        %v3609 = vpop.f32.mrb[0].mxu0
        %v3610 = vadd.f32 %v3449, %v3609
        %v3611 = vpop.f32.mrb[0].mxu0
        %v3612 = vpop.f32.mrb[0].mxu0
        %v3613 = vadd.f32 %v3452, %v3612
        %v3614 = vpop.f32.mrb[0].mxu0
        %3615 = vmatprep.mubr.bf16.mxu0 %v2712
        %3616 = vmatmul.mubr.bf16.gmra.mrb[0].mxu0 %v2711
        %v3617 = vpop.f32.mrb[0].mxu0
        %v3618 = vadd.f32 %v3457, %v3617
        %v3619 = vpop.f32.mrb[0].mxu0
        %v3620 = vpop.f32.mrb[0].mxu0
        %v3621 = vadd.f32 %v3460, %v3620
        %v3622 = vpop.f32.mrb[0].mxu0
        %3623 = vmatprep.mubr.bf16.mxu0 %v2721
        %3624 = vmatmul.mubr.bf16.gmra.mrb[0].mxu0 %v2720
        %v3625 = vpop.f32.mrb[0].mxu0
        %v3626 = vadd.f32 %v3465, %v3625
        %v3627 = vpop.f32.mrb[0].mxu0
        %v3628 = vpop.f32.mrb[0].mxu0
        %v3629 = vadd.f32 %v3468, %v3628
        %v3630 = vpop.f32.mrb[0].mxu0
        %3631 = vdwg.mxu0
        %3632 = vmatprep.subr.bf16.mxu0 0
        %3633 = vmatpush1.bf16.msra.mxu0 %v3198
        %3634 = vmatprep.subr.bf16.mxu0 0
        %3635 = vmatpush1.bf16.msra.mxu0 %v3199
        %3636 = vmatprep.subr.bf16.mxu0 0
        %3637 = vmatpush1.bf16.msra.mxu0 %v3200
        %3638 = vmatprep.subr.bf16.mxu0 0
        %3639 = vmatpush1.bf16.msra.mxu0 %v3201
        %3640 = vmatprep.subr.bf16.mxu0 0
        %3641 = vmatpush1.bf16.msra.mxu0 %v3202
        %3642 = vmatprep.subr.bf16.mxu0 0
        %3643 = vmatpush1.bf16.msra.mxu0 %v3203
        %3644 = vmatprep.subr.bf16.mxu0 0
        %3645 = vmatpush1.bf16.msra.mxu0 %v3204
        %3646 = vmatprep.subr.bf16.mxu0 0
        %3647 = vmatpush1.bf16.msra.mxu0 %v3205
        %3648 = vmatprep.subr.bf16.mxu0 0
        %3649 = vmatpush1.bf16.msra.mxu0 %v3206
        %3650 = vmatprep.subr.bf16.mxu0 0
        %3651 = vmatpush1.bf16.msra.mxu0 %v3207
        %3652 = vmatprep.subr.bf16.mxu0 0
        %3653 = vmatpush1.bf16.msra.mxu0 %v3208
        %3654 = vmatprep.subr.bf16.mxu0 0
        %3655 = vmatpush1.bf16.msra.mxu0 %v3209
        %3656 = vmatprep.subr.bf16.mxu0 0
        %3657 = vmatpush1.bf16.msra.mxu0 %v3210
        %3658 = vmatprep.subr.bf16.mxu0 0
        %3659 = vmatpush1.bf16.msra.mxu0 %v3211
        %3660 = vmatprep.subr.bf16.mxu0 0
        %3661 = vmatpush1.bf16.msra.mxu0 %v3212
        %3662 = vmatprep.subr.bf16.mxu0 0
        %3663 = vmatpush1.bf16.msra.mxu0 %v3213
        %3664 = vmatprep.mubr.bf16.mxu0 %v2588
        %3665 = vmatmul.mubr.bf16.gmra.mrb[0].mxu0 %v2587
        %v3666 = vpop.f32.mrb[0].mxu0
        %v3667 = vadd.f32 %v3506, %v3666
        %v3668 = vpop.f32.mrb[0].mxu0
        %v3669 = vpop.f32.mrb[0].mxu0
        %v3670 = vadd.f32 %v3509, %v3669
        %v3671 = vpop.f32.mrb[0].mxu0
        %3672 = vmatprep.mubr.bf16.mxu0 %v2597
        %3673 = vmatmul.mubr.bf16.gmra.mrb[0].mxu0 %v2596
        %v3674 = vpop.f32.mrb[0].mxu0
        %v3675 = vadd.f32 %v3514, %v3674
        %v3676 = vpop.f32.mrb[0].mxu0
        %v3677 = vpop.f32.mrb[0].mxu0
        %v3678 = vadd.f32 %v3517, %v3677
        %v3679 = vpop.f32.mrb[0].mxu0
        %3680 = vmatprep.mubr.bf16.mxu0 %v2606
        %3681 = vmatmul.mubr.bf16.gmra.mrb[0].mxu0 %v2605
        %v3682 = vpop.f32.mrb[0].mxu0
        %v3683 = vadd.f32 %v3522, %v3682
        %v3684 = vpop.f32.mrb[0].mxu0
        %v3685 = vpop.f32.mrb[0].mxu0
        %v3686 = vadd.f32 %v3525, %v3685
        %v3687 = vpop.f32.mrb[0].mxu0
        %3688 = vmatprep.mubr.bf16.mxu0 %v2615
        %3689 = vmatmul.mubr.bf16.gmra.mrb[0].mxu0 %v2614
        %v3690 = vpop.f32.mrb[0].mxu0
        %v3691 = vadd.f32 %v3530, %v3690
        %v3692 = vpop.f32.mrb[0].mxu0
        %v3693 = vpop.f32.mrb[0].mxu0
        %v3694 = vadd.f32 %v3533, %v3693
        %v3695 = vpop.f32.mrb[0].mxu0
        %3696 = vmatprep.mubr.bf16.mxu0 %v2624
        %3697 = vmatmul.mubr.bf16.gmra.mrb[0].mxu0 %v2623
        %v3698 = vpop.f32.mrb[0].mxu0
        %v3699 = vadd.f32 %v3538, %v3698
        %v3700 = vpop.f32.mrb[0].mxu0
        %v3701 = vpop.f32.mrb[0].mxu0
        %v3702 = vadd.f32 %v3541, %v3701
        %v3703 = vpop.f32.mrb[0].mxu0
        %3704 = vmatprep.mubr.bf16.mxu0 %v2633
        %3705 = vmatmul.mubr.bf16.gmra.mrb[0].mxu0 %v2632
        %v3706 = vpop.f32.mrb[0].mxu0
        %v3707 = vadd.f32 %v3546, %v3706
        %v3708 = vpop.f32.mrb[0].mxu0
        %v3709 = vpop.f32.mrb[0].mxu0
        %v3710 = vadd.f32 %v3549, %v3709
        %v3711 = vpop.f32.mrb[0].mxu0
        %3712 = vmatprep.mubr.bf16.mxu0 %v2642
        %3713 = vmatmul.mubr.bf16.gmra.mrb[0].mxu0 %v2641
        %v3714 = vpop.f32.mrb[0].mxu0
        %v3715 = vadd.f32 %v3554, %v3714
        %v3716 = vpop.f32.mrb[0].mxu0
        %v3717 = vpop.f32.mrb[0].mxu0
        %v3718 = vadd.f32 %v3557, %v3717
        %v3719 = vpop.f32.mrb[0].mxu0
        %3720 = vmatprep.mubr.bf16.mxu0 %v2651
        %3721 = vmatmul.mubr.bf16.gmra.mrb[0].mxu0 %v2650
        %v3722 = vpop.f32.mrb[0].mxu0
        %v3723 = vadd.f32 %v3562, %v3722
        %v3724 = vpop.f32.mrb[0].mxu0
        %v3725 = vpop.f32.mrb[0].mxu0
        %v3726 = vadd.f32 %v3565, %v3725
        %v3727 = vpop.f32.mrb[0].mxu0
        %3728 = vmatprep.mubr.bf16.mxu0 %v2660
        %3729 = vmatmul.mubr.bf16.gmra.mrb[0].mxu0 %v2659
        %v3730 = vpop.f32.mrb[0].mxu0
        %v3731 = vadd.f32 %v3570, %v3730
        %v3732 = vpop.f32.mrb[0].mxu0
        %v3733 = vpop.f32.mrb[0].mxu0
        %v3734 = vadd.f32 %v3573, %v3733
        %v3735 = vpop.f32.mrb[0].mxu0
        %3736 = vmatprep.mubr.bf16.mxu0 %v2669
        %3737 = vmatmul.mubr.bf16.gmra.mrb[0].mxu0 %v2668
        %v3738 = vpop.f32.mrb[0].mxu0
        %v3739 = vadd.f32 %v3578, %v3738
        %v3740 = vpop.f32.mrb[0].mxu0
        %v3741 = vpop.f32.mrb[0].mxu0
        %v3742 = vadd.f32 %v3581, %v3741
        %v3743 = vpop.f32.mrb[0].mxu0
        %3744 = vmatprep.mubr.bf16.mxu0 %v2678
        %3745 = vmatmul.mubr.bf16.gmra.mrb[0].mxu0 %v2677
        %v3746 = vpop.f32.mrb[0].mxu0
        %v3747 = vadd.f32 %v3586, %v3746
        %v3748 = vpop.f32.mrb[0].mxu0
        %v3749 = vpop.f32.mrb[0].mxu0
        %v3750 = vadd.f32 %v3589, %v3749
        %v3751 = vpop.f32.mrb[0].mxu0
        %3752 = vmatprep.mubr.bf16.mxu0 %v2687
        %3753 = vmatmul.mubr.bf16.gmra.mrb[0].mxu0 %v2686
        %v3754 = vpop.f32.mrb[0].mxu0
        %v3755 = vadd.f32 %v3594, %v3754
        %v3756 = vpop.f32.mrb[0].mxu0
        %v3757 = vpop.f32.mrb[0].mxu0
        %v3758 = vadd.f32 %v3597, %v3757
        %v3759 = vpop.f32.mrb[0].mxu0
        %3760 = vmatprep.mubr.bf16.mxu0 %v2696
        %3761 = vmatmul.mubr.bf16.gmra.mrb[0].mxu0 %v2695
        %v3762 = vpop.f32.mrb[0].mxu0
        %v3763 = vadd.f32 %v3602, %v3762
        %v3764 = vpop.f32.mrb[0].mxu0
        %v3765 = vpop.f32.mrb[0].mxu0
        %v3766 = vadd.f32 %v3605, %v3765
        %v3767 = vpop.f32.mrb[0].mxu0
        %3768 = vmatprep.mubr.bf16.mxu0 %v2705
        %3769 = vmatmul.mubr.bf16.gmra.mrb[0].mxu0 %v2704
        %v3770 = vpop.f32.mrb[0].mxu0
        %v3771 = vadd.f32 %v3610, %v3770
        %v3772 = vpop.f32.mrb[0].mxu0
        %v3773 = vpop.f32.mrb[0].mxu0
        %v3774 = vadd.f32 %v3613, %v3773
        %v3775 = vpop.f32.mrb[0].mxu0
        %3776 = vmatprep.mubr.bf16.mxu0 %v2714
        %3777 = vmatmul.mubr.bf16.gmra.mrb[0].mxu0 %v2713
        %v3778 = vpop.f32.mrb[0].mxu0
        %v3779 = vadd.f32 %v3618, %v3778
        %v3780 = vpop.f32.mrb[0].mxu0
        %v3781 = vpop.f32.mrb[0].mxu0
        %v3782 = vadd.f32 %v3621, %v3781
        %v3783 = vpop.f32.mrb[0].mxu0
        %3784 = vmatprep.mubr.bf16.mxu0 %v2723
        %3785 = vmatmul.mubr.bf16.gmra.mrb[0].mxu0 %v2722
        %v3786 = vpop.f32.mrb[0].mxu0
        %v3787 = vadd.f32 %v3626, %v3786
        %v3788 = vpop.f32.mrb[0].mxu0
        %v3789 = vpop.f32.mrb[0].mxu0
        %v3790 = vadd.f32 %v3629, %v3789
        %v3791 = vpop.f32.mrb[0].mxu0
        %3792 = vdwg.mxu0
        %3793 = vmatprep.subr.bf16.mxu0 0
        %3794 = vmatpush1.bf16.msra.mxu0 %v3214
        %3795 = vmatprep.subr.bf16.mxu0 0
        %3796 = vmatpush1.bf16.msra.mxu0 %v3215
        %3797 = vmatprep.subr.bf16.mxu0 0
        %3798 = vmatpush1.bf16.msra.mxu0 %v3216
        %3799 = vmatprep.subr.bf16.mxu0 0
        %3800 = vmatpush1.bf16.msra.mxu0 %v3217
        %3801 = vmatprep.subr.bf16.mxu0 0
        %3802 = vmatpush1.bf16.msra.mxu0 %v3218
        %3803 = vmatprep.subr.bf16.mxu0 0
        %3804 = vmatpush1.bf16.msra.mxu0 %v3219
        %3805 = vmatprep.subr.bf16.mxu0 0
        %3806 = vmatpush1.bf16.msra.mxu0 %v3220
        %3807 = vmatprep.subr.bf16.mxu0 0
        %3808 = vmatpush1.bf16.msra.mxu0 %v3221
        %3809 = vmatprep.subr.bf16.mxu0 0
        %3810 = vmatpush1.bf16.msra.mxu0 %v3222
        %3811 = vmatprep.subr.bf16.mxu0 0
        %3812 = vmatpush1.bf16.msra.mxu0 %v3223
        %3813 = vmatprep.subr.bf16.mxu0 0
        %3814 = vmatpush1.bf16.msra.mxu0 %v3224
        %3815 = vmatprep.subr.bf16.mxu0 0
        %3816 = vmatpush1.bf16.msra.mxu0 %v3225
        %3817 = vmatprep.subr.bf16.mxu0 0
        %3818 = vmatpush1.bf16.msra.mxu0 %v3226
        %3819 = vmatprep.subr.bf16.mxu0 0
        %3820 = vmatpush1.bf16.msra.mxu0 %v3227
        %3821 = vmatprep.subr.bf16.mxu0 0
        %3822 = vmatpush1.bf16.msra.mxu0 %v3228
        %3823 = vmatprep.subr.bf16.mxu0 0
        %3824 = vmatpush1.bf16.msra.mxu0 %v3229
        %3825 = vmatprep.mubr.bf16.mxu0 %v2590
        %3826 = vmatmul.mubr.bf16.gmra.mrb[0].mxu0 %v2589
        %v3827 = vpop.f32.mrb[0].mxu0
        %v3828 = vadd.f32 %v3667, %v3827
        %v3829 = vpop.f32.mrb[0].mxu0
        %v3830 = vpop.f32.mrb[0].mxu0
        %v3831 = vadd.f32 %v3670, %v3830
        %v3832 = vpop.f32.mrb[0].mxu0
        %3833 = vmatprep.mubr.bf16.mxu0 %v2599
        %3834 = vmatmul.mubr.bf16.gmra.mrb[0].mxu0 %v2598
        %v3835 = vpop.f32.mrb[0].mxu0
        %v3836 = vadd.f32 %v3675, %v3835
        %v3837 = vpop.f32.mrb[0].mxu0
        %v3838 = vpop.f32.mrb[0].mxu0
        %v3839 = vadd.f32 %v3678, %v3838
        %v3840 = vpop.f32.mrb[0].mxu0
        %3841 = vmatprep.mubr.bf16.mxu0 %v2608
        %3842 = vmatmul.mubr.bf16.gmra.mrb[0].mxu0 %v2607
        %v3843 = vpop.f32.mrb[0].mxu0
        %v3844 = vadd.f32 %v3683, %v3843
        %v3845 = vpop.f32.mrb[0].mxu0
        %v3846 = vpop.f32.mrb[0].mxu0
        %v3847 = vadd.f32 %v3686, %v3846
        %v3848 = vpop.f32.mrb[0].mxu0
        %3849 = vmatprep.mubr.bf16.mxu0 %v2617
        %3850 = vmatmul.mubr.bf16.gmra.mrb[0].mxu0 %v2616
        %v3851 = vpop.f32.mrb[0].mxu0
        %v3852 = vadd.f32 %v3691, %v3851
        %v3853 = vpop.f32.mrb[0].mxu0
        %v3854 = vpop.f32.mrb[0].mxu0
        %v3855 = vadd.f32 %v3694, %v3854
        %v3856 = vpop.f32.mrb[0].mxu0
        %3857 = vmatprep.mubr.bf16.mxu0 %v2626
        %3858 = vmatmul.mubr.bf16.gmra.mrb[0].mxu0 %v2625
        %v3859 = vpop.f32.mrb[0].mxu0
        %v3860 = vadd.f32 %v3699, %v3859
        %v3861 = vpop.f32.mrb[0].mxu0
        %v3862 = vpop.f32.mrb[0].mxu0
        %v3863 = vadd.f32 %v3702, %v3862
        %v3864 = vpop.f32.mrb[0].mxu0
        %3865 = vmatprep.mubr.bf16.mxu0 %v2635
        %3866 = vmatmul.mubr.bf16.gmra.mrb[0].mxu0 %v2634
        %v3867 = vpop.f32.mrb[0].mxu0
        %v3868 = vadd.f32 %v3707, %v3867
        %v3869 = vpop.f32.mrb[0].mxu0
        %v3870 = vpop.f32.mrb[0].mxu0
        %v3871 = vadd.f32 %v3710, %v3870
        %v3872 = vpop.f32.mrb[0].mxu0
        %3873 = vmatprep.mubr.bf16.mxu0 %v2644
        %3874 = vmatmul.mubr.bf16.gmra.mrb[0].mxu0 %v2643
        %v3875 = vpop.f32.mrb[0].mxu0
        %v3876 = vadd.f32 %v3715, %v3875
        %v3877 = vpop.f32.mrb[0].mxu0
        %v3878 = vpop.f32.mrb[0].mxu0
        %v3879 = vadd.f32 %v3718, %v3878
        %v3880 = vpop.f32.mrb[0].mxu0
        %3881 = vmatprep.mubr.bf16.mxu0 %v2653
        %3882 = vmatmul.mubr.bf16.gmra.mrb[0].mxu0 %v2652
        %v3883 = vpop.f32.mrb[0].mxu0
        %v3884 = vadd.f32 %v3723, %v3883
        %v3885 = vpop.f32.mrb[0].mxu0
        %v3886 = vpop.f32.mrb[0].mxu0
        %v3887 = vadd.f32 %v3726, %v3886
        %v3888 = vpop.f32.mrb[0].mxu0
        %3889 = vmatprep.mubr.bf16.mxu0 %v2662
        %3890 = vmatmul.mubr.bf16.gmra.mrb[0].mxu0 %v2661
        %v3891 = vpop.f32.mrb[0].mxu0
        %v3892 = vadd.f32 %v3731, %v3891
        %v3893 = vpop.f32.mrb[0].mxu0
        %v3894 = vpop.f32.mrb[0].mxu0
        %v3895 = vadd.f32 %v3734, %v3894
        %v3896 = vpop.f32.mrb[0].mxu0
        %3897 = vmatprep.mubr.bf16.mxu0 %v2671
        %3898 = vmatmul.mubr.bf16.gmra.mrb[0].mxu0 %v2670
        %v3899 = vpop.f32.mrb[0].mxu0
        %v3900 = vadd.f32 %v3739, %v3899
        %v3901 = vpop.f32.mrb[0].mxu0
        %v3902 = vpop.f32.mrb[0].mxu0
        %v3903 = vadd.f32 %v3742, %v3902
        %v3904 = vpop.f32.mrb[0].mxu0
        %3905 = vmatprep.mubr.bf16.mxu0 %v2680
        %3906 = vmatmul.mubr.bf16.gmra.mrb[0].mxu0 %v2679
        %v3907 = vpop.f32.mrb[0].mxu0
        %v3908 = vadd.f32 %v3747, %v3907
        %v3909 = vpop.f32.mrb[0].mxu0
        %v3910 = vpop.f32.mrb[0].mxu0
        %v3911 = vadd.f32 %v3750, %v3910
        %v3912 = vpop.f32.mrb[0].mxu0
        %3913 = vmatprep.mubr.bf16.mxu0 %v2689
        %3914 = vmatmul.mubr.bf16.gmra.mrb[0].mxu0 %v2688
        %v3915 = vpop.f32.mrb[0].mxu0
        %v3916 = vadd.f32 %v3755, %v3915
        %v3917 = vpop.f32.mrb[0].mxu0
        %v3918 = vpop.f32.mrb[0].mxu0
        %v3919 = vadd.f32 %v3758, %v3918
        %v3920 = vpop.f32.mrb[0].mxu0
        %3921 = vmatprep.mubr.bf16.mxu0 %v2698
        %3922 = vmatmul.mubr.bf16.gmra.mrb[0].mxu0 %v2697
        %v3923 = vpop.f32.mrb[0].mxu0
        %v3924 = vadd.f32 %v3763, %v3923
        %v3925 = vpop.f32.mrb[0].mxu0
        %v3926 = vpop.f32.mrb[0].mxu0
        %v3927 = vadd.f32 %v3766, %v3926
        %v3928 = vpop.f32.mrb[0].mxu0
        %3929 = vmatprep.mubr.bf16.mxu0 %v2707
        %3930 = vmatmul.mubr.bf16.gmra.mrb[0].mxu0 %v2706
        %v3931 = vpop.f32.mrb[0].mxu0
        %v3932 = vadd.f32 %v3771, %v3931
        %v3933 = vpop.f32.mrb[0].mxu0
        %v3934 = vpop.f32.mrb[0].mxu0
        %v3935 = vadd.f32 %v3774, %v3934
        %v3936 = vpop.f32.mrb[0].mxu0
        %3937 = vmatprep.mubr.bf16.mxu0 %v2716
        %3938 = vmatmul.mubr.bf16.gmra.mrb[0].mxu0 %v2715
        %v3939 = vpop.f32.mrb[0].mxu0
        %v3940 = vadd.f32 %v3779, %v3939
        %v3941 = vpop.f32.mrb[0].mxu0
        %v3942 = vpop.f32.mrb[0].mxu0
        %v3943 = vadd.f32 %v3782, %v3942
        %v3944 = vpop.f32.mrb[0].mxu0
        %3945 = vmatprep.mubr.bf16.mxu0 %v2725
        %3946 = vmatmul.mubr.bf16.gmra.mrb[0].mxu0 %v2724
        %v3947 = vpop.f32.mrb[0].mxu0
        %v3948 = vadd.f32 %v3787, %v3947
        %v3949 = vpop.f32.mrb[0].mxu0
        %v3950 = vpop.f32.mrb[0].mxu0
        %v3951 = vadd.f32 %v3790, %v3950
        %v3952 = vpop.f32.mrb[0].mxu0
        %3953 = vdwg.mxu0
        %3954 = vmatprep.subr.bf16.mxu0 0
        %3955 = vmatpush1.bf16.msra.mxu0 %v3230
        %3956 = vmatprep.subr.bf16.mxu0 0
        %3957 = vmatpush1.bf16.msra.mxu0 %v3231
        %3958 = vmatprep.subr.bf16.mxu0 0
        %3959 = vmatpush1.bf16.msra.mxu0 %v3232
        %3960 = vmatprep.subr.bf16.mxu0 0
        %3961 = vmatpush1.bf16.msra.mxu0 %v3233
        %3962 = vmatprep.subr.bf16.mxu0 0
        %3963 = vmatpush1.bf16.msra.mxu0 %v3234
        %3964 = vmatprep.subr.bf16.mxu0 0
        %3965 = vmatpush1.bf16.msra.mxu0 %v3235
        %3966 = vmatprep.subr.bf16.mxu0 0
        %3967 = vmatpush1.bf16.msra.mxu0 %v3236
        %3968 = vmatprep.subr.bf16.mxu0 0
        %3969 = vmatpush1.bf16.msra.mxu0 %v3237
        %3970 = vmatprep.subr.bf16.mxu0 0
        %3971 = vmatpush1.bf16.msra.mxu0 0
        %3972 = vmatprep.subr.bf16.mxu0 0
        %3973 = vmatpush1.bf16.msra.mxu0 0
        %3974 = vmatprep.subr.bf16.mxu0 0
        %3975 = vmatpush1.bf16.msra.mxu0 0
        %3976 = vmatprep.subr.bf16.mxu0 0
        %3977 = vmatpush1.bf16.msra.mxu0 0
        %3978 = vmatprep.subr.bf16.mxu0 0
        %3979 = vmatpush1.bf16.msra.mxu0 0
        %3980 = vmatprep.subr.bf16.mxu0 0
        %3981 = vmatpush1.bf16.msra.mxu0 0
        %3982 = vmatprep.subr.bf16.mxu0 0
        %3983 = vmatpush1.bf16.msra.mxu0 0
        %3984 = vmatprep.subr.bf16.mxu0 0
        %3985 = vmatpush1.bf16.msra.mxu0 0
        %3986 = vmatprep.mubr.bf16.mxu0 0
        %3987 = vmatmul.mubr.bf16.gmra.mrb[0].mxu0 %v2591
        %v3988 = vpop.f32.mrb[0].mxu0
        %v3989 = vadd.f32 %v3828, %v3988
        %v3990 = vpop.f32.mrb[0].mxu0
        %v3991 = vpop.f32.mrb[0].mxu0
        %v3992 = vadd.f32 %v3831, %v3991
        %v3993 = vpop.f32.mrb[0].mxu0
        %3994 = vmatprep.mubr.bf16.mxu0 0
        %3995 = vmatmul.mubr.bf16.gmra.mrb[0].mxu0 %v2600
        %v3996 = vpop.f32.mrb[0].mxu0
        %v3997 = vadd.f32 %v3836, %v3996
        %v3998 = vpop.f32.mrb[0].mxu0
        %v3999 = vpop.f32.mrb[0].mxu0
        %v4000 = vadd.f32 %v3839, %v3999
        %v4001 = vpop.f32.mrb[0].mxu0
        %4002 = vmatprep.mubr.bf16.mxu0 0
        %4003 = vmatmul.mubr.bf16.gmra.mrb[0].mxu0 %v2609
        %v4004 = vpop.f32.mrb[0].mxu0
        %v4005 = vadd.f32 %v3844, %v4004
        %v4006 = vpop.f32.mrb[0].mxu0
        %v4007 = vpop.f32.mrb[0].mxu0
        %v4008 = vadd.f32 %v3847, %v4007
        %v4009 = vpop.f32.mrb[0].mxu0
        %4010 = vmatprep.mubr.bf16.mxu0 0
        %4011 = vmatmul.mubr.bf16.gmra.mrb[0].mxu0 %v2618
        %v4012 = vpop.f32.mrb[0].mxu0
        %v4013 = vadd.f32 %v3852, %v4012
        %v4014 = vpop.f32.mrb[0].mxu0
        %v4015 = vpop.f32.mrb[0].mxu0
        %v4016 = vadd.f32 %v3855, %v4015
        %v4017 = vpop.f32.mrb[0].mxu0
        %4018 = vmatprep.mubr.bf16.mxu0 0
        %4019 = vmatmul.mubr.bf16.gmra.mrb[0].mxu0 %v2627
        %v4020 = vpop.f32.mrb[0].mxu0
        %v4021 = vadd.f32 %v3860, %v4020
        %v4022 = vpop.f32.mrb[0].mxu0
        %v4023 = vpop.f32.mrb[0].mxu0
        %v4024 = vadd.f32 %v3863, %v4023
        %v4025 = vpop.f32.mrb[0].mxu0
        %4026 = vmatprep.mubr.bf16.mxu0 0
        %4027 = vmatmul.mubr.bf16.gmra.mrb[0].mxu0 %v2636
        %v4028 = vpop.f32.mrb[0].mxu0
        %v4029 = vadd.f32 %v3868, %v4028
        %v4030 = vpop.f32.mrb[0].mxu0
        %v4031 = vpop.f32.mrb[0].mxu0
        %v4032 = vadd.f32 %v3871, %v4031
        %v4033 = vpop.f32.mrb[0].mxu0
        %4034 = vmatprep.mubr.bf16.mxu0 0
        %4035 = vmatmul.mubr.bf16.gmra.mrb[0].mxu0 %v2645
        %v4036 = vpop.f32.mrb[0].mxu0
        %v4037 = vadd.f32 %v3876, %v4036
        %v4038 = vpop.f32.mrb[0].mxu0
        %v4039 = vpop.f32.mrb[0].mxu0
        %v4040 = vadd.f32 %v3879, %v4039
        %v4041 = vpop.f32.mrb[0].mxu0
        %4042 = vmatprep.mubr.bf16.mxu0 0
        %4043 = vmatmul.mubr.bf16.gmra.mrb[0].mxu0 %v2654
        %v4044 = vpop.f32.mrb[0].mxu0
        %v4045 = vadd.f32 %v3884, %v4044
        %v4046 = vpop.f32.mrb[0].mxu0
        %v4047 = vpop.f32.mrb[0].mxu0
        %v4048 = vadd.f32 %v3887, %v4047
        %v4049 = vpop.f32.mrb[0].mxu0
        %4050 = vmatprep.mubr.bf16.mxu0 0
        %4051 = vmatmul.mubr.bf16.gmra.mrb[0].mxu0 %v2663
        %v4052 = vpop.f32.mrb[0].mxu0
        %v4053 = vadd.f32 %v3892, %v4052
        %v4054 = vpop.f32.mrb[0].mxu0
        %v4055 = vpop.f32.mrb[0].mxu0
        %v4056 = vadd.f32 %v3895, %v4055
        %v4057 = vpop.f32.mrb[0].mxu0
        %4058 = vmatprep.mubr.bf16.mxu0 0
        %4059 = vmatmul.mubr.bf16.gmra.mrb[0].mxu0 %v2672
        %v4060 = vpop.f32.mrb[0].mxu0
        %v4061 = vadd.f32 %v3900, %v4060
        %v4062 = vpop.f32.mrb[0].mxu0
        %v4063 = vpop.f32.mrb[0].mxu0
        %v4064 = vadd.f32 %v3903, %v4063
        %v4065 = vpop.f32.mrb[0].mxu0
        %4066 = vmatprep.mubr.bf16.mxu0 0
        %4067 = vmatmul.mubr.bf16.gmra.mrb[0].mxu0 %v2681
        %v4068 = vpop.f32.mrb[0].mxu0
        %v4069 = vadd.f32 %v3908, %v4068
        %v4070 = vpop.f32.mrb[0].mxu0
        %v4071 = vpop.f32.mrb[0].mxu0
        %v4072 = vadd.f32 %v3911, %v4071
        %v4073 = vpop.f32.mrb[0].mxu0
        %4074 = vmatprep.mubr.bf16.mxu0 0
        %4075 = vmatmul.mubr.bf16.gmra.mrb[0].mxu0 %v2690
        %v4076 = vpop.f32.mrb[0].mxu0
        %v4077 = vadd.f32 %v3916, %v4076
        %v4078 = vpop.f32.mrb[0].mxu0
        %v4079 = vpop.f32.mrb[0].mxu0
        %v4080 = vadd.f32 %v3919, %v4079
        %v4081 = vpop.f32.mrb[0].mxu0
        %4082 = vmatprep.mubr.bf16.mxu0 0
        %4083 = vmatmul.mubr.bf16.gmra.mrb[0].mxu0 %v2699
        %v4084 = vpop.f32.mrb[0].mxu0
        %v4085 = vadd.f32 %v3924, %v4084
        %v4086 = vpop.f32.mrb[0].mxu0
        %v4087 = vpop.f32.mrb[0].mxu0
        %v4088 = vadd.f32 %v3927, %v4087
        %v4089 = vpop.f32.mrb[0].mxu0
        %4090 = vmatprep.mubr.bf16.mxu0 0
        %4091 = vmatmul.mubr.bf16.gmra.mrb[0].mxu0 %v2708
        %v4092 = vpop.f32.mrb[0].mxu0
        %v4093 = vadd.f32 %v3932, %v4092
        %v4094 = vpop.f32.mrb[0].mxu0
        %v4095 = vpop.f32.mrb[0].mxu0
        %v4096 = vadd.f32 %v3935, %v4095
        %v4097 = vpop.f32.mrb[0].mxu0
        %4098 = vmatprep.mubr.bf16.mxu0 0
        %4099 = vmatmul.mubr.bf16.gmra.mrb[0].mxu0 %v2717
        %v4100 = vpop.f32.mrb[0].mxu0
        %v4101 = vadd.f32 %v3940, %v4100
        %v4102 = vpop.f32.mrb[0].mxu0
        %v4103 = vpop.f32.mrb[0].mxu0
        %v4104 = vadd.f32 %v3943, %v4103
        %v4105 = vpop.f32.mrb[0].mxu0
        %4106 = vmatprep.mubr.bf16.mxu0 0
        %4107 = vmatmul.mubr.bf16.gmra.mrb[0].mxu0 %v2726
        %v4108 = vpop.f32.mrb[0].mxu0
        %v4109 = vadd.f32 %v3948, %v4108
        %v4110 = vpop.f32.mrb[0].mxu0
        %v4111 = vpop.f32.mrb[0].mxu0
        %v4112 = vadd.f32 %v3951, %v4111
        %v4113 = vpop.f32.mrb[0].mxu0
        %4114 = vdwg.mxu0
        %v4115 = vmax.f32 %v3989, 0.0
        %v4116 = vmax.f32 %v3992, 0.0
        %v4117 = vmax.f32 %v3997, 0.0
        %v4118 = vmax.f32 %v4000, 0.0
        %v4119 = vmax.f32 %v4005, 0.0
        %v4120 = vmax.f32 %v4008, 0.0
        %v4121 = vmax.f32 %v4013, 0.0
        %v4122 = vmax.f32 %v4016, 0.0
        %v4123 = vmax.f32 %v4021, 0.0
        %v4124 = vmax.f32 %v4024, 0.0
        %v4125 = vmax.f32 %v4029, 0.0
        %v4126 = vmax.f32 %v4032, 0.0
        %v4127 = vmax.f32 %v4037, 0.0
        %v4128 = vmax.f32 %v4040, 0.0
        %v4129 = vmax.f32 %v4045, 0.0
        %v4130 = vmax.f32 %v4048, 0.0
        %v4131 = vmax.f32 %v4053, 0.0
        %v4132 = vmax.f32 %v4056, 0.0
        %v4133 = vmax.f32 %v4061, 0.0
        %v4134 = vmax.f32 %v4064, 0.0
        %v4135 = vmax.f32 %v4069, 0.0
        %v4136 = vmax.f32 %v4072, 0.0
        %v4137 = vmax.f32 %v4077, 0.0
        %v4138 = vmax.f32 %v4080, 0.0
        %v4139 = vmax.f32 %v4085, 0.0
        %v4140 = vmax.f32 %v4088, 0.0
        %v4141 = vmax.f32 %v4093, 0.0
        %v4142 = vmax.f32 %v4096, 0.0
        %v4143 = vmax.f32 %v4101, 0.0
        %v4144 = vmax.f32 %v4104, 0.0
        %v4145 = vmax.f32 %v4109, 0.0
        %v4146 = vmax.f32 %v4112, 0.0
        %v4147 = vpack.c.bf16 %v4116, %v4115
        %v4148 = vpack.c.bf16 %v4118, %v4117
        %v4149 = vpack.c.bf16 %v4120, %v4119
        %v4150 = vpack.c.bf16 %v4122, %v4121
        %v4151 = vpack.c.bf16 %v4124, %v4123
        %v4152 = vpack.c.bf16 %v4126, %v4125
        %v4153 = vpack.c.bf16 %v4128, %v4127
        %v4154 = vpack.c.bf16 %v4130, %v4129
        %v4155 = vpack.c.bf16 %v4132, %v4131
        %v4156 = vpack.c.bf16 %v4134, %v4133
        %v4157 = vpack.c.bf16 %v4136, %v4135
        %v4158 = vpack.c.bf16 %v4138, %v4137
        %v4159 = vpack.c.bf16 %v4140, %v4139
        %v4160 = vpack.c.bf16 %v4142, %v4141
        %v4161 = vpack.c.bf16 %v4144, %v4143
        %v4162 = vpack.c.bf16 %v4146, %v4145
        %v4179 = vunpack.c.l.b16 %v4147
        %v4180 = vunpack.c.h.b16 %v4147
        %v4181 = vunpack.c.l.b16 %v4148
        %v4182 = vunpack.c.h.b16 %v4148
        %v4183 = vunpack.c.l.b16 %v4149
        %v4184 = vunpack.c.h.b16 %v4149
        %v4185 = vunpack.c.l.b16 %v4150
        %v4186 = vunpack.c.h.b16 %v4150
        %v4187 = vunpack.c.l.b16 %v4151
        %v4188 = vunpack.c.h.b16 %v4151
        %v4189 = vunpack.c.l.b16 %v4152
        %v4190 = vunpack.c.h.b16 %v4152
        %v4191 = vunpack.c.l.b16 %v4153
        %v4192 = vunpack.c.h.b16 %v4153
        %v4193 = vunpack.c.l.b16 %v4154
        %v4194 = vunpack.c.h.b16 %v4154
        %v4195 = vunpack.c.l.b16 %v4155
        %v4196 = vunpack.c.h.b16 %v4155
        %v4197 = vunpack.c.l.b16 %v4156
        %v4198 = vunpack.c.h.b16 %v4156
        %v4199 = vunpack.c.l.b16 %v4157
        %v4200 = vunpack.c.h.b16 %v4157
        %v4201 = vunpack.c.l.b16 %v4158
        %v4202 = vunpack.c.h.b16 %v4158
        %v4203 = vunpack.c.l.b16 %v4159
        %v4204 = vunpack.c.h.b16 %v4159
        %v4205 = vunpack.c.l.b16 %v4160
        %v4206 = vunpack.c.h.b16 %v4160
        %v4207 = vunpack.c.l.b16 %v4161
        %v4208 = vunpack.c.h.b16 %v4161
        %v4209 = vunpack.c.l.b16 %v4162
        %v4210 = vunpack.c.h.b16 %v4162
        %v4211 = vpack.c.b16 %v4179, %v4179
        %v4212 = vpack.c.b16 %v4180, %v4180
        %v4213 = vpack.c.b16 %v4181, %v4181
        %v4214 = vpack.c.b16 %v4182, %v4182
        %v4215 = vpack.c.b16 %v4183, %v4183
        %v4216 = vpack.c.b16 %v4184, %v4184
        %v4217 = vpack.c.b16 %v4185, %v4185
        %v4218 = vpack.c.b16 %v4186, %v4186
        %v4219 = vpack.c.b16 %v4187, %v4187
        %v4220 = vpack.c.b16 %v4188, %v4188
        %v4221 = vpack.c.b16 %v4189, %v4189
        %v4222 = vpack.c.b16 %v4190, %v4190
        %v4223 = vpack.c.b16 %v4191, %v4191
        %v4224 = vpack.c.b16 %v4192, %v4192
        %v4225 = vpack.c.b16 %v4193, %v4193
        %v4226 = vpack.c.b16 %v4194, %v4194
        %v4227 = vpack.c.b16 %v4195, %v4195
        %v4228 = vpack.c.b16 %v4196, %v4196
        %v4229 = vpack.c.b16 %v4197, %v4197
        %v4230 = vpack.c.b16 %v4198, %v4198
        %v4231 = vpack.c.b16 %v4199, %v4199
        %v4232 = vpack.c.b16 %v4200, %v4200
        %v4233 = vpack.c.b16 %v4201, %v4201
        %v4234 = vpack.c.b16 %v4202, %v4202
        %v4235 = vpack.c.b16 %v4203, %v4203
        %v4236 = vpack.c.b16 %v4204, %v4204
        %v4237 = vpack.c.b16 %v4205, %v4205
        %v4238 = vpack.c.b16 %v4206, %v4206
        %v4239 = vpack.c.b16 %v4207, %v4207
        %v4240 = vpack.c.b16 %v4208, %v4208
        %v4241 = vpack.c.b16 %v4209, %v4209
        %v4242 = vpack.c.b16 %v4210, %v4210
        %4275 = vst [vmem:[%s203] sm:$0xf] %v4211
        %4276 = vst [vmem:[%s203 + $0x4] sm:$0xf] %v4212
        %4277 = vst [vmem:[%s203 + $0x8] sm:$0xf] %v4213
        %4278 = vst [vmem:[%s203 + $0xc] sm:$0xf] %v4214
        %4279 = vst [vmem:[%s203 + $0x10] sm:$0xf] %v4215
        %4280 = vst [vmem:[%s203 + $0x14] sm:$0xf] %v4216
        %4281 = vst [vmem:[%s203 + $0x18] sm:$0xf] %v4217
        %4282 = vst [vmem:[%s203 + $0x1c] sm:$0xf] %v4218
        %4283 = vst [vmem:[%s203 + $0x20] sm:$0xf] %v4219
        %4284 = vst [vmem:[%s203 + $0x24] sm:$0xf] %v4220
        %4285 = vst [vmem:[%s203 + $0x28] sm:$0xf] %v4221
        %4286 = vst [vmem:[%s203 + $0x2c] sm:$0xf] %v4222
        %4287 = vst [vmem:[%s203 + $0x30] sm:$0xf] %v4223
        %4288 = vst [vmem:[%s203 + $0x34] sm:$0xf] %v4224
        %4289 = vst [vmem:[%s203 + $0x38] sm:$0xf] %v4225
        %4290 = vst [vmem:[%s203 + $0x3c] sm:$0xf] %v4226
        %4291 = vst [vmem:[%s203 + $0x40] sm:$0xf] %v4227
        %4292 = vst [vmem:[%s203 + $0x44] sm:$0xf] %v4228
        %4293 = vst [vmem:[%s203 + $0x48] sm:$0xf] %v4229
        %4294 = vst [vmem:[%s203 + $0x4c] sm:$0xf] %v4230
        %4295 = vst [vmem:[%s203 + $0x50] sm:$0xf] %v4231
        %4296 = vst [vmem:[%s203 + $0x54] sm:$0xf] %v4232
        %4297 = vst [vmem:[%s203 + $0x58] sm:$0xf] %v4233
        %4298 = vst [vmem:[%s203 + $0x5c] sm:$0xf] %v4234
        %4299 = vst [vmem:[%s203 + $0x60] sm:$0xf] %v4235
        %4300 = vst [vmem:[%s203 + $0x64] sm:$0xf] %v4236
        %4301 = vst [vmem:[%s203 + $0x68] sm:$0xf] %v4237
        %4302 = vst [vmem:[%s203 + $0x6c] sm:$0xf] %v4238
        %4303 = vst [vmem:[%s203 + $0x70] sm:$0xf] %v4239
        %4304 = vst [vmem:[%s203 + $0x74] sm:$0xf] %v4240
        %4305 = vst [vmem:[%s203 + $0x78] sm:$0xf] %v4241
        %4306 = vst [vmem:[%s203 + $0x7c] sm:$0xf] %v4242
        %s4307 = sand.u32 %s97, 1
        %s4308 = scalar_lea.sflag [#allocation5], %s4307
        %s4309 = sand.u32 %s97, 1
        %s4310 = smul.addr %s4309, 128
        %s4311 = scalar_lea.vmem [#allocation8], %s4310
        // Predicated region
        $region41: #{conv_block_forward.1} parent=31 // pred_check
          %p4312 = pneg %p107
        $region42: #{conv_block_forward.1} parent=31 // pred_check_branch
          %4314 = sbr.rel (%p4312) target = $region44
        $region43: #{conv_block_forward.1} parent=31 // pred_region
          %s4316 = ssub.s32 2048, 2048
          %4317 = vsyncadd %s4308, %s4316
          %s4318 = smul.addr %s21, 32
          %s4319 = smul.addr %s4318, 64
          %s4320 = scalar_lea.hbm %s3, %s4319
          %s4321 = sshll.u32 %s4311, 4
          %s4322 = int_to_ptr.vmem [resolvable:$true] %s4321
          %4327 = dma.vmem_to_hbm [thread:$0]  %s4322, 2048, %s4320, %s4308, 64, 64, 4
        $region44: #{conv_block_forward.1} parent=31 // pred_fallthru
          _
      $region32: #{conv_block_forward.1} parent=5 // pred_fallthru
        _
      %p4328 = scmp.le.s32.totalorder 2, %s16
      // Predicated region
      $region45: #{conv_block_forward.1} parent=5 // pred_check
        %p4329 = pneg %p4328
      $region46: #{conv_block_forward.1} parent=5 // pred_check_branch
        %4331 = sbr.rel (%p4329) target = $region48
      $region47: #{conv_block_forward.1} parent=5 // pred_region
        %s4332 = ssub.s32 %s16, 2
        // Predicated region
        $region49: #{conv_block_forward.1} parent=47 // pred_check
          %p4333 = pneg %p113
        $region50: #{conv_block_forward.1} parent=47 // pred_check_branch
          %4335 = sbr.rel (%p4333) target = $region52
        $region51: #{conv_block_forward.1} parent=47 // pred_region
          %s4336 = sand.u32 %s98, 1
          %s4337 = scalar_lea.sflag [#allocation5], %s4336
          %s4338 = sand.u32 %s98, 1
          %s4339 = smul.addr %s4338, 128
          %s4340 = scalar_lea.vmem [#allocation8], %s4339
          %4341 = dma.done %s4337, 2048
        $region52: #{conv_block_forward.1} parent=47 // pred_fallthru
          _
      $region48: #{conv_block_forward.1} parent=5 // pred_fallthru
        _
    $region6: #{conv_block_forward.1} parent=1 // loop_footer
      %s20 = sadd.s32 1, %s16
    $region7: #{conv_block_forward.1} parent=1 // loop_footer_branch
      %15 = sbr.rel target = $region3
    $region8: #{conv_block_forward.1} parent=1 // loop_exit
      _
    %4342 = vsyncpa [#allocation4], 1
    %s4343 = scalar_lea.sflag [#allocation4], 1
    %4344 = vsyncpa %s4343, 1
    %4345 = vsyncpa [#allocation7], 1
    %4346 = vsyncpa [#allocation5], 1
    %s4347 = scalar_lea.sflag [#allocation5], 1
    %4348 = vsyncpa %s4347, 1

</llo_original>
